<compile_context>
chip_gen: v6e
topology: v6e:2x2x1
jax: 0.10.0
libtpu: 0.0.40
codegen_flags: <defaults>
</compile_context>

<pallas_src>
import functools

import jax
import jax.numpy as jnp
from jax.experimental import pallas as pl
from jax.experimental.pallas import tpu as pltpu

BN_EPS = 1e-5


# ------------------------------ Pallas kernel ------------------------------- #
def _layer_kernel(w_ref, x_ref, b_ref, y_ref, stats_ref, *, relu):
    """One M-tile of one phase: y = relu(W @ x + b); also emit sum / sum-of-sq.

    w_ref:    (1, Cout, K)    bf16   (weights for this phase)
    x_ref:    (1, K, TM)      bf16   (activation / phase-patch tile)
    b_ref:    (Cout, 1)       f32    (bias, e.g. folded BN shift of prev layer)
    y_ref:    (1, Cout, TM)          (lane-dense output tile)
    stats_ref:(1, Cout, 2)    f32    (per-channel [sum, sum_of_squares] of y)
    """
    w = w_ref[0]                       # (Cout, K)
    x = x_ref[0]                       # (K, TM)
    y = jnp.dot(w, x, preferred_element_type=jnp.float32)    # MXU, f32 acc
    y = y + b_ref[...]                 # (Cout, 1) broadcast over lanes
    if relu:
        y = jnp.maximum(y, 0.0)
    su = jnp.sum(y, axis=-1, keepdims=True)                  # (Cout, 1)
    sq = jnp.sum(y * y, axis=-1, keepdims=True)              # (Cout, 1)
    stats_ref[0, :, :] = jnp.concatenate([su, sq], axis=-1)  # (Cout, 2)
    y_ref[0] = y.astype(y_ref.dtype)


def _pick_tile(M):
    for tm in (512, 256, 128):
        if M % tm == 0:
            return tm
    return M                            # fall back to a single full-M block


def fused_conv_layer(wph, xph, bias, *, relu, out_dtype):
    """wph: (P, Cout, K) bf16; xph: (P, K, M) bf16; bias: (Cout, 1) f32.

    Returns y: (P, Cout, M) out_dtype and stats: (P*n_m, Cout, 2) f32 partial
    per-channel [sum, sumsq] (reduce over axis 0 outside to get layer stats).
    """
    P_, Cout, K = wph.shape
    _, K2, M = xph.shape
    assert K2 == K
    tm = _pick_tile(M)
    n_m = M // tm
    kern = functools.partial(_layer_kernel, relu=relu)
    y, stats = pl.pallas_call(
        kern,
        out_shape=(
            jax.ShapeDtypeStruct((P_, Cout, M), out_dtype),
            jax.ShapeDtypeStruct((P_ * n_m, Cout, 2), jnp.float32),
        ),
        grid=(P_, n_m),
        in_specs=[
            pl.BlockSpec((1, Cout, K), lambda p, m: (p, 0, 0)),
            pl.BlockSpec((1, K, tm), lambda p, m: (p, 0, m)),
            pl.BlockSpec((Cout, 1), lambda p, m: (0, 0)),
        ],
        out_specs=(
            pl.BlockSpec((1, Cout, tm), lambda p, m: (p, 0, m)),
            pl.BlockSpec((1, Cout, 2), lambda p, m: (p * n_m + m, 0, 0)),
        ),
        compiler_params=pltpu.CompilerParams(
            # every grid point writes its own output blocks -> fully parallel
            # (shards across both TensorCores on v7x; no-op on v5e/v6e).
            dimension_semantics=("parallel", "parallel"),
            # tiles are small by construction; explicit limit is safe on
            # v5e (16 MiB default scoped), v6e (32 MiB) and v7x (64 MiB phys).
            vmem_limit_bytes=32 * 1024 * 1024,
        ),
    )(wph, xph, bias)
    return y, stats


# --------------------- ConvTranspose phase decomposition -------------------- #
# out[2i+a, 2j+b] = sum_{dh,dw in {0,1}} sum_cin
#                   xpad[cin, i+a+dh, j+b+dw] * w[cin, cout, 3-a-2dh, 3-b-2dw]
def _convT_phase_weights(w_t):
    """PyTorch ConvTranspose2d weight (Cin, Cout, 4, 4) -> (4 phases, Cout, 4*Cin)."""
    Cin, Cout = w_t.shape[0], w_t.shape[1]
    phases = []
    for a in range(2):
        for b in range(2):
            taps = [w_t[:, :, 3 - a - 2 * dh, 3 - b - 2 * dw]    # (Cin, Cout)
                    for dh in range(2) for dw in range(2)]
            wk = jnp.stack(taps, axis=0)                         # (4, Cin, Cout)
            phases.append(jnp.transpose(wk, (2, 0, 1)).reshape(Cout, 4 * Cin))
    return jnp.stack(phases, axis=0)                             # (4, Cout, 4*Cin)


def _convT_phase_patches(x_cnhw):
    """Activation (Cin, N, H, W) -> phase patches (4, 4*Cin, N*H*W) (no zeros, K=4*Cin)."""
    Cin, N, H, W = x_cnhw.shape
    M = N * H * W
    xp = jnp.pad(x_cnhw, ((0, 0), (0, 0), (1, 1), (1, 1)))
    phases = []
    for a in range(2):
        for b in range(2):
            taps = [xp[:, :, a + dh:a + dh + H, b + dw:b + dw + W].reshape(Cin, M)
                    for dh in range(2) for dw in range(2)]
            phases.append(jnp.concatenate(taps, axis=0))         # (4*Cin, M)
    return jnp.stack(phases, axis=0)                             # (4, 4*Cin, M)


def _interleave_phases(yph, N, Hin, Win):
    """(4, Cout, N*Hin*Win) phase outputs -> (Cout, N, 2*Hin, 2*Win)."""
    Cout = yph.shape[1]
    y = yph.reshape(2, 2, Cout, N, Hin, Win)          # [a, b, c, n, i, j]
    y = jnp.transpose(y, (2, 3, 4, 0, 5, 1))          # [c, n, i, a, j, b]
    return y.reshape(Cout, N, 2 * Hin, 2 * Win)


# ----------------------------- BatchNorm (train) ----------------------------- #
def _bn_affine(stats, count, gamma, beta):
    """Partial stats (G, C, 2) -> per-channel affine (scale, shift) for y_bn = scale*y+shift."""
    s = jnp.sum(stats, axis=0)                        # (C, 2)
    mean = s[:, 0] / count
    var = s[:, 1] / count - mean * mean               # biased var (train-mode forward)
    scale = gamma * jax.lax.rsqrt(var + BN_EPS)
    shift = beta - mean * scale
    return scale, shift


# -------------------------------- forward pass ------------------------------- #
def aae_decoder_forward(x_nchw, params):
    f32, bf16 = jnp.float32, jnp.bfloat16
    N, _, H, W = x_nchw.shape
    x = jnp.transpose(x_nchw, (1, 0, 2, 3)).astype(bf16)          # (h3, N, H, W)

    # block 0: de_conv0 (ConvT h3->h2) -> ReLU  [BN0 stats emitted by kernel]
    wph = _convT_phase_weights(params["w0"]).astype(bf16)
    h2 = wph.shape[1]
    y, st = fused_conv_layer(wph, _convT_phase_patches(x),
                             jnp.zeros((h2, 1), f32), relu=True, out_dtype=bf16)
    y = _interleave_phases(y, N, H, W)                            # (h2, N, 2H, 2W)
    H, W = 2 * H, 2 * W
    M = N * H * W
    sc, sh = _bn_affine(st, M, params["g0"], params["b0"])

    # block 1: de_conv1 (1x1 h2->h1) -> ReLU  [BN0 folded into weights/bias]
    w = params["w1"][:, :, 0, 0]                                  # (h1, h2)
    h1 = w.shape[0]
    w_eff = (w * sc[None, :]).astype(bf16)[None]                  # (1, h1, h2)
    bias = (w @ sh).reshape(h1, 1)
    y, st = fused_conv_layer(w_eff, y.reshape(h2, M)[None], bias,
                             relu=True, out_dtype=bf16)
    y = y[0]                                                      # (h1, M)
    sc, sh = _bn_affine(st, M, params["g1"], params["b1"])

    # block 2: de_conv2 (ConvT h1->h1) -> ReLU  [BN1 fused into patch glue]
    x2 = (sc[:, None] * y.astype(f32) + sh[:, None]).astype(bf16).reshape(h1, N, H, W)
    wph = _convT_phase_weights(params["w2"]).astype(bf16)
    y, st = fused_conv_layer(wph, _convT_phase_patches(x2),
                             jnp.zeros((h1, 1), f32), relu=True, out_dtype=bf16)
    y = _interleave_phases(y, N, H, W)
    H, W = 2 * H, 2 * W
    M = N * H * W
    sc, sh = _bn_affine(st, M, params["g2"], params["b2"])

    # block 3: de_conv3 (1x1 h1->h0) -> ReLU  [BN2 folded into weights/bias]
    w = params["w3"][:, :, 0, 0]                                  # (h0, h1)
    h0 = w.shape[0]
    w_eff = (w * sc[None, :]).astype(bf16)[None]
    bias = (w @ sh).reshape(h0, 1)
    y, st = fused_conv_layer(w_eff, y.reshape(h1, M)[None], bias,
                             relu=True, out_dtype=bf16)
    y = y[0]
    sc, sh = _bn_affine(st, M, params["g3"], params["b3"])

    # block 4: de_conv4 (ConvT h0->3) -> ReLU (no BN)  [BN3 fused into patch glue]
    x4 = (sc[:, None] * y.astype(f32) + sh[:, None]).astype(bf16).reshape(h0, N, H, W)
    wph = _convT_phase_weights(params["w4"]).astype(bf16)
    y, _ = fused_conv_layer(wph, _convT_phase_patches(x4),
                            jnp.zeros((3, 1), f32), relu=True, out_dtype=bf16)
    y = _interleave_phases(y, N, H, W)
    H, W = 2 * H, 2 * W
    M = N * H * W

    # block 5: de_conv5 (1x1 3->3), no activation, f32 output
    w5 = params["w5"][:, :, 0, 0].astype(bf16)[None]              # (1, 3, 3)
    y, _ = fused_conv_layer(w5, y.reshape(3, M)[None],
                            jnp.zeros((3, 1), f32), relu=False, out_dtype=f32)
    y = y[0].reshape(3, N, H, W)
    return jnp.transpose(y, (1, 0, 2, 3))                         # -> NCHW f32


# --------------------------- deterministic parameters ------------------------ #
def init_params(key, hidden_size):
    h0, h1, h2, h3 = hidden_size
    keys = jax.random.split(key, 6)

    def w(k, shape, fan_in):
        bound = 1.0 / (fan_in ** 0.5)
        return jax.random.uniform(k, shape, jnp.float32, -bound, bound)

    return {
        # ConvTranspose2d weights: (Cin, Cout, 4, 4); Conv2d 1x1 weights: (Cout, Cin, 1, 1)
        "w0": w(keys[0], (h3, h2, 4, 4), h3 * 16),
        "w1": w(keys[1], (h1, h2, 1, 1), h2),
        "w2": w(keys[2], (h1, h1, 4, 4), h1 * 16),
        "w3": w(keys[3], (h0, h1, 1, 1), h1),
        "w4": w(keys[4], (h0, 3, 4, 4), h0 * 16),
        "w5": w(keys[5], (3, 3, 1, 1), 3),
        # BatchNorm affine params at PyTorch defaults (weight=1, bias=0); module is
        # in train() mode so normalization uses per-batch statistics.
        "g0": jnp.ones((h2,), jnp.float32), "b0": jnp.zeros((h2,), jnp.float32),
        "g1": jnp.ones((h1,), jnp.float32), "b1": jnp.zeros((h1,), jnp.float32),
        "g2": jnp.ones((h1,), jnp.float32), "b2": jnp.zeros((h1,), jnp.float32),
        "g3": jnp.ones((h0,), jnp.float32), "b3": jnp.zeros((h0,), jnp.float32),
    }


if __name__ == "__main__":
    # hidden_size = [h0, h1, h2, h3]; module input is (N, h3, H, W).
    hidden_size = [4, 8, 16, 32]
    key = jax.random.PRNGKey(0)
    kp, kx = jax.random.split(key)
    params = init_params(kp, hidden_size)
    x = jax.random.normal(kx, (2, hidden_size[3], 4, 4), jnp.float32)

    out = jax.jit(aae_decoder_forward)(x, params)
    out = jax.block_until_ready(out)
    assert out.shape == (2, 3, 32, 32), out.shape
    print("KERNEL_OK")
</pallas_src>

<mosaic_0001>
module attributes {stable_mosaic.version = 11 : i64} {
  func.func @_layer_kernel(%arg0: i32, %arg1: i32, %arg2: memref<1x16x128xbf16, #tpu.memory_space<vmem>>, %arg3: memref<1x128x32xbf16, #tpu.memory_space<vmem>>, %arg4: memref<16x1xf32, #tpu.memory_space<vmem>>, %arg5: memref<1x16x32xbf16, #tpu.memory_space<vmem>>, %arg6: memref<1x16x2xf32, #tpu.memory_space<vmem>>) attributes {dimension_semantics = [#tpu.dimension_semantics<parallel>, #tpu.dimension_semantics<parallel>], iteration_bounds = array<i64: 4, 1>, scalar_prefetch = 0 : i64, scratch_operands = 0 : i64, tpu.core_type = #tpu.core_type<tc>, window_params = [{transform_indices = @transform_0, window_bounds = array<i64: 1, 16, 128>}, {transform_indices = @transform_1, window_bounds = array<i64: 1, 128, 32>}, {pipeline_mode = #tpu.pipeline_mode<synchronous>, transform_indices = @transform_2, window_bounds = array<i64: 16, 1>}, {transform_indices = @transform_3, window_bounds = array<i64: 1, 16, 32>}, {transform_indices = @transform_4, window_bounds = array<i64: 1, 16, 2>}]} {
    %c0 = arith.constant 0 : index
    %c0_0 = arith.constant 0 : index
    %c0_1 = arith.constant 0 : index
    %0 = vector.load %arg2[%c0, %c0_0, %c0_1] : memref<1x16x128xbf16, #tpu.memory_space<vmem>>, vector<1x16x128xbf16>
    %1 = vector.shape_cast %0 : vector<1x16x128xbf16> to vector<16x128xbf16>
    %c0_2 = arith.constant 0 : index
    %c0_3 = arith.constant 0 : index
    %c0_4 = arith.constant 0 : index
    %2 = vector.load %arg3[%c0_2, %c0_3, %c0_4] : memref<1x128x32xbf16, #tpu.memory_space<vmem>>, vector<1x128x32xbf16>
    %3 = vector.shape_cast %2 : vector<1x128x32xbf16> to vector<128x32xbf16>
    %cst = arith.constant dense<0.000000e+00> : vector<16x32xf32>
    %4 = tpu.matmul %1, %3, %cst {dimension_numbers = #tpu.dot_dimension_numbers<[1], [0], [0], [1], [0, 0, 1, 1], [], []>} : vector<16x128xbf16>, vector<128x32xbf16>, vector<16x32xf32> -> vector<16x32xf32>
    %c0_5 = arith.constant 0 : index
    %c0_6 = arith.constant 0 : index
    %5 = vector.load %arg4[%c0_5, %c0_6] : memref<16x1xf32, #tpu.memory_space<vmem>>, vector<16x1xf32>
    %6 = vector.broadcast %5 : vector<16x1xf32> to vector<16x32xf32>
    %7 = arith.addf %4, %6 : vector<16x32xf32>
    %cst_7 = arith.constant 0.000000e+00 : f32
    %8 = vector.broadcast %cst_7 : f32 to vector<16x32xf32>
    %9 = arith.maximumf %7, %8 : vector<16x32xf32>
    %cst_8 = arith.constant dense<0.000000e+00> : vector<16xf32>
    %10 = vector.multi_reduction <add>, %9, %cst_8 [1] : vector<16x32xf32> to vector<16xf32>
    %11 = vector.shape_cast %10 : vector<16xf32> to vector<16x1xf32>
    %12 = arith.mulf %9, %9 : vector<16x32xf32>
    %cst_9 = arith.constant dense<0.000000e+00> : vector<16xf32>
    %13 = vector.multi_reduction <add>, %12, %cst_9 [1] : vector<16x32xf32> to vector<16xf32>
    %14 = vector.shape_cast %13 : vector<16xf32> to vector<16x1xf32>
    %15 = tpu.concatenate %11, %14 in 1 : vector<16x1xf32>, vector<16x1xf32> -> vector<16x2xf32>
    %c0_10 = arith.constant 0 : index
    %c0_11 = arith.constant 0 : index
    %c0_12 = arith.constant 0 : index
    %16 = vector.load %arg6[%c0_10, %c0_11, %c0_12] : memref<1x16x2xf32, #tpu.memory_space<vmem>>, vector<1x16x2xf32>
    %17 = vector.shape_cast %16 : vector<1x16x2xf32> to vector<16x2xf32>
    %18 = vector.shape_cast %15 : vector<16x2xf32> to vector<1x16x2xf32>
    tpu.vector_store %arg6[%c0_10, %c0_11, %c0_12], %18 {strides = array<i32>} : memref<1x16x2xf32, #tpu.memory_space<vmem>>, vector<1x16x2xf32>,
    %19 = arith.truncf %9 : vector<16x32xf32> to vector<16x32xbf16>
    %c0_13 = arith.constant 0 : index
    %c0_14 = arith.constant 0 : index
    %c0_15 = arith.constant 0 : index
    %20 = vector.load %arg5[%c0_13, %c0_14, %c0_15] : memref<1x16x32xbf16, #tpu.memory_space<vmem>>, vector<1x16x32xbf16>
    %21 = vector.shape_cast %20 : vector<1x16x32xbf16> to vector<16x32xbf16>
    %22 = vector.shape_cast %19 : vector<16x32xbf16> to vector<1x16x32xbf16>
    tpu.vector_store %arg5[%c0_13, %c0_14, %c0_15], %22 {strides = array<i32>} : memref<1x16x32xbf16, #tpu.memory_space<vmem>>, vector<1x16x32xbf16>,
    return
  }
  func.func @transform_0(%arg0: i32, %arg1: i32) -> (i32, i32, i32) {
    %c0_i32 = arith.constant 0 : i32
    %c0_i32_0 = arith.constant 0 : i32
    %c0_i32_1 = arith.constant 0 : i32
    return %arg0, %c0_i32, %c0_i32_0 : i32, i32, i32
  }
  func.func @transform_1(%arg0: i32, %arg1: i32) -> (i32, i32, i32) {
    %c0_i32 = arith.constant 0 : i32
    %c0_i32_0 = arith.constant 0 : i32
    return %arg0, %c0_i32, %arg1 : i32, i32, i32
  }
  func.func @transform_2(%arg0: i32, %arg1: i32) -> (i32, i32) {
    %c0_i32 = arith.constant 0 : i32
    %c0_i32_0 = arith.constant 0 : i32
    %c0_i32_1 = arith.constant 0 : i32
    return %c0_i32, %c0_i32_0 : i32, i32
  }
  func.func @transform_3(%arg0: i32, %arg1: i32) -> (i32, i32, i32) {
    %c0_i32 = arith.constant 0 : i32
    %c0_i32_0 = arith.constant 0 : i32
    return %arg0, %c0_i32, %arg1 : i32, i32, i32
  }
  func.func @transform_4(%arg0: i32, %arg1: i32) -> (i32, i32, i32) {
    %c1_i32 = arith.constant 1 : i32
    %0 = arith.muli %arg0, %c1_i32 : i32
    %1 = arith.addi %0, %arg1 : i32
    %c0_i32 = arith.constant 0 : i32
    %c0_i32_0 = arith.constant 0 : i32
    %c0_i32_1 = arith.constant 0 : i32
    return %1, %c0_i32, %c0_i32_0 : i32, i32, i32
  }
}

module attributes {stable_mosaic.version = 11 : i64} {
  func.func @_layer_kernel(%arg0: i32, %arg1: i32, %arg2: memref<1x8x16xbf16, #tpu.memory_space<vmem>>, %arg3: memref<1x16x128xbf16, #tpu.memory_space<vmem>>, %arg4: memref<8x1xf32, #tpu.memory_space<vmem>>, %arg5: memref<1x8x128xbf16, #tpu.memory_space<vmem>>, %arg6: memref<1x8x2xf32, #tpu.memory_space<vmem>>) attributes {dimension_semantics = [#tpu.dimension_semantics<parallel>, #tpu.dimension_semantics<parallel>], iteration_bounds = array<i64: 1, 1>, scalar_prefetch = 0 : i64, scratch_operands = 0 : i64, tpu.core_type = #tpu.core_type<tc>, window_params = [{transform_indices = @transform_0, window_bounds = array<i64: 1, 8, 16>}, {transform_indices = @transform_1, window_bounds = array<i64: 1, 16, 128>}, {pipeline_mode = #tpu.pipeline_mode<synchronous>, transform_indices = @transform_2, window_bounds = array<i64: 8, 1>}, {transform_indices = @transform_3, window_bounds = array<i64: 1, 8, 128>}, {transform_indices = @transform_4, window_bounds = array<i64: 1, 8, 2>}]} {
    %c0 = arith.constant 0 : index
    %c0_0 = arith.constant 0 : index
    %c0_1 = arith.constant 0 : index
    %0 = vector.load %arg2[%c0, %c0_0, %c0_1] : memref<1x8x16xbf16, #tpu.memory_space<vmem>>, vector<1x8x16xbf16>
    %1 = vector.shape_cast %0 : vector<1x8x16xbf16> to vector<8x16xbf16>
    %c0_2 = arith.constant 0 : index
    %c0_3 = arith.constant 0 : index
    %c0_4 = arith.constant 0 : index
    %2 = vector.load %arg3[%c0_2, %c0_3, %c0_4] : memref<1x16x128xbf16, #tpu.memory_space<vmem>>, vector<1x16x128xbf16>
    %3 = vector.shape_cast %2 : vector<1x16x128xbf16> to vector<16x128xbf16>
    %cst = arith.constant dense<0.000000e+00> : vector<8x128xf32>
    %4 = tpu.matmul %1, %3, %cst {dimension_numbers = #tpu.dot_dimension_numbers<[1], [0], [0], [1], [0, 0, 1, 1], [], []>} : vector<8x16xbf16>, vector<16x128xbf16>, vector<8x128xf32> -> vector<8x128xf32>
    %c0_5 = arith.constant 0 : index
    %c0_6 = arith.constant 0 : index
    %5 = vector.load %arg4[%c0_5, %c0_6] : memref<8x1xf32, #tpu.memory_space<vmem>>, vector<8x1xf32>
    %6 = vector.broadcast %5 : vector<8x1xf32> to vector<8x128xf32>
    %7 = arith.addf %4, %6 : vector<8x128xf32>
    %cst_7 = arith.constant 0.000000e+00 : f32
    %8 = vector.broadcast %cst_7 : f32 to vector<8x128xf32>
    %9 = arith.maximumf %7, %8 : vector<8x128xf32>
    %cst_8 = arith.constant dense<0.000000e+00> : vector<8xf32>
    %10 = vector.multi_reduction <add>, %9, %cst_8 [1] : vector<8x128xf32> to vector<8xf32>
    %11 = vector.shape_cast %10 : vector<8xf32> to vector<8x1xf32>
    %12 = arith.mulf %9, %9 : vector<8x128xf32>
    %cst_9 = arith.constant dense<0.000000e+00> : vector<8xf32>
    %13 = vector.multi_reduction <add>, %12, %cst_9 [1] : vector<8x128xf32> to vector<8xf32>
    %14 = vector.shape_cast %13 : vector<8xf32> to vector<8x1xf32>
    %15 = tpu.concatenate %11, %14 in 1 : vector<8x1xf32>, vector<8x1xf32> -> vector<8x2xf32>
    %c0_10 = arith.constant 0 : index
    %c0_11 = arith.constant 0 : index
    %c0_12 = arith.constant 0 : index
    %16 = vector.load %arg6[%c0_10, %c0_11, %c0_12] : memref<1x8x2xf32, #tpu.memory_space<vmem>>, vector<1x8x2xf32>
    %17 = vector.shape_cast %16 : vector<1x8x2xf32> to vector<8x2xf32>
    %18 = vector.shape_cast %15 : vector<8x2xf32> to vector<1x8x2xf32>
    tpu.vector_store %arg6[%c0_10, %c0_11, %c0_12], %18 {strides = array<i32>} : memref<1x8x2xf32, #tpu.memory_space<vmem>>, vector<1x8x2xf32>,
    %19 = arith.truncf %9 : vector<8x128xf32> to vector<8x128xbf16>
    %c0_13 = arith.constant 0 : index
    %c0_14 = arith.constant 0 : index
    %c0_15 = arith.constant 0 : index
    %20 = vector.load %arg5[%c0_13, %c0_14, %c0_15] : memref<1x8x128xbf16, #tpu.memory_space<vmem>>, vector<1x8x128xbf16>
    %21 = vector.shape_cast %20 : vector<1x8x128xbf16> to vector<8x128xbf16>
    %22 = vector.shape_cast %19 : vector<8x128xbf16> to vector<1x8x128xbf16>
    tpu.vector_store %arg5[%c0_13, %c0_14, %c0_15], %22 {strides = array<i32>} : memref<1x8x128xbf16, #tpu.memory_space<vmem>>, vector<1x8x128xbf16>,
    return
  }
  func.func @transform_0(%arg0: i32, %arg1: i32) -> (i32, i32, i32) {
    %c0_i32 = arith.constant 0 : i32
    %c0_i32_0 = arith.constant 0 : i32
    %c0_i32_1 = arith.constant 0 : i32
    return %arg0, %c0_i32, %c0_i32_0 : i32, i32, i32
  }
  func.func @transform_1(%arg0: i32, %arg1: i32) -> (i32, i32, i32) {
    %c0_i32 = arith.constant 0 : i32
    %c0_i32_0 = arith.constant 0 : i32
    return %arg0, %c0_i32, %arg1 : i32, i32, i32
  }
  func.func @transform_2(%arg0: i32, %arg1: i32) -> (i32, i32) {
    %c0_i32 = arith.constant 0 : i32
    %c0_i32_0 = arith.constant 0 : i32
    %c0_i32_1 = arith.constant 0 : i32
    return %c0_i32, %c0_i32_0 : i32, i32
  }
  func.func @transform_3(%arg0: i32, %arg1: i32) -> (i32, i32, i32) {
    %c0_i32 = arith.constant 0 : i32
    %c0_i32_0 = arith.constant 0 : i32
    return %arg0, %c0_i32, %arg1 : i32, i32, i32
  }
  func.func @transform_4(%arg0: i32, %arg1: i32) -> (i32, i32, i32) {
    %c1_i32 = arith.constant 1 : i32
    %0 = arith.muli %arg0, %c1_i32 : i32
    %1 = arith.addi %0, %arg1 : i32
    %c0_i32 = arith.constant 0 : i32
    %c0_i32_0 = arith.constant 0 : i32
    %c0_i32_1 = arith.constant 0 : i32
    return %1, %c0_i32, %c0_i32_0 : i32, i32, i32
  }
}

module attributes {stable_mosaic.version = 11 : i64} {
  func.func @_layer_kernel(%arg0: i32, %arg1: i32, %arg2: memref<1x8x32xbf16, #tpu.memory_space<vmem>>, %arg3: memref<1x32x128xbf16, #tpu.memory_space<vmem>>, %arg4: memref<8x1xf32, #tpu.memory_space<vmem>>, %arg5: memref<1x8x128xbf16, #tpu.memory_space<vmem>>, %arg6: memref<1x8x2xf32, #tpu.memory_space<vmem>>) attributes {dimension_semantics = [#tpu.dimension_semantics<parallel>, #tpu.dimension_semantics<parallel>], iteration_bounds = array<i64: 4, 1>, scalar_prefetch = 0 : i64, scratch_operands = 0 : i64, tpu.core_type = #tpu.core_type<tc>, window_params = [{transform_indices = @transform_0, window_bounds = array<i64: 1, 8, 32>}, {transform_indices = @transform_1, window_bounds = array<i64: 1, 32, 128>}, {pipeline_mode = #tpu.pipeline_mode<synchronous>, transform_indices = @transform_2, window_bounds = array<i64: 8, 1>}, {transform_indices = @transform_3, window_bounds = array<i64: 1, 8, 128>}, {transform_indices = @transform_4, window_bounds = array<i64: 1, 8, 2>}]} {
    %c0 = arith.constant 0 : index
    %c0_0 = arith.constant 0 : index
    %c0_1 = arith.constant 0 : index
    %0 = vector.load %arg2[%c0, %c0_0, %c0_1] : memref<1x8x32xbf16, #tpu.memory_space<vmem>>, vector<1x8x32xbf16>
    %1 = vector.shape_cast %0 : vector<1x8x32xbf16> to vector<8x32xbf16>
    %c0_2 = arith.constant 0 : index
    %c0_3 = arith.constant 0 : index
    %c0_4 = arith.constant 0 : index
    %2 = vector.load %arg3[%c0_2, %c0_3, %c0_4] : memref<1x32x128xbf16, #tpu.memory_space<vmem>>, vector<1x32x128xbf16>
    %3 = vector.shape_cast %2 : vector<1x32x128xbf16> to vector<32x128xbf16>
    %cst = arith.constant dense<0.000000e+00> : vector<8x128xf32>
    %4 = tpu.matmul %1, %3, %cst {dimension_numbers = #tpu.dot_dimension_numbers<[1], [0], [0], [1], [0, 0, 1, 1], [], []>} : vector<8x32xbf16>, vector<32x128xbf16>, vector<8x128xf32> -> vector<8x128xf32>
    %c0_5 = arith.constant 0 : index
    %c0_6 = arith.constant 0 : index
    %5 = vector.load %arg4[%c0_5, %c0_6] : memref<8x1xf32, #tpu.memory_space<vmem>>, vector<8x1xf32>
    %6 = vector.broadcast %5 : vector<8x1xf32> to vector<8x128xf32>
    %7 = arith.addf %4, %6 : vector<8x128xf32>
    %cst_7 = arith.constant 0.000000e+00 : f32
    %8 = vector.broadcast %cst_7 : f32 to vector<8x128xf32>
    %9 = arith.maximumf %7, %8 : vector<8x128xf32>
    %cst_8 = arith.constant dense<0.000000e+00> : vector<8xf32>
    %10 = vector.multi_reduction <add>, %9, %cst_8 [1] : vector<8x128xf32> to vector<8xf32>
    %11 = vector.shape_cast %10 : vector<8xf32> to vector<8x1xf32>
    %12 = arith.mulf %9, %9 : vector<8x128xf32>
    %cst_9 = arith.constant dense<0.000000e+00> : vector<8xf32>
    %13 = vector.multi_reduction <add>, %12, %cst_9 [1] : vector<8x128xf32> to vector<8xf32>
    %14 = vector.shape_cast %13 : vector<8xf32> to vector<8x1xf32>
    %15 = tpu.concatenate %11, %14 in 1 : vector<8x1xf32>, vector<8x1xf32> -> vector<8x2xf32>
    %c0_10 = arith.constant 0 : index
    %c0_11 = arith.constant 0 : index
    %c0_12 = arith.constant 0 : index
    %16 = vector.load %arg6[%c0_10, %c0_11, %c0_12] : memref<1x8x2xf32, #tpu.memory_space<vmem>>, vector<1x8x2xf32>
    %17 = vector.shape_cast %16 : vector<1x8x2xf32> to vector<8x2xf32>
    %18 = vector.shape_cast %15 : vector<8x2xf32> to vector<1x8x2xf32>
    tpu.vector_store %arg6[%c0_10, %c0_11, %c0_12], %18 {strides = array<i32>} : memref<1x8x2xf32, #tpu.memory_space<vmem>>, vector<1x8x2xf32>,
    %19 = arith.truncf %9 : vector<8x128xf32> to vector<8x128xbf16>
    %c0_13 = arith.constant 0 : index
    %c0_14 = arith.constant 0 : index
    %c0_15 = arith.constant 0 : index
    %20 = vector.load %arg5[%c0_13, %c0_14, %c0_15] : memref<1x8x128xbf16, #tpu.memory_space<vmem>>, vector<1x8x128xbf16>
    %21 = vector.shape_cast %20 : vector<1x8x128xbf16> to vector<8x128xbf16>
    %22 = vector.shape_cast %19 : vector<8x128xbf16> to vector<1x8x128xbf16>
    tpu.vector_store %arg5[%c0_13, %c0_14, %c0_15], %22 {strides = array<i32>} : memref<1x8x128xbf16, #tpu.memory_space<vmem>>, vector<1x8x128xbf16>,
    return
  }
  func.func @transform_0(%arg0: i32, %arg1: i32) -> (i32, i32, i32) {
    %c0_i32 = arith.constant 0 : i32
    %c0_i32_0 = arith.constant 0 : i32
    %c0_i32_1 = arith.constant 0 : i32
    return %arg0, %c0_i32, %c0_i32_0 : i32, i32, i32
  }
  func.func @transform_1(%arg0: i32, %arg1: i32) -> (i32, i32, i32) {
    %c0_i32 = arith.constant 0 : i32
    %c0_i32_0 = arith.constant 0 : i32
    return %arg0, %c0_i32, %arg1 : i32, i32, i32
  }
  func.func @transform_2(%arg0: i32, %arg1: i32) -> (i32, i32) {
    %c0_i32 = arith.constant 0 : i32
    %c0_i32_0 = arith.constant 0 : i32
    %c0_i32_1 = arith.constant 0 : i32
    return %c0_i32, %c0_i32_0 : i32, i32
  }
  func.func @transform_3(%arg0: i32, %arg1: i32) -> (i32, i32, i32) {
    %c0_i32 = arith.constant 0 : i32
    %c0_i32_0 = arith.constant 0 : i32
    return %arg0, %c0_i32, %arg1 : i32, i32, i32
  }
  func.func @transform_4(%arg0: i32, %arg1: i32) -> (i32, i32, i32) {
    %c1_i32 = arith.constant 1 : i32
    %0 = arith.muli %arg0, %c1_i32 : i32
    %1 = arith.addi %0, %arg1 : i32
    %c0_i32 = arith.constant 0 : i32
    %c0_i32_0 = arith.constant 0 : i32
    %c0_i32_1 = arith.constant 0 : i32
    return %1, %c0_i32, %c0_i32_0 : i32, i32, i32
  }
}

module attributes {stable_mosaic.version = 11 : i64} {
  func.func @_layer_kernel(%arg0: i32, %arg1: i32, %arg2: memref<1x4x8xbf16, #tpu.memory_space<vmem>>, %arg3: memref<1x8x512xbf16, #tpu.memory_space<vmem>>, %arg4: memref<4x1xf32, #tpu.memory_space<vmem>>, %arg5: memref<1x4x512xbf16, #tpu.memory_space<vmem>>, %arg6: memref<1x4x2xf32, #tpu.memory_space<vmem>>) attributes {dimension_semantics = [#tpu.dimension_semantics<parallel>, #tpu.dimension_semantics<parallel>], iteration_bounds = array<i64: 1, 1>, scalar_prefetch = 0 : i64, scratch_operands = 0 : i64, tpu.core_type = #tpu.core_type<tc>, window_params = [{transform_indices = @transform_0, window_bounds = array<i64: 1, 4, 8>}, {transform_indices = @transform_1, window_bounds = array<i64: 1, 8, 512>}, {pipeline_mode = #tpu.pipeline_mode<synchronous>, transform_indices = @transform_2, window_bounds = array<i64: 4, 1>}, {transform_indices = @transform_3, window_bounds = array<i64: 1, 4, 512>}, {transform_indices = @transform_4, window_bounds = array<i64: 1, 4, 2>}]} {
    %c0 = arith.constant 0 : index
    %c0_0 = arith.constant 0 : index
    %c0_1 = arith.constant 0 : index
    %0 = vector.load %arg2[%c0, %c0_0, %c0_1] : memref<1x4x8xbf16, #tpu.memory_space<vmem>>, vector<1x4x8xbf16>
    %1 = vector.shape_cast %0 : vector<1x4x8xbf16> to vector<4x8xbf16>
    %c0_2 = arith.constant 0 : index
    %c0_3 = arith.constant 0 : index
    %c0_4 = arith.constant 0 : index
    %2 = vector.load %arg3[%c0_2, %c0_3, %c0_4] : memref<1x8x512xbf16, #tpu.memory_space<vmem>>, vector<1x8x512xbf16>
    %3 = vector.shape_cast %2 : vector<1x8x512xbf16> to vector<8x512xbf16>
    %cst = arith.constant dense<0.000000e+00> : vector<4x512xf32>
    %4 = tpu.matmul %1, %3, %cst {dimension_numbers = #tpu.dot_dimension_numbers<[1], [0], [0], [1], [0, 0, 1, 1], [], []>} : vector<4x8xbf16>, vector<8x512xbf16>, vector<4x512xf32> -> vector<4x512xf32>
    %c0_5 = arith.constant 0 : index
    %c0_6 = arith.constant 0 : index
    %5 = vector.load %arg4[%c0_5, %c0_6] : memref<4x1xf32, #tpu.memory_space<vmem>>, vector<4x1xf32>
    %6 = vector.broadcast %5 : vector<4x1xf32> to vector<4x512xf32>
    %7 = arith.addf %4, %6 : vector<4x512xf32>
    %cst_7 = arith.constant 0.000000e+00 : f32
    %8 = vector.broadcast %cst_7 : f32 to vector<4x512xf32>
    %9 = arith.maximumf %7, %8 : vector<4x512xf32>
    %cst_8 = arith.constant dense<0.000000e+00> : vector<4xf32>
    %10 = vector.multi_reduction <add>, %9, %cst_8 [1] : vector<4x512xf32> to vector<4xf32>
    %11 = vector.shape_cast %10 : vector<4xf32> to vector<4x1xf32>
    %12 = arith.mulf %9, %9 : vector<4x512xf32>
    %cst_9 = arith.constant dense<0.000000e+00> : vector<4xf32>
    %13 = vector.multi_reduction <add>, %12, %cst_9 [1] : vector<4x512xf32> to vector<4xf32>
    %14 = vector.shape_cast %13 : vector<4xf32> to vector<4x1xf32>
    %15 = tpu.concatenate %11, %14 in 1 : vector<4x1xf32>, vector<4x1xf32> -> vector<4x2xf32>
    %c0_10 = arith.constant 0 : index
    %c0_11 = arith.constant 0 : index
    %c0_12 = arith.constant 0 : index
    %16 = vector.load %arg6[%c0_10, %c0_11, %c0_12] : memref<1x4x2xf32, #tpu.memory_space<vmem>>, vector<1x4x2xf32>
    %17 = vector.shape_cast %16 : vector<1x4x2xf32> to vector<4x2xf32>
    %18 = vector.shape_cast %15 : vector<4x2xf32> to vector<1x4x2xf32>
    tpu.vector_store %arg6[%c0_10, %c0_11, %c0_12], %18 {strides = array<i32>} : memref<1x4x2xf32, #tpu.memory_space<vmem>>, vector<1x4x2xf32>,
    %19 = arith.truncf %9 : vector<4x512xf32> to vector<4x512xbf16>
    %c0_13 = arith.constant 0 : index
    %c0_14 = arith.constant 0 : index
    %c0_15 = arith.constant 0 : index
    %20 = vector.load %arg5[%c0_13, %c0_14, %c0_15] : memref<1x4x512xbf16, #tpu.memory_space<vmem>>, vector<1x4x512xbf16>
    %21 = vector.shape_cast %20 : vector<1x4x512xbf16> to vector<4x512xbf16>
    %22 = vector.shape_cast %19 : vector<4x512xbf16> to vector<1x4x512xbf16>
    tpu.vector_store %arg5[%c0_13, %c0_14, %c0_15], %22 {strides = array<i32>} : memref<1x4x512xbf16, #tpu.memory_space<vmem>>, vector<1x4x512xbf16>,
    return
  }
  func.func @transform_0(%arg0: i32, %arg1: i32) -> (i32, i32, i32) {
    %c0_i32 = arith.constant 0 : i32
    %c0_i32_0 = arith.constant 0 : i32
    %c0_i32_1 = arith.constant 0 : i32
    return %arg0, %c0_i32, %c0_i32_0 : i32, i32, i32
  }
  func.func @transform_1(%arg0: i32, %arg1: i32) -> (i32, i32, i32) {
    %c0_i32 = arith.constant 0 : i32
    %c0_i32_0 = arith.constant 0 : i32
    return %arg0, %c0_i32, %arg1 : i32, i32, i32
  }
  func.func @transform_2(%arg0: i32, %arg1: i32) -> (i32, i32) {
    %c0_i32 = arith.constant 0 : i32
    %c0_i32_0 = arith.constant 0 : i32
    %c0_i32_1 = arith.constant 0 : i32
    return %c0_i32, %c0_i32_0 : i32, i32
  }
  func.func @transform_3(%arg0: i32, %arg1: i32) -> (i32, i32, i32) {
    %c0_i32 = arith.constant 0 : i32
    %c0_i32_0 = arith.constant 0 : i32
    return %arg0, %c0_i32, %arg1 : i32, i32, i32
  }
  func.func @transform_4(%arg0: i32, %arg1: i32) -> (i32, i32, i32) {
    %c1_i32 = arith.constant 1 : i32
    %0 = arith.muli %arg0, %c1_i32 : i32
    %1 = arith.addi %0, %arg1 : i32
    %c0_i32 = arith.constant 0 : i32
    %c0_i32_0 = arith.constant 0 : i32
    %c0_i32_1 = arith.constant 0 : i32
    return %1, %c0_i32, %c0_i32_0 : i32, i32, i32
  }
}

module attributes {stable_mosaic.version = 11 : i64} {
  func.func @_layer_kernel(%arg0: i32, %arg1: i32, %arg2: memref<1x3x16xbf16, #tpu.memory_space<vmem>>, %arg3: memref<1x16x512xbf16, #tpu.memory_space<vmem>>, %arg4: memref<3x1xf32, #tpu.memory_space<vmem>>, %arg5: memref<1x3x512xbf16, #tpu.memory_space<vmem>>, %arg6: memref<1x3x2xf32, #tpu.memory_space<vmem>>) attributes {dimension_semantics = [#tpu.dimension_semantics<parallel>, #tpu.dimension_semantics<parallel>], iteration_bounds = array<i64: 4, 1>, scalar_prefetch = 0 : i64, scratch_operands = 0 : i64, tpu.core_type = #tpu.core_type<tc>, window_params = [{transform_indices = @transform_0, window_bounds = array<i64: 1, 3, 16>}, {transform_indices = @transform_1, window_bounds = array<i64: 1, 16, 512>}, {pipeline_mode = #tpu.pipeline_mode<synchronous>, transform_indices = @transform_2, window_bounds = array<i64: 3, 1>}, {transform_indices = @transform_3, window_bounds = array<i64: 1, 3, 512>}, {transform_indices = @transform_4, window_bounds = array<i64: 1, 3, 2>}]} {
    %c0 = arith.constant 0 : index
    %c0_0 = arith.constant 0 : index
    %c0_1 = arith.constant 0 : index
    %0 = vector.load %arg2[%c0, %c0_0, %c0_1] : memref<1x3x16xbf16, #tpu.memory_space<vmem>>, vector<1x3x16xbf16>
    %1 = vector.shape_cast %0 : vector<1x3x16xbf16> to vector<3x16xbf16>
    %c0_2 = arith.constant 0 : index
    %c0_3 = arith.constant 0 : index
    %c0_4 = arith.constant 0 : index
    %2 = vector.load %arg3[%c0_2, %c0_3, %c0_4] : memref<1x16x512xbf16, #tpu.memory_space<vmem>>, vector<1x16x512xbf16>
    %3 = vector.shape_cast %2 : vector<1x16x512xbf16> to vector<16x512xbf16>
    %cst = arith.constant dense<0.000000e+00> : vector<3x512xf32>
    %4 = tpu.matmul %1, %3, %cst {dimension_numbers = #tpu.dot_dimension_numbers<[1], [0], [0], [1], [0, 0, 1, 1], [], []>} : vector<3x16xbf16>, vector<16x512xbf16>, vector<3x512xf32> -> vector<3x512xf32>
    %c0_5 = arith.constant 0 : index
    %c0_6 = arith.constant 0 : index
    %5 = vector.load %arg4[%c0_5, %c0_6] : memref<3x1xf32, #tpu.memory_space<vmem>>, vector<3x1xf32>
    %6 = vector.broadcast %5 : vector<3x1xf32> to vector<3x512xf32>
    %7 = arith.addf %4, %6 : vector<3x512xf32>
    %cst_7 = arith.constant 0.000000e+00 : f32
    %8 = vector.broadcast %cst_7 : f32 to vector<3x512xf32>
    %9 = arith.maximumf %7, %8 : vector<3x512xf32>
    %cst_8 = arith.constant dense<0.000000e+00> : vector<3xf32>
    %10 = vector.multi_reduction <add>, %9, %cst_8 [1] : vector<3x512xf32> to vector<3xf32>
    %11 = vector.shape_cast %10 : vector<3xf32> to vector<3x1xf32>
    %12 = arith.mulf %9, %9 : vector<3x512xf32>
    %cst_9 = arith.constant dense<0.000000e+00> : vector<3xf32>
    %13 = vector.multi_reduction <add>, %12, %cst_9 [1] : vector<3x512xf32> to vector<3xf32>
    %14 = vector.shape_cast %13 : vector<3xf32> to vector<3x1xf32>
    %15 = tpu.concatenate %11, %14 in 1 : vector<3x1xf32>, vector<3x1xf32> -> vector<3x2xf32>
    %c0_10 = arith.constant 0 : index
    %c0_11 = arith.constant 0 : index
    %c0_12 = arith.constant 0 : index
    %16 = vector.load %arg6[%c0_10, %c0_11, %c0_12] : memref<1x3x2xf32, #tpu.memory_space<vmem>>, vector<1x3x2xf32>
    %17 = vector.shape_cast %16 : vector<1x3x2xf32> to vector<3x2xf32>
    %18 = vector.shape_cast %15 : vector<3x2xf32> to vector<1x3x2xf32>
    tpu.vector_store %arg6[%c0_10, %c0_11, %c0_12], %18 {strides = array<i32>} : memref<1x3x2xf32, #tpu.memory_space<vmem>>, vector<1x3x2xf32>,
    %19 = arith.truncf %9 : vector<3x512xf32> to vector<3x512xbf16>
    %c0_13 = arith.constant 0 : index
    %c0_14 = arith.constant 0 : index
    %c0_15 = arith.constant 0 : index
    %20 = vector.load %arg5[%c0_13, %c0_14, %c0_15] : memref<1x3x512xbf16, #tpu.memory_space<vmem>>, vector<1x3x512xbf16>
    %21 = vector.shape_cast %20 : vector<1x3x512xbf16> to vector<3x512xbf16>
    %22 = vector.shape_cast %19 : vector<3x512xbf16> to vector<1x3x512xbf16>
    tpu.vector_store %arg5[%c0_13, %c0_14, %c0_15], %22 {strides = array<i32>} : memref<1x3x512xbf16, #tpu.memory_space<vmem>>, vector<1x3x512xbf16>,
    return
  }
  func.func @transform_0(%arg0: i32, %arg1: i32) -> (i32, i32, i32) {
    %c0_i32 = arith.constant 0 : i32
    %c0_i32_0 = arith.constant 0 : i32
    %c0_i32_1 = arith.constant 0 : i32
    return %arg0, %c0_i32, %c0_i32_0 : i32, i32, i32
  }
  func.func @transform_1(%arg0: i32, %arg1: i32) -> (i32, i32, i32) {
    %c0_i32 = arith.constant 0 : i32
    %c0_i32_0 = arith.constant 0 : i32
    return %arg0, %c0_i32, %arg1 : i32, i32, i32
  }
  func.func @transform_2(%arg0: i32, %arg1: i32) -> (i32, i32) {
    %c0_i32 = arith.constant 0 : i32
    %c0_i32_0 = arith.constant 0 : i32
    %c0_i32_1 = arith.constant 0 : i32
    return %c0_i32, %c0_i32_0 : i32, i32
  }
  func.func @transform_3(%arg0: i32, %arg1: i32) -> (i32, i32, i32) {
    %c0_i32 = arith.constant 0 : i32
    %c0_i32_0 = arith.constant 0 : i32
    return %arg0, %c0_i32, %arg1 : i32, i32, i32
  }
  func.func @transform_4(%arg0: i32, %arg1: i32) -> (i32, i32, i32) {
    %c1_i32 = arith.constant 1 : i32
    %0 = arith.muli %arg0, %c1_i32 : i32
    %1 = arith.addi %0, %arg1 : i32
    %c0_i32 = arith.constant 0 : i32
    %c0_i32_0 = arith.constant 0 : i32
    %c0_i32_1 = arith.constant 0 : i32
    return %1, %c0_i32, %c0_i32_0 : i32, i32, i32
  }
}

module attributes {stable_mosaic.version = 11 : i64} {
  func.func @_layer_kernel(%arg0: i32, %arg1: i32, %arg2: memref<1x3x3xbf16, #tpu.memory_space<vmem>>, %arg3: memref<1x3x512xbf16, #tpu.memory_space<vmem>>, %arg4: memref<3x1xf32, #tpu.memory_space<vmem>>, %arg5: memref<1x3x512xf32, #tpu.memory_space<vmem>>, %arg6: memref<1x3x2xf32, #tpu.memory_space<vmem>>) attributes {dimension_semantics = [#tpu.dimension_semantics<parallel>, #tpu.dimension_semantics<parallel>], iteration_bounds = array<i64: 1, 4>, scalar_prefetch = 0 : i64, scratch_operands = 0 : i64, tpu.core_type = #tpu.core_type<tc>, window_params = [{transform_indices = @transform_0, window_bounds = array<i64: 1, 3, 3>}, {transform_indices = @transform_1, window_bounds = array<i64: 1, 3, 512>}, {pipeline_mode = #tpu.pipeline_mode<synchronous>, transform_indices = @transform_2, window_bounds = array<i64: 3, 1>}, {transform_indices = @transform_3, window_bounds = array<i64: 1, 3, 512>}, {transform_indices = @transform_4, window_bounds = array<i64: 1, 3, 2>}]} {
    %c0 = arith.constant 0 : index
    %c0_0 = arith.constant 0 : index
    %c0_1 = arith.constant 0 : index
    %0 = vector.load %arg2[%c0, %c0_0, %c0_1] : memref<1x3x3xbf16, #tpu.memory_space<vmem>>, vector<1x3x3xbf16>
    %1 = vector.shape_cast %0 : vector<1x3x3xbf16> to vector<3x3xbf16>
    %c0_2 = arith.constant 0 : index
    %c0_3 = arith.constant 0 : index
    %c0_4 = arith.constant 0 : index
    %2 = vector.load %arg3[%c0_2, %c0_3, %c0_4] : memref<1x3x512xbf16, #tpu.memory_space<vmem>>, vector<1x3x512xbf16>
    %3 = vector.shape_cast %2 : vector<1x3x512xbf16> to vector<3x512xbf16>
    %cst = arith.constant dense<0.000000e+00> : vector<3x512xf32>
    %4 = tpu.matmul %1, %3, %cst {dimension_numbers = #tpu.dot_dimension_numbers<[1], [0], [0], [1], [0, 0, 1, 1], [], []>} : vector<3x3xbf16>, vector<3x512xbf16>, vector<3x512xf32> -> vector<3x512xf32>
    %c0_5 = arith.constant 0 : index
    %c0_6 = arith.constant 0 : index
    %5 = vector.load %arg4[%c0_5, %c0_6] : memref<3x1xf32, #tpu.memory_space<vmem>>, vector<3x1xf32>
    %6 = vector.broadcast %5 : vector<3x1xf32> to vector<3x512xf32>
    %7 = arith.addf %4, %6 : vector<3x512xf32>
    %cst_7 = arith.constant dense<0.000000e+00> : vector<3xf32>
    %8 = vector.multi_reduction <add>, %7, %cst_7 [1] : vector<3x512xf32> to vector<3xf32>
    %9 = vector.shape_cast %8 : vector<3xf32> to vector<3x1xf32>
    %10 = arith.mulf %7, %7 : vector<3x512xf32>
    %cst_8 = arith.constant dense<0.000000e+00> : vector<3xf32>
    %11 = vector.multi_reduction <add>, %10, %cst_8 [1] : vector<3x512xf32> to vector<3xf32>
    %12 = vector.shape_cast %11 : vector<3xf32> to vector<3x1xf32>
    %13 = tpu.concatenate %9, %12 in 1 : vector<3x1xf32>, vector<3x1xf32> -> vector<3x2xf32>
    %c0_9 = arith.constant 0 : index
    %c0_10 = arith.constant 0 : index
    %c0_11 = arith.constant 0 : index
    %14 = vector.load %arg6[%c0_9, %c0_10, %c0_11] : memref<1x3x2xf32, #tpu.memory_space<vmem>>, vector<1x3x2xf32>
    %15 = vector.shape_cast %14 : vector<1x3x2xf32> to vector<3x2xf32>
    %16 = vector.shape_cast %13 : vector<3x2xf32> to vector<1x3x2xf32>
    tpu.vector_store %arg6[%c0_9, %c0_10, %c0_11], %16 {strides = array<i32>} : memref<1x3x2xf32, #tpu.memory_space<vmem>>, vector<1x3x2xf32>,
    %c0_12 = arith.constant 0 : index
    %c0_13 = arith.constant 0 : index
    %c0_14 = arith.constant 0 : index
    %17 = vector.load %arg5[%c0_12, %c0_13, %c0_14] : memref<1x3x512xf32, #tpu.memory_space<vmem>>, vector<1x3x512xf32>
    %18 = vector.shape_cast %17 : vector<1x3x512xf32> to vector<3x512xf32>
    %19 = vector.shape_cast %7 : vector<3x512xf32> to vector<1x3x512xf32>
    tpu.vector_store %arg5[%c0_12, %c0_13, %c0_14], %19 {strides = array<i32>} : memref<1x3x512xf32, #tpu.memory_space<vmem>>, vector<1x3x512xf32>,
    return
  }
  func.func @transform_0(%arg0: i32, %arg1: i32) -> (i32, i32, i32) {
    %c0_i32 = arith.constant 0 : i32
    %c0_i32_0 = arith.constant 0 : i32
    %c0_i32_1 = arith.constant 0 : i32
    return %arg0, %c0_i32, %c0_i32_0 : i32, i32, i32
  }
  func.func @transform_1(%arg0: i32, %arg1: i32) -> (i32, i32, i32) {
    %c0_i32 = arith.constant 0 : i32
    %c0_i32_0 = arith.constant 0 : i32
    return %arg0, %c0_i32, %arg1 : i32, i32, i32
  }
  func.func @transform_2(%arg0: i32, %arg1: i32) -> (i32, i32) {
    %c0_i32 = arith.constant 0 : i32
    %c0_i32_0 = arith.constant 0 : i32
    %c0_i32_1 = arith.constant 0 : i32
    return %c0_i32, %c0_i32_0 : i32, i32
  }
  func.func @transform_3(%arg0: i32, %arg1: i32) -> (i32, i32, i32) {
    %c0_i32 = arith.constant 0 : i32
    %c0_i32_0 = arith.constant 0 : i32
    return %arg0, %c0_i32, %arg1 : i32, i32, i32
  }
  func.func @transform_4(%arg0: i32, %arg1: i32) -> (i32, i32, i32) {
    %c4_i32 = arith.constant 4 : i32
    %0 = arith.muli %arg0, %c4_i32 : i32
    %1 = arith.addi %0, %arg1 : i32
    %c0_i32 = arith.constant 0 : i32
    %c0_i32_0 = arith.constant 0 : i32
    %c0_i32_1 = arith.constant 0 : i32
    return %1, %c0_i32, %c0_i32_0 : i32, i32, i32
  }
}

</mosaic_0001>

<llo_original>
// kernel: aae_decoder_forward.7
$region0: #{aae_decoder_forward.7}
  #allocation0 [shape = 'u32[]', space=smem, size = 0x4, offset = 0x4, fixed_abs, tag = 'smem constant byte address 0x4 - core index']
  #allocation1 [shape = 'u32[144,128]{1,0:T(1,128)}', space=vmem, size = 0x12000, scoped, tag = 'internal scratch']
  %s0 = inlined_call_operand.vmem [shape: bf16[1,8,16], index: 0, kind: input, shape index: {}]
  %s1 = inlined_call_operand.vmem [shape: bf16[1,16,128], index: 1, kind: input, shape index: {}]
  %s2 = inlined_call_operand.vmem [shape: f32[8,1], index: 2, kind: input, shape index: {}]
  %s3 = inlined_call_operand.vmem [shape: bf16[1,8,128], index: 3, kind: output, shape index: {0}]
  %s4 = inlined_call_operand.vmem [shape: f32[1,8,2], index: 4, kind: output, shape index: {1}]
  %5 = xla_tuple %s3, %s4
  %s6 = sld [smem:[#allocation0]]
  $region30: #{aae_decoder_forward.7} parent=0
    _
  %s8 = ssub.s32 1, %s6
  %s9 = scalar_select 0, %s8, %s6
  // Predicated region
  $region2: #{aae_decoder_forward.7} parent=0 // pred_check
    _
  $region3: #{aae_decoder_forward.7} parent=0 // pred_check_branch
    %11 = sbr.rel (0) target = $region5
  $region4: #{aae_decoder_forward.7} parent=0 // pred_region
    _
  $region5: #{aae_decoder_forward.7} parent=0 // pred_fallthru
    _
  // Predicated region
  $region6: #{aae_decoder_forward.7} parent=0 // pred_check
    _
  $region7: #{aae_decoder_forward.7} parent=0 // pred_check_branch
    %13 = sbr.rel (0) target = $region9
  $region8: #{aae_decoder_forward.7} parent=0 // pred_region
    _
  $region9: #{aae_decoder_forward.7} parent=0 // pred_fallthru
    _
  // Predicated region
  $region10: #{aae_decoder_forward.7} parent=0 // pred_check
    _
  $region11: #{aae_decoder_forward.7} parent=0 // pred_check_branch
    %15 = sbr.rel (0) target = $region13
  $region12: #{aae_decoder_forward.7} parent=0 // pred_region
    _
  $region13: #{aae_decoder_forward.7} parent=0 // pred_fallthru
    _
  %s16 = sadd.s32 0, 0
  %p17 = scmp.lt.s32.totalorder %s16, 0
  %s18 = scalar_select %p17, %s16, 0
  %s19 = smul.addr %s18, 8
  %s20 = scalar_lea.vmem %s4, %s19
  %s21 = sadd.s32 0, 0
  %p22 = scmp.lt.s32.totalorder %s21, 0
  %s23 = scalar_select %p22, %s21, 0
  %s24 = smul.addr %s23, 8
  %s25 = scalar_lea.vmem %s4, %s24
  %s26 = sadd.s32 0, 0
  %v28 = vld [vmem:[%s0] sm:$0xf]
  %v29 = vld [vmem:[%s1] sm:$0xf]
  %v30 = vld [vmem:[%s1 + $0x4] sm:$0xf]
  %v31 = vld [vmem:[%s2] sm:$0xff]
  %33 = vset.pattern.permute.xlu0 0
  %34 = vperm.xlu0 %33, %v31
  %v35 = vpop.permute.xlu0 %34
  %v39 = vunpack.c.l.b16 %v29
  %v40 = vunpack.c.l.b16 %v30
  %v41 = vpack.c.b16 %v40, %v39
  %vm43 = vcmask 130048
  %v45 = vsel %vm43, %v28, 0
  %47 = vmatprep.subr.bf16.mxu0 0
  %48 = vmatpush1.bf16.msra.mxu0 0
  %49 = vmatprep.subr.bf16.mxu0 0
  %50 = vmatpush1.bf16.msra.mxu0 0
  %51 = vmatprep.subr.bf16.mxu0 0
  %52 = vmatpush1.bf16.msra.mxu0 0
  %53 = vmatprep.subr.bf16.mxu0 0
  %54 = vmatpush1.bf16.msra.mxu0 0
  %55 = vmatprep.subr.bf16.mxu0 0
  %56 = vmatpush1.bf16.msra.mxu0 0
  %57 = vmatprep.subr.bf16.mxu0 0
  %58 = vmatpush1.bf16.msra.mxu0 0
  %59 = vmatprep.subr.bf16.mxu0 0
  %60 = vmatpush1.bf16.msra.mxu0 0
  %61 = vmatprep.subr.bf16.mxu0 0
  %62 = vmatpush1.bf16.msra.mxu0 %v41
  %63 = vmatprep.subr.bf16.mxu0 0
  %64 = vmatpush2.bf16.msra.mxu0 0
  %65 = vmatprep.subr.bf16.mxu0 0
  %66 = vmatpush2.bf16.msra.mxu0 0
  %67 = vmatprep.subr.bf16.mxu0 0
  %68 = vmatpush2.bf16.msra.mxu0 0
  %69 = vmatprep.subr.bf16.mxu0 0
  %70 = vmatpush2.bf16.msra.mxu0 0
  %71 = vmatprep.subr.bf16.mxu0 0
  %72 = vmatpush2.bf16.msra.mxu0 0
  %73 = vmatprep.subr.bf16.mxu0 0
  %74 = vmatpush2.bf16.msra.mxu0 0
  %75 = vmatprep.subr.bf16.mxu0 0
  %76 = vmatpush2.bf16.msra.mxu0 0
  %77 = vmatprep.subr.bf16.mxu0 0
  %78 = vmatpush2.bf16.msra.mxu0 0
  %79 = vmatprep.mubr.bf16.mxu0 0
  %80 = vmatmul.mubr.bf16.gmra.mxu0 %v45
  %v81 = vpop.f32.mrf.mxu0
  %v82 = vadd.f32 %v35, %v81
  %v83 = vpop.f32.mrf.mxu0
  %v84 = vpop.f32.mrf.mxu0
  %v85 = vpop.f32.mrf.mxu0
  %86 = vdwg.mxu0
  %v87 = vmax.f32 %v82, 0.0
  %88 = vadd.xlane.f32.xlu0 %v87
  %v89 = vpop.xlane.xlu0 %88
  %v90 = vmul.f32 %v87, %v87
  %91 = vadd.xlane.f32.xlu0 %v90
  %v92 = vpop.xlane.xlu0 %91
  %vm93 = vcmask 7168
  %v94 = vsel %vm93, %v89, %v92
  %vm95 = vcmask 15360
  %96 = vst.msk [vmem:[%s25] sm:$0xff] %vm95, %v94
  %v97 = vpack.c.bf16 %v87, %v87
  %98 = vst [vmem:[%s3] sm:$0xf] %v97
  %s99 = sadd.s32 0, 0
  %p100 = scmp.lt.s32.totalorder %s99, 0
  %s101 = scalar_select %p100, %s99, 0
  %s102 = smul.addr %s101, 8
  %s103 = scalar_lea.vmem %s4, %s102
  // Predicated region
  $region14: #{aae_decoder_forward.7} parent=0 // pred_check
    _
  $region15: #{aae_decoder_forward.7} parent=0 // pred_check_branch
    %105 = sbr.rel (0) target = $region17
  $region16: #{aae_decoder_forward.7} parent=0 // pred_region
    _
  $region17: #{aae_decoder_forward.7} parent=0 // pred_fallthru
    _
  // Predicated region
  $region18: #{aae_decoder_forward.7} parent=0 // pred_check
    _
  $region19: #{aae_decoder_forward.7} parent=0 // pred_check_branch
    %107 = sbr.rel (0) target = $region21
  $region20: #{aae_decoder_forward.7} parent=0 // pred_region
    %s108 = sadd.s32 0, 0
  $region21: #{aae_decoder_forward.7} parent=0 // pred_fallthru
    _
  // Predicated region
  $region22: #{aae_decoder_forward.7} parent=0 // pred_check
    _
  $region23: #{aae_decoder_forward.7} parent=0 // pred_check_branch
    %110 = sbr.rel (0) target = $region25
  $region24: #{aae_decoder_forward.7} parent=0 // pred_region
    _
  $region25: #{aae_decoder_forward.7} parent=0 // pred_fallthru
    _
  // Predicated region
  $region26: #{aae_decoder_forward.7} parent=0 // pred_check
    _
  $region27: #{aae_decoder_forward.7} parent=0 // pred_check_branch
    %112 = sbr.rel (0) target = $region29
  $region28: #{aae_decoder_forward.7} parent=0 // pred_region
    %s113 = sadd.s32 0, 0
    %p114 = scmp.lt.s32.totalorder %s113, 0
    %s115 = scalar_select %p114, %s113, 0
    %s116 = smul.addr %s115, 8
    %s117 = scalar_lea.vmem %s4, %s116
  $region29: #{aae_decoder_forward.7} parent=0 // pred_fallthru
    _

// kernel: aae_decoder_forward.6
$region0: #{aae_decoder_forward.6}
  #allocation0 [shape = 'u32[]', space=smem, size = 0x4, offset = 0x4, fixed_abs, tag = 'smem constant byte address 0x4 - core index']
  #allocation1 [shape = 'u32[144,128]{1,0:T(1,128)}', space=vmem, size = 0x12000, scoped, tag = 'internal scratch']
  %s0 = inlined_call_operand.vmem [shape: bf16[4,16,128], index: 0, kind: input, shape index: {}]
  %s1 = inlined_call_operand.vmem [shape: bf16[4,128,32], index: 1, kind: input, shape index: {}]
  %s2 = inlined_call_operand.vmem [shape: f32[16,1], index: 2, kind: input, shape index: {}]
  %s3 = inlined_call_operand.vmem [shape: bf16[4,16,32], index: 3, kind: output, shape index: {0}]
  %s4 = inlined_call_operand.vmem [shape: f32[4,16,2], index: 4, kind: output, shape index: {1}]
  %5 = xla_tuple %s3, %s4
  %s6 = sld [smem:[#allocation0]]
  $region53: #{aae_decoder_forward.6} parent=0
    _
  %s8 = ssub.s32 1, %s6
  %s9 = scalar_select 0, %s8, %s6
  loop: start=0, step=1, limit=6
  $region2: #{aae_decoder_forward.6} parent=0 // loop_pre_header
    _
  $region3: #{aae_decoder_forward.6} parent=0 // loop_header
    %s11 = sphi 0, %s15
    %p12 = scmp.ge.s32.totalorder %s11, 6
    %s18 = sphi 0, %s30
    %s19 = sphi 0, %s26
    %s20 = sphi 0, %s18
    %s21 = sphi 0, %s19
    %s22 = sphi 0, %s20
    %s23 = sphi 0, %s21
    %s33 = sphi 0, %s35
    %s36 = sphi 0, %s33
    %s37 = sphi 0, %s36
    %s53 = sphi 0, %s37
    %s61 = sphi 0, %s63
    %s64 = sphi 0, %s61
    %s65 = sphi 0, %s64
    %s81 = sphi 0, %s65
    %s85 = sphi 0, %s85
    %s87 = sphi 0, %s85
    %s88 = sphi 0, %s87
    %s102 = sphi 0, %s88
    %s110 = sphi 0, %s112
    %s113 = sphi 0, %s110
    %s114 = sphi 0, %s113
    %s130 = sphi 0, %s114
    %s138 = sphi 0, %s140
    %s141 = sphi 0, %s138
    %s142 = sphi 0, %s141
    %s158 = sphi 0, %s142
  $region4: #{aae_decoder_forward.6} parent=0 // loop_header_branch
    %14 = sbr.rel (%p12) target = $region8
  $region5: #{aae_decoder_forward.6} parent=0 // loop_body
    %s16 = ssub.s32 %s11, 1
    %s17 = ssub.s32 %s11, 2
    %s24 = sadd.s32 1, %s19
    %p25 = scmp.ge.s32.totalorder %s24, 1
    %s26 = scalar_select %p25, 0, %s24
    %s27 = sadd.s32 1, %s18
    %s28 = scalar_select %p25, %s27, %s18
    %p29 = scmp.ge.s32.totalorder %s28, 4
    %s30 = scalar_select %p29, 0, %s28
    %s31 = ssub.s32 %s18, %s30
    %p32 = scmp.eq.s32.totalorder %s31, 0
    %s34 = sadd.s32 %s33, 1
    %s35 = scalar_select %p32, %s33, %s34
    %p38 = pneg %p32
    %p39 = scmp.eq.s32.totalorder %s11, 3
    %p40 = por %p38, %p39
    %p41 = scmp.ne.s32.totalorder %s33, %s36
    %p42 = scmp.eq.s32.totalorder %s11, 0
    %p43 = por %p41, %p42
    %p44 = scmp.ne.s32.totalorder %s33, %s36
    %p45 = scmp.eq.s32.totalorder %s16, 3
    %p46 = por %p44, %p45
    %p47 = scmp.ne.s32.totalorder %s36, %s37
    %p48 = scmp.eq.s32.totalorder %s16, 0
    %p49 = por %p47, %p48
    %p50 = scmp.ne.s32.totalorder %s36, %s37
    %p51 = scmp.eq.s32.totalorder %s17, 3
    %p52 = por %p50, %p51
    %p54 = scmp.ne.s32.totalorder %s37, %s53
    %p55 = scmp.eq.s32.totalorder %s17, 0
    %p56 = por %p54, %p55
    %s57 = ssub.s32 %s18, %s30
    %s58 = ssub.s32 %s19, %s26
    %s59 = sor.u32 %s57, %s58
    %p60 = scmp.eq.s32.totalorder %s59, 0
    %s62 = sadd.s32 %s61, 1
    %s63 = scalar_select %p60, %s61, %s62
    %p66 = pneg %p60
    %p67 = scmp.eq.s32.totalorder %s11, 3
    %p68 = por %p66, %p67
    %p69 = scmp.ne.s32.totalorder %s61, %s64
    %p70 = scmp.eq.s32.totalorder %s11, 0
    %p71 = por %p69, %p70
    %p72 = scmp.ne.s32.totalorder %s61, %s64
    %p73 = scmp.eq.s32.totalorder %s16, 3
    %p74 = por %p72, %p73
    %p75 = scmp.ne.s32.totalorder %s64, %s65
    %p76 = scmp.eq.s32.totalorder %s16, 0
    %p77 = por %p75, %p76
    %p78 = scmp.ne.s32.totalorder %s64, %s65
    %p79 = scmp.eq.s32.totalorder %s17, 3
    %p80 = por %p78, %p79
    %p82 = scmp.ne.s32.totalorder %s65, %s81
    %p83 = scmp.eq.s32.totalorder %s17, 0
    %p84 = por %p82, %p83
    %s86 = sadd.s32 %s85, 1
    %p89 = scmp.eq.s32.totalorder %s11, 3
    %p90 = scmp.ne.s32.totalorder %s85, %s87
    %p91 = scmp.eq.s32.totalorder %s11, 0
    %p92 = por %p90, %p91
    %p93 = scmp.ne.s32.totalorder %s85, %s87
    %p94 = scmp.eq.s32.totalorder %s16, 3
    %p95 = por %p93, %p94
    %p96 = scmp.ne.s32.totalorder %s87, %s88
    %p97 = scmp.eq.s32.totalorder %s16, 0
    %p98 = por %p96, %p97
    %p99 = scmp.ne.s32.totalorder %s87, %s88
    %p100 = scmp.eq.s32.totalorder %s17, 3
    %p101 = por %p99, %p100
    %p103 = scmp.ne.s32.totalorder %s88, %s102
    %p104 = scmp.eq.s32.totalorder %s17, 0
    %p105 = por %p103, %p104
    %s106 = ssub.s32 %s18, %s30
    %s107 = ssub.s32 %s19, %s26
    %s108 = sor.u32 %s106, %s107
    %p109 = scmp.eq.s32.totalorder %s108, 0
    %s111 = sadd.s32 %s110, 1
    %s112 = scalar_select %p109, %s110, %s111
    %p115 = pneg %p109
    %p116 = scmp.eq.s32.totalorder %s11, 3
    %p117 = por %p115, %p116
    %p118 = scmp.ne.s32.totalorder %s110, %s113
    %p119 = scmp.eq.s32.totalorder %s11, 0
    %p120 = por %p118, %p119
    %p121 = scmp.ne.s32.totalorder %s110, %s113
    %p122 = scmp.eq.s32.totalorder %s16, 3
    %p123 = por %p121, %p122
    %p124 = scmp.ne.s32.totalorder %s113, %s114
    %p125 = scmp.eq.s32.totalorder %s16, 0
    %p126 = por %p124, %p125
    %p127 = scmp.ne.s32.totalorder %s113, %s114
    %p128 = scmp.eq.s32.totalorder %s17, 3
    %p129 = por %p127, %p128
    %p131 = scmp.ne.s32.totalorder %s114, %s130
    %p132 = scmp.eq.s32.totalorder %s17, 0
    %p133 = por %p131, %p132
    %s134 = sadd.s32 %s18, %s19
    %s135 = sadd.s32 %s30, %s26
    %s136 = ssub.s32 %s134, %s135
    %p137 = scmp.eq.s32.totalorder %s136, 0
    %s139 = sadd.s32 %s138, 1
    %s140 = scalar_select %p137, %s138, %s139
    %p143 = pneg %p137
    %p144 = scmp.eq.s32.totalorder %s11, 3
    %p145 = por %p143, %p144
    %p146 = scmp.ne.s32.totalorder %s138, %s141
    %p147 = scmp.eq.s32.totalorder %s11, 0
    %p148 = por %p146, %p147
    %p149 = scmp.ne.s32.totalorder %s138, %s141
    %p150 = scmp.eq.s32.totalorder %s16, 3
    %p151 = por %p149, %p150
    %p152 = scmp.ne.s32.totalorder %s141, %s142
    %p153 = scmp.eq.s32.totalorder %s16, 0
    %p154 = por %p152, %p153
    %p155 = scmp.ne.s32.totalorder %s141, %s142
    %p156 = scmp.eq.s32.totalorder %s17, 3
    %p157 = por %p155, %p156
    %p159 = scmp.ne.s32.totalorder %s142, %s158
    %p160 = scmp.eq.s32.totalorder %s17, 0
    %p161 = por %p159, %p160
    %p162 = scmp.le.s32.totalorder 1, %s11
    %p163 = scmp.lt.s32.totalorder %s11, 5
    %p164 = pnand %p162, %p163
    %p165 = pneg %p164
    // Predicated region
    $region9: #{aae_decoder_forward.6} parent=5 // pred_check
      _
    $region10: #{aae_decoder_forward.6} parent=5 // pred_check_branch
      %167 = sbr.rel (%p164) target = $region12
    $region11: #{aae_decoder_forward.6} parent=5 // pred_region
      %s168 = ssub.s32 %s11, 1
      // Predicated region
      $region13: #{aae_decoder_forward.6} parent=11 // pred_check
        %p169 = pneg %p98
      $region14: #{aae_decoder_forward.6} parent=11 // pred_check_branch
        %171 = sbr.rel (%p169) target = $region16
      $region15: #{aae_decoder_forward.6} parent=11 // pred_region
        _
      $region16: #{aae_decoder_forward.6} parent=11 // pred_fallthru
        _
    $region12: #{aae_decoder_forward.6} parent=5 // pred_fallthru
      _
    %p172 = scmp.lt.s32.totalorder %s11, 4
    // Predicated region
    $region17: #{aae_decoder_forward.6} parent=5 // pred_check
      %p173 = pneg %p172
    $region18: #{aae_decoder_forward.6} parent=5 // pred_check_branch
      %175 = sbr.rel (%p173) target = $region20
    $region19: #{aae_decoder_forward.6} parent=5 // pred_region
      // Predicated region
      $region21: #{aae_decoder_forward.6} parent=19 // pred_check
        %p176 = pneg %p43
      $region22: #{aae_decoder_forward.6} parent=19 // pred_check_branch
        %178 = sbr.rel (%p176) target = $region24
      $region23: #{aae_decoder_forward.6} parent=19 // pred_region
        %p179 = scmp.lt.s32.totalorder %s18, 3
        %s180 = scalar_select %p179, %s18, 3
        %s181 = smul.addr %s180, 2
        %s182 = smul.addr %s181, 4
        %s183 = scalar_lea.vmem %s0, %s182
      $region24: #{aae_decoder_forward.6} parent=19 // pred_fallthru
        _
      // Predicated region
      $region25: #{aae_decoder_forward.6} parent=19 // pred_check
        %p184 = pneg %p71
      $region26: #{aae_decoder_forward.6} parent=19 // pred_check_branch
        %186 = sbr.rel (%p184) target = $region28
      $region27: #{aae_decoder_forward.6} parent=19 // pred_region
        %p187 = scmp.lt.s32.totalorder %s18, 3
        %s188 = scalar_select %p187, %s18, 3
        %p189 = scmp.lt.s32.totalorder %s19, 0
        %s190 = scalar_select %p189, %s19, 0
        %s191 = smul.addr %s188, 16
        %s192 = sadd.s32 %s190, %s191
        %s193 = smul.addr %s192, 4
        %s194 = scalar_lea.vmem %s1, %s193
      $region28: #{aae_decoder_forward.6} parent=19 // pred_fallthru
        _
    $region20: #{aae_decoder_forward.6} parent=5 // pred_fallthru
      _
    %p195 = scmp.le.s32.totalorder 1, %s11
    %p196 = scmp.lt.s32.totalorder %s11, 5
    %p197 = pnand %p195, %p196
    %p198 = pneg %p197
    // Predicated region
    $region29: #{aae_decoder_forward.6} parent=5 // pred_check
      _
    $region30: #{aae_decoder_forward.6} parent=5 // pred_check_branch
      %200 = sbr.rel (%p197) target = $region32
    $region31: #{aae_decoder_forward.6} parent=5 // pred_region
      %s201 = ssub.s32 %s11, 1
      %p202 = scmp.lt.s32.totalorder %s20, 3
      %s203 = scalar_select %p202, %s20, 3
      %s204 = smul.addr %s203, 2
      %s205 = smul.addr %s204, 4
      %s206 = scalar_lea.vmem %s0, %s205
      %p207 = pneg %p49
      %p208 = pneg %p46
      %p209 = scmp.lt.s32.totalorder %s20, 3
      %s210 = scalar_select %p209, %s20, 3
      %p211 = scmp.lt.s32.totalorder %s21, 0
      %s212 = scalar_select %p211, %s21, 0
      %s213 = smul.addr %s210, 16
      %s214 = sadd.s32 %s212, %s213
      %s215 = smul.addr %s214, 4
      %s216 = scalar_lea.vmem %s1, %s215
      %p217 = pneg %p77
      %p218 = pneg %p74
      %p219 = pneg %p98
      %p220 = pneg %p95
      %p221 = pneg %p126
      %p222 = pneg %p123
      %p223 = scmp.lt.s32.totalorder %s20, 3
      %s224 = scalar_select %p223, %s20, 3
      %p225 = scmp.lt.s32.totalorder %s21, 0
      %s226 = scalar_select %p225, %s21, 0
      %s227 = smul.addr %s224, 2
      %s228 = sadd.s32 %s226, %s227
      %s229 = smul.addr %s228, 4
      %s230 = scalar_lea.vmem %s3, %s229
      %p231 = pneg %p154
      %p232 = pneg %p151
      %s233 = sadd.s32 %s20, %s21
      %p234 = scmp.lt.s32.totalorder %s233, 3
      %s235 = scalar_select %p234, %s233, 3
      %s236 = smul.addr %s235, 2
      %s237 = smul.addr %s236, 8
      %s238 = scalar_lea.vmem %s4, %s237
      %p239 = scmp.lt.s32.totalorder %s20, 3
      %s240 = scalar_select %p239, %s20, 3
      %s241 = smul.addr %s240, 2
      %s242 = smul.addr %s241, 4
      %s243 = scalar_lea.vmem %s0, %s242
      %p244 = scmp.lt.s32.totalorder %s20, 3
      %s245 = scalar_select %p244, %s20, 3
      %p246 = scmp.lt.s32.totalorder %s21, 0
      %s247 = scalar_select %p246, %s21, 0
      %s248 = smul.addr %s245, 16
      %s249 = sadd.s32 %s247, %s248
      %s250 = smul.addr %s249, 4
      %s251 = scalar_lea.vmem %s1, %s250
      %p252 = scmp.lt.s32.totalorder %s20, 3
      %s253 = scalar_select %p252, %s20, 3
      %p254 = scmp.lt.s32.totalorder %s21, 0
      %s255 = scalar_select %p254, %s21, 0
      %s256 = smul.addr %s253, 2
      %s257 = sadd.s32 %s255, %s256
      %s258 = smul.addr %s257, 4
      %s259 = scalar_lea.vmem %s3, %s258
      %s260 = sadd.s32 %s20, %s21
      %p261 = scmp.lt.s32.totalorder %s260, 3
      %s262 = scalar_select %p261, %s260, 3
      %s263 = smul.addr %s262, 2
      %s264 = smul.addr %s263, 8
      %s265 = scalar_lea.vmem %s4, %s264
      %s266 = sadd.s32 %s20, %s21
      %v268 = vld [vmem:[%s243] sm:$0xf]
      %v269 = vld [vmem:[%s243 + $0x4] sm:$0xf]
      %v270 = vld [vmem:[%s251] sm:$0xf]
      %v271 = vld [vmem:[%s251 + $0x4] sm:$0xf]
      %v272 = vld [vmem:[%s251 + $0x8] sm:$0xf]
      %v273 = vld [vmem:[%s251 + $0xc] sm:$0xf]
      %v274 = vld [vmem:[%s251 + $0x10] sm:$0xf]
      %v275 = vld [vmem:[%s251 + $0x14] sm:$0xf]
      %v276 = vld [vmem:[%s251 + $0x18] sm:$0xf]
      %v277 = vld [vmem:[%s251 + $0x1c] sm:$0xf]
      %v278 = vld [vmem:[%s251 + $0x20] sm:$0xf]
      %v279 = vld [vmem:[%s251 + $0x24] sm:$0xf]
      %v280 = vld [vmem:[%s251 + $0x28] sm:$0xf]
      %v281 = vld [vmem:[%s251 + $0x2c] sm:$0xf]
      %v282 = vld [vmem:[%s251 + $0x30] sm:$0xf]
      %v283 = vld [vmem:[%s251 + $0x34] sm:$0xf]
      %v284 = vld [vmem:[%s251 + $0x38] sm:$0xf]
      %v285 = vld [vmem:[%s251 + $0x3c] sm:$0xf]
      %v286 = vld [vmem:[%s2] sm:$0xff]
      %v287 = vld [vmem:[%s2 + $0x8] sm:$0xff]
      %289 = vset.pattern.permute.xlu0 0
      %290 = vperm.xlu0 %289, %v286
      %v291 = vpop.permute.xlu0 %290
      %294 = vset.pattern.permute.xlu0 0
      %295 = vperm.xlu0 %294, %v287
      %v296 = vpop.permute.xlu0 %295
      %v300 = vunpack.c.l.b16 %v268
      %v301 = vunpack.c.l.b16 %v269
      %v302 = vpack.c.b16 %v301, %v300
      %v320 = vunpack.c.l.b16 %v270
      %v321 = vunpack.c.l.b16 %v271
      %v322 = vunpack.c.l.b16 %v272
      %v323 = vunpack.c.l.b16 %v273
      %v324 = vunpack.c.l.b16 %v274
      %v325 = vunpack.c.l.b16 %v275
      %v326 = vunpack.c.l.b16 %v276
      %v327 = vunpack.c.l.b16 %v277
      %v328 = vunpack.c.l.b16 %v278
      %v329 = vunpack.c.l.b16 %v279
      %v330 = vunpack.c.l.b16 %v280
      %v331 = vunpack.c.l.b16 %v281
      %v332 = vunpack.c.l.b16 %v282
      %v333 = vunpack.c.l.b16 %v283
      %v334 = vunpack.c.l.b16 %v284
      %v335 = vunpack.c.l.b16 %v285
      %v336 = vpack.c.b16 %v321, %v320
      %v337 = vpack.c.b16 %v323, %v322
      %v338 = vpack.c.b16 %v325, %v324
      %v339 = vpack.c.b16 %v327, %v326
      %v340 = vpack.c.b16 %v329, %v328
      %v341 = vpack.c.b16 %v331, %v330
      %v342 = vpack.c.b16 %v333, %v332
      %v343 = vpack.c.b16 %v335, %v334
      %352 = vmatprep.subr.bf16.mxu0 0
      %353 = vmatpush1.bf16.msra.mxu0 %v343
      %354 = vmatprep.subr.bf16.mxu0 0
      %355 = vmatpush1.bf16.msra.mxu0 %v342
      %356 = vmatprep.subr.bf16.mxu0 0
      %357 = vmatpush1.bf16.msra.mxu0 %v341
      %358 = vmatprep.subr.bf16.mxu0 0
      %359 = vmatpush1.bf16.msra.mxu0 %v340
      %360 = vmatprep.subr.bf16.mxu0 0
      %361 = vmatpush1.bf16.msra.mxu0 %v339
      %362 = vmatprep.subr.bf16.mxu0 0
      %363 = vmatpush1.bf16.msra.mxu0 %v338
      %364 = vmatprep.subr.bf16.mxu0 0
      %365 = vmatpush1.bf16.msra.mxu0 %v337
      %366 = vmatprep.subr.bf16.mxu0 0
      %367 = vmatpush1.bf16.msra.mxu0 %v336
      %368 = vmatprep.subr.bf16.mxu0 0
      %369 = vmatpush2.bf16.msra.mxu0 0
      %370 = vmatprep.subr.bf16.mxu0 0
      %371 = vmatpush2.bf16.msra.mxu0 0
      %372 = vmatprep.subr.bf16.mxu0 0
      %373 = vmatpush2.bf16.msra.mxu0 0
      %374 = vmatprep.subr.bf16.mxu0 0
      %375 = vmatpush2.bf16.msra.mxu0 0
      %376 = vmatprep.subr.bf16.mxu0 0
      %377 = vmatpush2.bf16.msra.mxu0 0
      %378 = vmatprep.subr.bf16.mxu0 0
      %379 = vmatpush2.bf16.msra.mxu0 0
      %380 = vmatprep.subr.bf16.mxu0 0
      %381 = vmatpush2.bf16.msra.mxu0 0
      %382 = vmatprep.subr.bf16.mxu0 0
      %383 = vmatpush2.bf16.msra.mxu0 0
      %384 = vmatprep.mubr.bf16.mxu0 0
      %385 = vmatmul.mubr.bf16.gmra.mxu0 %v302
      %v386 = vpop.f32.mrf.mxu0
      %v387 = vadd.f32 %v291, %v386
      %v388 = vpop.f32.mrf.mxu0
      %v389 = vpop.f32.mrf.mxu0
      %v390 = vadd.f32 %v296, %v389
      %v391 = vpop.f32.mrf.mxu0
      %392 = vdwg.mxu0
      %v393 = vmax.f32 %v387, 0.0
      %v394 = vmax.f32 %v390, 0.0
      %vm395 = vcmask 261120
      %v396 = vsel %vm395, %v393, 0.0
      %397 = vadd.xlane.f32.xlu0 %v396
      %v398 = vpop.xlane.xlu0 %397
      %v399 = vsel %vm395, %v394, 0.0
      %400 = vadd.xlane.f32.xlu0 %v399
      %v401 = vpop.xlane.xlu0 %400
      %v402 = vmul.f32 %v393, %v393
      %v403 = vmul.f32 %v394, %v394
      %v404 = vsel %vm395, %v402, 0.0
      %405 = vadd.xlane.f32.xlu0 %v404
      %v406 = vpop.xlane.xlu0 %405
      %v407 = vsel %vm395, %v403, 0.0
      %408 = vadd.xlane.f32.xlu0 %v407
      %v409 = vpop.xlane.xlu0 %408
      %vm410 = vcmask 7168
      %v411 = vsel %vm410, %v398, %v406
      %v412 = vsel %vm410, %v401, %v409
      %vm413 = vcmask 15360
      %414 = vst.msk [vmem:[%s265] sm:$0xff] %vm413, %v411
      %415 = vst.msk [vmem:[%s265 + $0x8] sm:$0xff] %vm413, %v412
      %v416 = vpack.c.bf16 %v394, %v393
      %v418 = vunpack.c.l.b16 %v416
      %v419 = vunpack.c.h.b16 %v416
      %v420 = vpack.c.b16 %v418, %v418
      %v421 = vpack.c.b16 %v419, %v419
      %vm424 = vcmask 257024
      %425 = vst.msk [vmem:[%s259] sm:$0xf] %vm424, %v420
      %426 = vst.msk [vmem:[%s259 + $0x4] sm:$0xf] %vm424, %v421
      %p427 = scmp.lt.s32.totalorder %s20, 3
      %s428 = scalar_select %p427, %s20, 3
      %p429 = scmp.lt.s32.totalorder %s21, 0
      %s430 = scalar_select %p429, %s21, 0
      %s431 = smul.addr %s428, 2
      %s432 = sadd.s32 %s430, %s431
      %s433 = smul.addr %s432, 4
      %s434 = scalar_lea.vmem %s3, %s433
      %s435 = sadd.s32 %s20, %s21
      %p436 = scmp.lt.s32.totalorder %s435, 3
      %s437 = scalar_select %p436, %s435, 3
      %s438 = smul.addr %s437, 2
      %s439 = smul.addr %s438, 8
      %s440 = scalar_lea.vmem %s4, %s439
      // Predicated region
      $region33: #{aae_decoder_forward.6} parent=31 // pred_check
        %p441 = pneg %p123
      $region34: #{aae_decoder_forward.6} parent=31 // pred_check_branch
        %443 = sbr.rel (%p441) target = $region36
      $region35: #{aae_decoder_forward.6} parent=31 // pred_region
        _
      $region36: #{aae_decoder_forward.6} parent=31 // pred_fallthru
        _
      // Predicated region
      $region37: #{aae_decoder_forward.6} parent=31 // pred_check
        %p444 = pneg %p151
      $region38: #{aae_decoder_forward.6} parent=31 // pred_check_branch
        %446 = sbr.rel (%p444) target = $region40
      $region39: #{aae_decoder_forward.6} parent=31 // pred_region
        %s447 = sadd.s32 %s20, %s21
      $region40: #{aae_decoder_forward.6} parent=31 // pred_fallthru
        _
    $region32: #{aae_decoder_forward.6} parent=5 // pred_fallthru
      _
    %p448 = scmp.le.s32.totalorder 2, %s11
    // Predicated region
    $region41: #{aae_decoder_forward.6} parent=5 // pred_check
      %p449 = pneg %p448
    $region42: #{aae_decoder_forward.6} parent=5 // pred_check_branch
      %451 = sbr.rel (%p449) target = $region44
    $region43: #{aae_decoder_forward.6} parent=5 // pred_region
      %s452 = ssub.s32 %s11, 2
      // Predicated region
      $region45: #{aae_decoder_forward.6} parent=43 // pred_check
        %p453 = pneg %p129
      $region46: #{aae_decoder_forward.6} parent=43 // pred_check_branch
        %455 = sbr.rel (%p453) target = $region48
      $region47: #{aae_decoder_forward.6} parent=43 // pred_region
        %p456 = scmp.lt.s32.totalorder %s22, 3
        %s457 = scalar_select %p456, %s22, 3
        %p458 = scmp.lt.s32.totalorder %s23, 0
        %s459 = scalar_select %p458, %s23, 0
        %s460 = smul.addr %s457, 2
        %s461 = sadd.s32 %s459, %s460
        %s462 = smul.addr %s461, 4
        %s463 = scalar_lea.vmem %s3, %s462
      $region48: #{aae_decoder_forward.6} parent=43 // pred_fallthru
        _
      // Predicated region
      $region49: #{aae_decoder_forward.6} parent=43 // pred_check
        %p464 = pneg %p157
      $region50: #{aae_decoder_forward.6} parent=43 // pred_check_branch
        %466 = sbr.rel (%p464) target = $region52
      $region51: #{aae_decoder_forward.6} parent=43 // pred_region
        %s467 = sadd.s32 %s22, %s23
        %p468 = scmp.lt.s32.totalorder %s467, 3
        %s469 = scalar_select %p468, %s467, 3
        %s470 = smul.addr %s469, 2
        %s471 = smul.addr %s470, 8
        %s472 = scalar_lea.vmem %s4, %s471
      $region52: #{aae_decoder_forward.6} parent=43 // pred_fallthru
        _
    $region44: #{aae_decoder_forward.6} parent=5 // pred_fallthru
      _
  $region6: #{aae_decoder_forward.6} parent=0 // loop_footer
    %s15 = sadd.s32 1, %s11
  $region7: #{aae_decoder_forward.6} parent=0 // loop_footer_branch
    %10 = sbr.rel target = $region3
  $region8: #{aae_decoder_forward.6} parent=0 // loop_exit
    _

// kernel: aae_decoder_forward.8
$region0: #{aae_decoder_forward.8}
  #allocation0 [shape = 'u32[]', space=smem, size = 0x4, offset = 0x4, fixed_abs, tag = 'smem constant byte address 0x4 - core index']
  #allocation1 [shape = 'u32[144,128]{1,0:T(1,128)}', space=vmem, size = 0x12000, scoped, tag = 'internal scratch']
  %s0 = inlined_call_operand.vmem [shape: bf16[4,8,32], index: 0, kind: input, shape index: {}]
  %s1 = inlined_call_operand.vmem [shape: bf16[4,32,128], index: 1, kind: input, shape index: {}]
  %s2 = inlined_call_operand.vmem [shape: f32[8,1], index: 2, kind: input, shape index: {}]
  %s3 = inlined_call_operand.vmem [shape: bf16[4,8,128], index: 3, kind: output, shape index: {0}]
  %s4 = inlined_call_operand.vmem [shape: f32[4,8,2], index: 4, kind: output, shape index: {1}]
  %5 = xla_tuple %s3, %s4
  %s6 = sld [smem:[#allocation0]]
  $region53: #{aae_decoder_forward.8} parent=0
    _
  %s8 = ssub.s32 1, %s6
  %s9 = scalar_select 0, %s8, %s6
  loop: start=0, step=1, limit=6
  $region2: #{aae_decoder_forward.8} parent=0 // loop_pre_header
    _
  $region3: #{aae_decoder_forward.8} parent=0 // loop_header
    %s11 = sphi 0, %s15
    %p12 = scmp.ge.s32.totalorder %s11, 6
    %s18 = sphi 0, %s30
    %s19 = sphi 0, %s26
    %s20 = sphi 0, %s18
    %s21 = sphi 0, %s19
    %s22 = sphi 0, %s20
    %s23 = sphi 0, %s21
    %s33 = sphi 0, %s35
    %s36 = sphi 0, %s33
    %s37 = sphi 0, %s36
    %s53 = sphi 0, %s37
    %s61 = sphi 0, %s63
    %s64 = sphi 0, %s61
    %s65 = sphi 0, %s64
    %s81 = sphi 0, %s65
    %s85 = sphi 0, %s85
    %s87 = sphi 0, %s85
    %s88 = sphi 0, %s87
    %s102 = sphi 0, %s88
    %s110 = sphi 0, %s112
    %s113 = sphi 0, %s110
    %s114 = sphi 0, %s113
    %s130 = sphi 0, %s114
    %s138 = sphi 0, %s140
    %s141 = sphi 0, %s138
    %s142 = sphi 0, %s141
    %s158 = sphi 0, %s142
  $region4: #{aae_decoder_forward.8} parent=0 // loop_header_branch
    %14 = sbr.rel (%p12) target = $region8
  $region5: #{aae_decoder_forward.8} parent=0 // loop_body
    %s16 = ssub.s32 %s11, 1
    %s17 = ssub.s32 %s11, 2
    %s24 = sadd.s32 1, %s19
    %p25 = scmp.ge.s32.totalorder %s24, 1
    %s26 = scalar_select %p25, 0, %s24
    %s27 = sadd.s32 1, %s18
    %s28 = scalar_select %p25, %s27, %s18
    %p29 = scmp.ge.s32.totalorder %s28, 4
    %s30 = scalar_select %p29, 0, %s28
    %s31 = ssub.s32 %s18, %s30
    %p32 = scmp.eq.s32.totalorder %s31, 0
    %s34 = sadd.s32 %s33, 1
    %s35 = scalar_select %p32, %s33, %s34
    %p38 = pneg %p32
    %p39 = scmp.eq.s32.totalorder %s11, 3
    %p40 = por %p38, %p39
    %p41 = scmp.ne.s32.totalorder %s33, %s36
    %p42 = scmp.eq.s32.totalorder %s11, 0
    %p43 = por %p41, %p42
    %p44 = scmp.ne.s32.totalorder %s33, %s36
    %p45 = scmp.eq.s32.totalorder %s16, 3
    %p46 = por %p44, %p45
    %p47 = scmp.ne.s32.totalorder %s36, %s37
    %p48 = scmp.eq.s32.totalorder %s16, 0
    %p49 = por %p47, %p48
    %p50 = scmp.ne.s32.totalorder %s36, %s37
    %p51 = scmp.eq.s32.totalorder %s17, 3
    %p52 = por %p50, %p51
    %p54 = scmp.ne.s32.totalorder %s37, %s53
    %p55 = scmp.eq.s32.totalorder %s17, 0
    %p56 = por %p54, %p55
    %s57 = ssub.s32 %s18, %s30
    %s58 = ssub.s32 %s19, %s26
    %s59 = sor.u32 %s57, %s58
    %p60 = scmp.eq.s32.totalorder %s59, 0
    %s62 = sadd.s32 %s61, 1
    %s63 = scalar_select %p60, %s61, %s62
    %p66 = pneg %p60
    %p67 = scmp.eq.s32.totalorder %s11, 3
    %p68 = por %p66, %p67
    %p69 = scmp.ne.s32.totalorder %s61, %s64
    %p70 = scmp.eq.s32.totalorder %s11, 0
    %p71 = por %p69, %p70
    %p72 = scmp.ne.s32.totalorder %s61, %s64
    %p73 = scmp.eq.s32.totalorder %s16, 3
    %p74 = por %p72, %p73
    %p75 = scmp.ne.s32.totalorder %s64, %s65
    %p76 = scmp.eq.s32.totalorder %s16, 0
    %p77 = por %p75, %p76
    %p78 = scmp.ne.s32.totalorder %s64, %s65
    %p79 = scmp.eq.s32.totalorder %s17, 3
    %p80 = por %p78, %p79
    %p82 = scmp.ne.s32.totalorder %s65, %s81
    %p83 = scmp.eq.s32.totalorder %s17, 0
    %p84 = por %p82, %p83
    %s86 = sadd.s32 %s85, 1
    %p89 = scmp.eq.s32.totalorder %s11, 3
    %p90 = scmp.ne.s32.totalorder %s85, %s87
    %p91 = scmp.eq.s32.totalorder %s11, 0
    %p92 = por %p90, %p91
    %p93 = scmp.ne.s32.totalorder %s85, %s87
    %p94 = scmp.eq.s32.totalorder %s16, 3
    %p95 = por %p93, %p94
    %p96 = scmp.ne.s32.totalorder %s87, %s88
    %p97 = scmp.eq.s32.totalorder %s16, 0
    %p98 = por %p96, %p97
    %p99 = scmp.ne.s32.totalorder %s87, %s88
    %p100 = scmp.eq.s32.totalorder %s17, 3
    %p101 = por %p99, %p100
    %p103 = scmp.ne.s32.totalorder %s88, %s102
    %p104 = scmp.eq.s32.totalorder %s17, 0
    %p105 = por %p103, %p104
    %s106 = ssub.s32 %s18, %s30
    %s107 = ssub.s32 %s19, %s26
    %s108 = sor.u32 %s106, %s107
    %p109 = scmp.eq.s32.totalorder %s108, 0
    %s111 = sadd.s32 %s110, 1
    %s112 = scalar_select %p109, %s110, %s111
    %p115 = pneg %p109
    %p116 = scmp.eq.s32.totalorder %s11, 3
    %p117 = por %p115, %p116
    %p118 = scmp.ne.s32.totalorder %s110, %s113
    %p119 = scmp.eq.s32.totalorder %s11, 0
    %p120 = por %p118, %p119
    %p121 = scmp.ne.s32.totalorder %s110, %s113
    %p122 = scmp.eq.s32.totalorder %s16, 3
    %p123 = por %p121, %p122
    %p124 = scmp.ne.s32.totalorder %s113, %s114
    %p125 = scmp.eq.s32.totalorder %s16, 0
    %p126 = por %p124, %p125
    %p127 = scmp.ne.s32.totalorder %s113, %s114
    %p128 = scmp.eq.s32.totalorder %s17, 3
    %p129 = por %p127, %p128
    %p131 = scmp.ne.s32.totalorder %s114, %s130
    %p132 = scmp.eq.s32.totalorder %s17, 0
    %p133 = por %p131, %p132
    %s134 = sadd.s32 %s18, %s19
    %s135 = sadd.s32 %s30, %s26
    %s136 = ssub.s32 %s134, %s135
    %p137 = scmp.eq.s32.totalorder %s136, 0
    %s139 = sadd.s32 %s138, 1
    %s140 = scalar_select %p137, %s138, %s139
    %p143 = pneg %p137
    %p144 = scmp.eq.s32.totalorder %s11, 3
    %p145 = por %p143, %p144
    %p146 = scmp.ne.s32.totalorder %s138, %s141
    %p147 = scmp.eq.s32.totalorder %s11, 0
    %p148 = por %p146, %p147
    %p149 = scmp.ne.s32.totalorder %s138, %s141
    %p150 = scmp.eq.s32.totalorder %s16, 3
    %p151 = por %p149, %p150
    %p152 = scmp.ne.s32.totalorder %s141, %s142
    %p153 = scmp.eq.s32.totalorder %s16, 0
    %p154 = por %p152, %p153
    %p155 = scmp.ne.s32.totalorder %s141, %s142
    %p156 = scmp.eq.s32.totalorder %s17, 3
    %p157 = por %p155, %p156
    %p159 = scmp.ne.s32.totalorder %s142, %s158
    %p160 = scmp.eq.s32.totalorder %s17, 0
    %p161 = por %p159, %p160
    %p162 = scmp.le.s32.totalorder 1, %s11
    %p163 = scmp.lt.s32.totalorder %s11, 5
    %p164 = pnand %p162, %p163
    %p165 = pneg %p164
    // Predicated region
    $region9: #{aae_decoder_forward.8} parent=5 // pred_check
      _
    $region10: #{aae_decoder_forward.8} parent=5 // pred_check_branch
      %167 = sbr.rel (%p164) target = $region12
    $region11: #{aae_decoder_forward.8} parent=5 // pred_region
      %s168 = ssub.s32 %s11, 1
      // Predicated region
      $region13: #{aae_decoder_forward.8} parent=11 // pred_check
        %p169 = pneg %p98
      $region14: #{aae_decoder_forward.8} parent=11 // pred_check_branch
        %171 = sbr.rel (%p169) target = $region16
      $region15: #{aae_decoder_forward.8} parent=11 // pred_region
        _
      $region16: #{aae_decoder_forward.8} parent=11 // pred_fallthru
        _
    $region12: #{aae_decoder_forward.8} parent=5 // pred_fallthru
      _
    %p172 = scmp.lt.s32.totalorder %s11, 4
    // Predicated region
    $region17: #{aae_decoder_forward.8} parent=5 // pred_check
      %p173 = pneg %p172
    $region18: #{aae_decoder_forward.8} parent=5 // pred_check_branch
      %175 = sbr.rel (%p173) target = $region20
    $region19: #{aae_decoder_forward.8} parent=5 // pred_region
      // Predicated region
      $region21: #{aae_decoder_forward.8} parent=19 // pred_check
        %p176 = pneg %p43
      $region22: #{aae_decoder_forward.8} parent=19 // pred_check_branch
        %178 = sbr.rel (%p176) target = $region24
      $region23: #{aae_decoder_forward.8} parent=19 // pred_region
        %p179 = scmp.lt.s32.totalorder %s18, 3
        %s180 = scalar_select %p179, %s18, 3
        %s181 = smul.addr %s180, 4
        %s182 = scalar_lea.vmem %s0, %s181
      $region24: #{aae_decoder_forward.8} parent=19 // pred_fallthru
        _
      // Predicated region
      $region25: #{aae_decoder_forward.8} parent=19 // pred_check
        %p183 = pneg %p71
      $region26: #{aae_decoder_forward.8} parent=19 // pred_check_branch
        %185 = sbr.rel (%p183) target = $region28
      $region27: #{aae_decoder_forward.8} parent=19 // pred_region
        %p186 = scmp.lt.s32.totalorder %s18, 3
        %s187 = scalar_select %p186, %s18, 3
        %p188 = scmp.lt.s32.totalorder %s19, 0
        %s189 = scalar_select %p188, %s19, 0
        %s190 = smul.addr %s187, 4
        %s191 = sadd.s32 %s189, %s190
        %s192 = smul.addr %s191, 4
        %s193 = scalar_lea.vmem %s1, %s192
      $region28: #{aae_decoder_forward.8} parent=19 // pred_fallthru
        _
    $region20: #{aae_decoder_forward.8} parent=5 // pred_fallthru
      _
    %p194 = scmp.le.s32.totalorder 1, %s11
    %p195 = scmp.lt.s32.totalorder %s11, 5
    %p196 = pnand %p194, %p195
    %p197 = pneg %p196
    // Predicated region
    $region29: #{aae_decoder_forward.8} parent=5 // pred_check
      _
    $region30: #{aae_decoder_forward.8} parent=5 // pred_check_branch
      %199 = sbr.rel (%p196) target = $region32
    $region31: #{aae_decoder_forward.8} parent=5 // pred_region
      %s200 = ssub.s32 %s11, 1
      %p201 = scmp.lt.s32.totalorder %s20, 3
      %s202 = scalar_select %p201, %s20, 3
      %s203 = smul.addr %s202, 4
      %s204 = scalar_lea.vmem %s0, %s203
      %p205 = pneg %p49
      %p206 = pneg %p46
      %p207 = scmp.lt.s32.totalorder %s20, 3
      %s208 = scalar_select %p207, %s20, 3
      %p209 = scmp.lt.s32.totalorder %s21, 0
      %s210 = scalar_select %p209, %s21, 0
      %s211 = smul.addr %s208, 4
      %s212 = sadd.s32 %s210, %s211
      %s213 = smul.addr %s212, 4
      %s214 = scalar_lea.vmem %s1, %s213
      %p215 = pneg %p77
      %p216 = pneg %p74
      %p217 = pneg %p98
      %p218 = pneg %p95
      %p219 = pneg %p126
      %p220 = pneg %p123
      %p221 = scmp.lt.s32.totalorder %s20, 3
      %s222 = scalar_select %p221, %s20, 3
      %p223 = scmp.lt.s32.totalorder %s21, 0
      %s224 = scalar_select %p223, %s21, 0
      %s225 = sadd.s32 %s224, %s222
      %s226 = smul.addr %s225, 4
      %s227 = scalar_lea.vmem %s3, %s226
      %p228 = pneg %p154
      %p229 = pneg %p151
      %s230 = sadd.s32 %s20, %s21
      %p231 = scmp.lt.s32.totalorder %s230, 3
      %s232 = scalar_select %p231, %s230, 3
      %s233 = smul.addr %s232, 8
      %s234 = scalar_lea.vmem %s4, %s233
      %p235 = scmp.lt.s32.totalorder %s20, 3
      %s236 = scalar_select %p235, %s20, 3
      %s237 = smul.addr %s236, 4
      %s238 = scalar_lea.vmem %s0, %s237
      %p239 = scmp.lt.s32.totalorder %s20, 3
      %s240 = scalar_select %p239, %s20, 3
      %p241 = scmp.lt.s32.totalorder %s21, 0
      %s242 = scalar_select %p241, %s21, 0
      %s243 = smul.addr %s240, 4
      %s244 = sadd.s32 %s242, %s243
      %s245 = smul.addr %s244, 4
      %s246 = scalar_lea.vmem %s1, %s245
      %p247 = scmp.lt.s32.totalorder %s20, 3
      %s248 = scalar_select %p247, %s20, 3
      %p249 = scmp.lt.s32.totalorder %s21, 0
      %s250 = scalar_select %p249, %s21, 0
      %s251 = sadd.s32 %s250, %s248
      %s252 = smul.addr %s251, 4
      %s253 = scalar_lea.vmem %s3, %s252
      %s254 = sadd.s32 %s20, %s21
      %p255 = scmp.lt.s32.totalorder %s254, 3
      %s256 = scalar_select %p255, %s254, 3
      %s257 = smul.addr %s256, 8
      %s258 = scalar_lea.vmem %s4, %s257
      %s259 = sadd.s32 %s20, %s21
      %v261 = vld [vmem:[%s238] sm:$0xf]
      %v262 = vld [vmem:[%s246] sm:$0xf]
      %v263 = vld [vmem:[%s246 + $0x4] sm:$0xf]
      %v264 = vld [vmem:[%s246 + $0x8] sm:$0xf]
      %v265 = vld [vmem:[%s246 + $0xc] sm:$0xf]
      %v266 = vld [vmem:[%s2] sm:$0xff]
      %268 = vset.pattern.permute.xlu0 0
      %269 = vperm.xlu0 %268, %v266
      %v270 = vpop.permute.xlu0 %269
      %v276 = vunpack.c.l.b16 %v262
      %v277 = vunpack.c.l.b16 %v263
      %v278 = vunpack.c.l.b16 %v264
      %v279 = vunpack.c.l.b16 %v265
      %v280 = vpack.c.b16 %v277, %v276
      %v281 = vpack.c.b16 %v279, %v278
      %vm284 = vcmask 261120
      %v286 = vsel %vm284, %v261, 0
      %288 = vmatprep.subr.bf16.mxu0 0
      %289 = vmatpush1.bf16.msra.mxu0 0
      %290 = vmatprep.subr.bf16.mxu0 0
      %291 = vmatpush1.bf16.msra.mxu0 0
      %292 = vmatprep.subr.bf16.mxu0 0
      %293 = vmatpush1.bf16.msra.mxu0 0
      %294 = vmatprep.subr.bf16.mxu0 0
      %295 = vmatpush1.bf16.msra.mxu0 0
      %296 = vmatprep.subr.bf16.mxu0 0
      %297 = vmatpush1.bf16.msra.mxu0 0
      %298 = vmatprep.subr.bf16.mxu0 0
      %299 = vmatpush1.bf16.msra.mxu0 0
      %300 = vmatprep.subr.bf16.mxu0 0
      %301 = vmatpush1.bf16.msra.mxu0 %v281
      %302 = vmatprep.subr.bf16.mxu0 0
      %303 = vmatpush1.bf16.msra.mxu0 %v280
      %304 = vmatprep.subr.bf16.mxu0 0
      %305 = vmatpush2.bf16.msra.mxu0 0
      %306 = vmatprep.subr.bf16.mxu0 0
      %307 = vmatpush2.bf16.msra.mxu0 0
      %308 = vmatprep.subr.bf16.mxu0 0
      %309 = vmatpush2.bf16.msra.mxu0 0
      %310 = vmatprep.subr.bf16.mxu0 0
      %311 = vmatpush2.bf16.msra.mxu0 0
      %312 = vmatprep.subr.bf16.mxu0 0
      %313 = vmatpush2.bf16.msra.mxu0 0
      %314 = vmatprep.subr.bf16.mxu0 0
      %315 = vmatpush2.bf16.msra.mxu0 0
      %316 = vmatprep.subr.bf16.mxu0 0
      %317 = vmatpush2.bf16.msra.mxu0 0
      %318 = vmatprep.subr.bf16.mxu0 0
      %319 = vmatpush2.bf16.msra.mxu0 0
      %320 = vmatprep.mubr.bf16.mxu0 0
      %321 = vmatmul.mubr.bf16.gmra.mxu0 %v286
      %v322 = vpop.f32.mrf.mxu0
      %v323 = vadd.f32 %v270, %v322
      %v324 = vpop.f32.mrf.mxu0
      %v325 = vpop.f32.mrf.mxu0
      %v326 = vpop.f32.mrf.mxu0
      %327 = vdwg.mxu0
      %v328 = vmax.f32 %v323, 0.0
      %329 = vadd.xlane.f32.xlu0 %v328
      %v330 = vpop.xlane.xlu0 %329
      %v331 = vmul.f32 %v328, %v328
      %332 = vadd.xlane.f32.xlu0 %v331
      %v333 = vpop.xlane.xlu0 %332
      %vm334 = vcmask 7168
      %v335 = vsel %vm334, %v330, %v333
      %vm336 = vcmask 15360
      %337 = vst.msk [vmem:[%s258] sm:$0xff] %vm336, %v335
      %v338 = vpack.c.bf16 %v328, %v328
      %339 = vst [vmem:[%s253] sm:$0xf] %v338
      %p340 = scmp.lt.s32.totalorder %s20, 3
      %s341 = scalar_select %p340, %s20, 3
      %p342 = scmp.lt.s32.totalorder %s21, 0
      %s343 = scalar_select %p342, %s21, 0
      %s344 = sadd.s32 %s343, %s341
      %s345 = smul.addr %s344, 4
      %s346 = scalar_lea.vmem %s3, %s345
      %s347 = sadd.s32 %s20, %s21
      %p348 = scmp.lt.s32.totalorder %s347, 3
      %s349 = scalar_select %p348, %s347, 3
      %s350 = smul.addr %s349, 8
      %s351 = scalar_lea.vmem %s4, %s350
      // Predicated region
      $region33: #{aae_decoder_forward.8} parent=31 // pred_check
        %p352 = pneg %p123
      $region34: #{aae_decoder_forward.8} parent=31 // pred_check_branch
        %354 = sbr.rel (%p352) target = $region36
      $region35: #{aae_decoder_forward.8} parent=31 // pred_region
        _
      $region36: #{aae_decoder_forward.8} parent=31 // pred_fallthru
        _
      // Predicated region
      $region37: #{aae_decoder_forward.8} parent=31 // pred_check
        %p355 = pneg %p151
      $region38: #{aae_decoder_forward.8} parent=31 // pred_check_branch
        %357 = sbr.rel (%p355) target = $region40
      $region39: #{aae_decoder_forward.8} parent=31 // pred_region
        %s358 = sadd.s32 %s20, %s21
      $region40: #{aae_decoder_forward.8} parent=31 // pred_fallthru
        _
    $region32: #{aae_decoder_forward.8} parent=5 // pred_fallthru
      _
    %p359 = scmp.le.s32.totalorder 2, %s11
    // Predicated region
    $region41: #{aae_decoder_forward.8} parent=5 // pred_check
      %p360 = pneg %p359
    $region42: #{aae_decoder_forward.8} parent=5 // pred_check_branch
      %362 = sbr.rel (%p360) target = $region44
    $region43: #{aae_decoder_forward.8} parent=5 // pred_region
      %s363 = ssub.s32 %s11, 2
      // Predicated region
      $region45: #{aae_decoder_forward.8} parent=43 // pred_check
        %p364 = pneg %p129
      $region46: #{aae_decoder_forward.8} parent=43 // pred_check_branch
        %366 = sbr.rel (%p364) target = $region48
      $region47: #{aae_decoder_forward.8} parent=43 // pred_region
        %p367 = scmp.lt.s32.totalorder %s22, 3
        %s368 = scalar_select %p367, %s22, 3
        %p369 = scmp.lt.s32.totalorder %s23, 0
        %s370 = scalar_select %p369, %s23, 0
        %s371 = sadd.s32 %s370, %s368
        %s372 = smul.addr %s371, 4
        %s373 = scalar_lea.vmem %s3, %s372
      $region48: #{aae_decoder_forward.8} parent=43 // pred_fallthru
        _
      // Predicated region
      $region49: #{aae_decoder_forward.8} parent=43 // pred_check
        %p374 = pneg %p157
      $region50: #{aae_decoder_forward.8} parent=43 // pred_check_branch
        %376 = sbr.rel (%p374) target = $region52
      $region51: #{aae_decoder_forward.8} parent=43 // pred_region
        %s377 = sadd.s32 %s22, %s23
        %p378 = scmp.lt.s32.totalorder %s377, 3
        %s379 = scalar_select %p378, %s377, 3
        %s380 = smul.addr %s379, 8
        %s381 = scalar_lea.vmem %s4, %s380
      $region52: #{aae_decoder_forward.8} parent=43 // pred_fallthru
        _
    $region44: #{aae_decoder_forward.8} parent=5 // pred_fallthru
      _
  $region6: #{aae_decoder_forward.8} parent=0 // loop_footer
    %s15 = sadd.s32 1, %s11
  $region7: #{aae_decoder_forward.8} parent=0 // loop_footer_branch
    %10 = sbr.rel target = $region3
  $region8: #{aae_decoder_forward.8} parent=0 // loop_exit
    _

// kernel: aae_decoder_forward.9
$region0: #{aae_decoder_forward.9}
  #allocation0 [shape = 'u32[]', space=smem, size = 0x4, offset = 0x4, fixed_abs, tag = 'smem constant byte address 0x4 - core index']
  #allocation1 [shape = 'u32[144,128]{1,0:T(1,128)}', space=vmem, size = 0x12000, scoped, tag = 'internal scratch']
  %s0 = inlined_call_operand.vmem [shape: bf16[1,4,8], index: 0, kind: input, shape index: {}]
  %s1 = inlined_call_operand.vmem [shape: bf16[1,8,512], index: 1, kind: input, shape index: {}]
  %s2 = inlined_call_operand.vmem [shape: f32[4,1], index: 2, kind: input, shape index: {}]
  %s3 = inlined_call_operand.vmem [shape: bf16[1,4,512], index: 3, kind: output, shape index: {0}]
  %s4 = inlined_call_operand.vmem [shape: f32[1,4,2], index: 4, kind: output, shape index: {1}]
  %5 = xla_tuple %s3, %s4
  %s6 = sld [smem:[#allocation0]]
  $region30: #{aae_decoder_forward.9} parent=0
    _
  %s8 = ssub.s32 1, %s6
  %s9 = scalar_select 0, %s8, %s6
  // Predicated region
  $region2: #{aae_decoder_forward.9} parent=0 // pred_check
    _
  $region3: #{aae_decoder_forward.9} parent=0 // pred_check_branch
    %11 = sbr.rel (0) target = $region5
  $region4: #{aae_decoder_forward.9} parent=0 // pred_region
    _
  $region5: #{aae_decoder_forward.9} parent=0 // pred_fallthru
    _
  // Predicated region
  $region6: #{aae_decoder_forward.9} parent=0 // pred_check
    _
  $region7: #{aae_decoder_forward.9} parent=0 // pred_check_branch
    %13 = sbr.rel (0) target = $region9
  $region8: #{aae_decoder_forward.9} parent=0 // pred_region
    _
  $region9: #{aae_decoder_forward.9} parent=0 // pred_fallthru
    _
  // Predicated region
  $region10: #{aae_decoder_forward.9} parent=0 // pred_check
    _
  $region11: #{aae_decoder_forward.9} parent=0 // pred_check_branch
    %15 = sbr.rel (0) target = $region13
  $region12: #{aae_decoder_forward.9} parent=0 // pred_region
    _
  $region13: #{aae_decoder_forward.9} parent=0 // pred_fallthru
    _
  %s16 = sadd.s32 0, 0
  %p17 = scmp.lt.s32.totalorder %s16, 0
  %s18 = scalar_select %p17, %s16, 0
  %s19 = smul.addr %s18, 4
  %s20 = scalar_lea.vmem %s4, %s19
  %s21 = sadd.s32 0, 0
  %p22 = scmp.lt.s32.totalorder %s21, 0
  %s23 = scalar_select %p22, %s21, 0
  %s24 = smul.addr %s23, 4
  %s25 = scalar_lea.vmem %s4, %s24
  %s26 = sadd.s32 0, 0
  %v28 = vld [vmem:[%s0] sm:$0x3]
  %v29 = vld [vmem:[%s1] sm:$0xff]
  %v30 = vld [vmem:[%s1 + $0x8] sm:$0xff]
  %v31 = vld [vmem:[%s2] sm:$0xf]
  %33 = vset.pattern.permute.xlu0 0
  %34 = vperm.xlu0 %33, %v31
  %v35 = vpop.permute.xlu0 %34
  %v39 = vunpack.c.l.b16 %v29
  %v40 = vunpack.c.h.b16 %v29
  %v41 = vunpack.c.l.b16 %v30
  %v42 = vunpack.c.h.b16 %v30
  %v43 = vpack.c.b16 %v39, %v39
  %v44 = vpack.c.b16 %v40, %v40
  %v45 = vpack.c.b16 %v41, %v41
  %v46 = vpack.c.b16 %v42, %v42
  %vm47 = vcmask 64512
  %v49 = vsel %vm47, %v28, 0
  %vm51 = vcmask 1043456
  %v53 = vsel %vm51, %v43, 0
  %v56 = vsel %vm51, %v44, 0
  %v59 = vsel %vm51, %v45, 0
  %v62 = vsel %vm51, %v46, 0
  %64 = vmatprep.subr.bf16.mxu0 0
  %65 = vmatpush1.bf16.msra.mxu0 0
  %66 = vmatprep.subr.bf16.mxu0 0
  %67 = vmatpush1.bf16.msra.mxu0 0
  %68 = vmatprep.subr.bf16.mxu0 0
  %69 = vmatpush1.bf16.msra.mxu0 0
  %70 = vmatprep.subr.bf16.mxu0 0
  %71 = vmatpush1.bf16.msra.mxu0 0
  %72 = vmatprep.subr.bf16.mxu0 0
  %73 = vmatpush1.bf16.msra.mxu0 0
  %74 = vmatprep.subr.bf16.mxu0 0
  %75 = vmatpush1.bf16.msra.mxu0 0
  %76 = vmatprep.subr.bf16.mxu0 0
  %77 = vmatpush1.bf16.msra.mxu0 0
  %78 = vmatprep.subr.bf16.mxu0 %v56
  %79 = vmatpush1.bf16.msra.mxu0 %v53
  %80 = vmatprep.subr.bf16.mxu0 0
  %81 = vmatpush2.bf16.msra.mxu0 0
  %82 = vmatprep.subr.bf16.mxu0 0
  %83 = vmatpush2.bf16.msra.mxu0 0
  %84 = vmatprep.subr.bf16.mxu0 0
  %85 = vmatpush2.bf16.msra.mxu0 0
  %86 = vmatprep.subr.bf16.mxu0 0
  %87 = vmatpush2.bf16.msra.mxu0 0
  %88 = vmatprep.subr.bf16.mxu0 0
  %89 = vmatpush2.bf16.msra.mxu0 0
  %90 = vmatprep.subr.bf16.mxu0 0
  %91 = vmatpush2.bf16.msra.mxu0 0
  %92 = vmatprep.subr.bf16.mxu0 0
  %93 = vmatpush2.bf16.msra.mxu0 0
  %94 = vmatprep.subr.bf16.mxu0 0
  %95 = vmatpush2.bf16.msra.mxu0 0
  %96 = vmatprep.mubr.bf16.mxu0 0
  %97 = vmatmul.mubr.bf16.gmra.mxu0 %v49
  %v98 = vpop.f32.mrf.mxu0
  %v99 = vadd.f32 %v35, %v98
  %v100 = vpop.f32.mrf.mxu0
  %v101 = vadd.f32 %v35, %v100
  %v102 = vpop.f32.mrf.mxu0
  %v103 = vpop.f32.mrf.mxu0
  %104 = vdwg.mxu0
  %105 = vmatprep.subr.bf16.mxu0 0
  %106 = vmatpush1.bf16.msra.mxu0 0
  %107 = vmatprep.subr.bf16.mxu0 0
  %108 = vmatpush1.bf16.msra.mxu0 0
  %109 = vmatprep.subr.bf16.mxu0 0
  %110 = vmatpush1.bf16.msra.mxu0 0
  %111 = vmatprep.subr.bf16.mxu0 0
  %112 = vmatpush1.bf16.msra.mxu0 0
  %113 = vmatprep.subr.bf16.mxu0 0
  %114 = vmatpush1.bf16.msra.mxu0 0
  %115 = vmatprep.subr.bf16.mxu0 0
  %116 = vmatpush1.bf16.msra.mxu0 0
  %117 = vmatprep.subr.bf16.mxu0 0
  %118 = vmatpush1.bf16.msra.mxu0 0
  %119 = vmatprep.subr.bf16.mxu0 %v62
  %120 = vmatpush1.bf16.msra.mxu0 %v59
  %121 = vmatprep.subr.bf16.mxu0 0
  %122 = vmatpush2.bf16.msra.mxu0 0
  %123 = vmatprep.subr.bf16.mxu0 0
  %124 = vmatpush2.bf16.msra.mxu0 0
  %125 = vmatprep.subr.bf16.mxu0 0
  %126 = vmatpush2.bf16.msra.mxu0 0
  %127 = vmatprep.subr.bf16.mxu0 0
  %128 = vmatpush2.bf16.msra.mxu0 0
  %129 = vmatprep.subr.bf16.mxu0 0
  %130 = vmatpush2.bf16.msra.mxu0 0
  %131 = vmatprep.subr.bf16.mxu0 0
  %132 = vmatpush2.bf16.msra.mxu0 0
  %133 = vmatprep.subr.bf16.mxu0 0
  %134 = vmatpush2.bf16.msra.mxu0 0
  %135 = vmatprep.subr.bf16.mxu0 0
  %136 = vmatpush2.bf16.msra.mxu0 0
  %137 = vmatprep.mubr.bf16.mxu0 0
  %138 = vmatmul.mubr.bf16.gmra.mxu0 %v49
  %v139 = vpop.f32.mrf.mxu0
  %v140 = vadd.f32 %v35, %v139
  %v141 = vpop.f32.mrf.mxu0
  %v142 = vadd.f32 %v35, %v141
  %v143 = vpop.f32.mrf.mxu0
  %v144 = vpop.f32.mrf.mxu0
  %145 = vdwg.mxu0
  %v146 = vmax.f32 %v99, 0.0
  %v147 = vmax.f32 %v101, 0.0
  %v148 = vmax.f32 %v140, 0.0
  %v149 = vmax.f32 %v142, 0.0
  %v150 = vsel %vm51, %v146, 0.0
  %v151 = vsel %vm51, %v147, 0.0
  %v152 = vadd.f32 %v150, %v151
  %v153 = vsel %vm51, %v148, 0.0
  %v154 = vadd.f32 %v152, %v153
  %v155 = vsel %vm51, %v149, 0.0
  %v156 = vadd.f32 %v154, %v155
  %157 = vadd.xlane.f32.xlu0 %v156
  %v158 = vpop.xlane.xlu0 %157
  %v159 = vmul.f32 %v146, %v146
  %v160 = vmul.f32 %v147, %v147
  %v161 = vmul.f32 %v148, %v148
  %v162 = vmul.f32 %v149, %v149
  %v163 = vsel %vm51, %v159, 0.0
  %v164 = vsel %vm51, %v160, 0.0
  %v165 = vadd.f32 %v163, %v164
  %v166 = vsel %vm51, %v161, 0.0
  %v167 = vadd.f32 %v165, %v166
  %v168 = vsel %vm51, %v162, 0.0
  %v169 = vadd.f32 %v167, %v168
  %170 = vadd.xlane.f32.xlu0 %v169
  %v171 = vpop.xlane.xlu0 %170
  %vm172 = vcmask 7168
  %v173 = vsel %vm172, %v158, %v171
  %vm174 = vcmask 11264
  %175 = vst.msk [vmem:[%s25] sm:$0xf] %vm174, %v173
  %v176 = vpack.c.bf16 %v146, %v146
  %v177 = vpack.c.bf16 %v147, %v147
  %v178 = vpack.c.bf16 %v148, %v148
  %v179 = vpack.c.bf16 %v149, %v149
  %v184 = vcombine.low %v176, %v177
  %v185 = vcombine.low %v178, %v179
  %v187 = vunpack.c.l.s4 1983009808
  %v188 = vunpack.c.0.s8 %v187
  %v189 = vlaneseq
  %v190 = vshrl.u32 %v189, 7
  %v191 = vsub.s32 %v188, %v190
  %v192 = vrot.slane %v184, %v191
  %v194 = vunpack.c.l.s4 1983009808
  %v195 = vunpack.c.0.s8 %v194
  %v196 = vlaneseq
  %v197 = vshrl.u32 %v196, 7
  %v198 = vsub.s32 %v195, %v197
  %v199 = vrot.slane %v185, %v198
  %v200 = vcombine.low %v192, %v199
  %202 = vst [vmem:[%s3] sm:$0xff] %v200
  %s203 = sadd.s32 0, 0
  %p204 = scmp.lt.s32.totalorder %s203, 0
  %s205 = scalar_select %p204, %s203, 0
  %s206 = smul.addr %s205, 4
  %s207 = scalar_lea.vmem %s4, %s206
  // Predicated region
  $region14: #{aae_decoder_forward.9} parent=0 // pred_check
    _
  $region15: #{aae_decoder_forward.9} parent=0 // pred_check_branch
    %209 = sbr.rel (0) target = $region17
  $region16: #{aae_decoder_forward.9} parent=0 // pred_region
    _
  $region17: #{aae_decoder_forward.9} parent=0 // pred_fallthru
    _
  // Predicated region
  $region18: #{aae_decoder_forward.9} parent=0 // pred_check
    _
  $region19: #{aae_decoder_forward.9} parent=0 // pred_check_branch
    %211 = sbr.rel (0) target = $region21
  $region20: #{aae_decoder_forward.9} parent=0 // pred_region
    %s212 = sadd.s32 0, 0
  $region21: #{aae_decoder_forward.9} parent=0 // pred_fallthru
    _
  // Predicated region
  $region22: #{aae_decoder_forward.9} parent=0 // pred_check
    _
  $region23: #{aae_decoder_forward.9} parent=0 // pred_check_branch
    %214 = sbr.rel (0) target = $region25
  $region24: #{aae_decoder_forward.9} parent=0 // pred_region
    _
  $region25: #{aae_decoder_forward.9} parent=0 // pred_fallthru
    _
  // Predicated region
  $region26: #{aae_decoder_forward.9} parent=0 // pred_check
    _
  $region27: #{aae_decoder_forward.9} parent=0 // pred_check_branch
    %216 = sbr.rel (0) target = $region29
  $region28: #{aae_decoder_forward.9} parent=0 // pred_region
    %s217 = sadd.s32 0, 0
    %p218 = scmp.lt.s32.totalorder %s217, 0
    %s219 = scalar_select %p218, %s217, 0
    %s220 = smul.addr %s219, 4
    %s221 = scalar_lea.vmem %s4, %s220
  $region29: #{aae_decoder_forward.9} parent=0 // pred_fallthru
    _

// kernel: aae_decoder_forward.10
$region0: #{aae_decoder_forward.10}
  #allocation0 [shape = 'u32[]', space=smem, size = 0x4, offset = 0x4, fixed_abs, tag = 'smem constant byte address 0x4 - core index']
  #allocation1 [shape = 'u32[144,128]{1,0:T(1,128)}', space=vmem, size = 0x12000, scoped, tag = 'internal scratch']
  %s0 = inlined_call_operand.vmem [shape: bf16[4,3,16], index: 0, kind: input, shape index: {}]
  %s1 = inlined_call_operand.vmem [shape: bf16[4,16,512], index: 1, kind: input, shape index: {}]
  %s2 = inlined_call_operand.vmem [shape: f32[3,1], index: 2, kind: input, shape index: {}]
  %s3 = inlined_call_operand.vmem [shape: bf16[4,3,512], index: 3, kind: output, shape index: {0}]
  %s4 = inlined_call_operand.hbm [shape: f32[4,3,2], index: 4, kind: output, shape index: {1}]
  %5 = xla_tuple %s3, %s4
  %s6 = sld [smem:[#allocation0]]
  $region53: #{aae_decoder_forward.10} parent=0
    _
  %s8 = ssub.s32 1, %s6
  %s9 = scalar_select 0, %s8, %s6
  $region1: #{aae_decoder_forward.10} parent=0
    #allocation2 [shape = 'u8[4096]{0}', space=vmem, size = 0x1000, scoped, tag = 'output window, operand 1']
    #allocation3 [shape = 's32[2]{0}', space=sflag, size = 0x8, scoped, tag = 'scoped memory for aae_decoder_forward.10']
    %10 = vsyncpa [#allocation3], 0
    %s11 = scalar_lea.sflag [#allocation3], 1
    %12 = vsyncpa %s11, 0
    loop: start=0, step=1, limit=6
    $region2: #{aae_decoder_forward.10} parent=1 // loop_pre_header
      _
    $region3: #{aae_decoder_forward.10} parent=1 // loop_header
      %s14 = sphi 0, %s18
      %p15 = scmp.ge.s32.totalorder %s14, 6
      %s21 = sphi 0, %s33
      %s22 = sphi 0, %s29
      %s23 = sphi 0, %s21
      %s24 = sphi 0, %s22
      %s25 = sphi 0, %s23
      %s26 = sphi 0, %s24
      %s36 = sphi 0, %s38
      %s39 = sphi 0, %s36
      %s40 = sphi 0, %s39
      %s56 = sphi 0, %s40
      %s64 = sphi 0, %s66
      %s67 = sphi 0, %s64
      %s68 = sphi 0, %s67
      %s84 = sphi 0, %s68
      %s88 = sphi 0, %s88
      %s90 = sphi 0, %s88
      %s91 = sphi 0, %s90
      %s105 = sphi 0, %s91
      %s113 = sphi 0, %s115
      %s116 = sphi 0, %s113
      %s117 = sphi 0, %s116
      %s133 = sphi 0, %s117
      %s141 = sphi 0, %s143
      %s144 = sphi 0, %s141
      %s145 = sphi 0, %s144
      %s161 = sphi 0, %s145
    $region4: #{aae_decoder_forward.10} parent=1 // loop_header_branch
      %17 = sbr.rel (%p15) target = $region8
    $region5: #{aae_decoder_forward.10} parent=1 // loop_body
      %s19 = ssub.s32 %s14, 1
      %s20 = ssub.s32 %s14, 2
      %s27 = sadd.s32 1, %s22
      %p28 = scmp.ge.s32.totalorder %s27, 1
      %s29 = scalar_select %p28, 0, %s27
      %s30 = sadd.s32 1, %s21
      %s31 = scalar_select %p28, %s30, %s21
      %p32 = scmp.ge.s32.totalorder %s31, 4
      %s33 = scalar_select %p32, 0, %s31
      %s34 = ssub.s32 %s21, %s33
      %p35 = scmp.eq.s32.totalorder %s34, 0
      %s37 = sadd.s32 %s36, 1
      %s38 = scalar_select %p35, %s36, %s37
      %p41 = pneg %p35
      %p42 = scmp.eq.s32.totalorder %s14, 3
      %p43 = por %p41, %p42
      %p44 = scmp.ne.s32.totalorder %s36, %s39
      %p45 = scmp.eq.s32.totalorder %s14, 0
      %p46 = por %p44, %p45
      %p47 = scmp.ne.s32.totalorder %s36, %s39
      %p48 = scmp.eq.s32.totalorder %s19, 3
      %p49 = por %p47, %p48
      %p50 = scmp.ne.s32.totalorder %s39, %s40
      %p51 = scmp.eq.s32.totalorder %s19, 0
      %p52 = por %p50, %p51
      %p53 = scmp.ne.s32.totalorder %s39, %s40
      %p54 = scmp.eq.s32.totalorder %s20, 3
      %p55 = por %p53, %p54
      %p57 = scmp.ne.s32.totalorder %s40, %s56
      %p58 = scmp.eq.s32.totalorder %s20, 0
      %p59 = por %p57, %p58
      %s60 = ssub.s32 %s21, %s33
      %s61 = ssub.s32 %s22, %s29
      %s62 = sor.u32 %s60, %s61
      %p63 = scmp.eq.s32.totalorder %s62, 0
      %s65 = sadd.s32 %s64, 1
      %s66 = scalar_select %p63, %s64, %s65
      %p69 = pneg %p63
      %p70 = scmp.eq.s32.totalorder %s14, 3
      %p71 = por %p69, %p70
      %p72 = scmp.ne.s32.totalorder %s64, %s67
      %p73 = scmp.eq.s32.totalorder %s14, 0
      %p74 = por %p72, %p73
      %p75 = scmp.ne.s32.totalorder %s64, %s67
      %p76 = scmp.eq.s32.totalorder %s19, 3
      %p77 = por %p75, %p76
      %p78 = scmp.ne.s32.totalorder %s67, %s68
      %p79 = scmp.eq.s32.totalorder %s19, 0
      %p80 = por %p78, %p79
      %p81 = scmp.ne.s32.totalorder %s67, %s68
      %p82 = scmp.eq.s32.totalorder %s20, 3
      %p83 = por %p81, %p82
      %p85 = scmp.ne.s32.totalorder %s68, %s84
      %p86 = scmp.eq.s32.totalorder %s20, 0
      %p87 = por %p85, %p86
      %s89 = sadd.s32 %s88, 1
      %p92 = scmp.eq.s32.totalorder %s14, 3
      %p93 = scmp.ne.s32.totalorder %s88, %s90
      %p94 = scmp.eq.s32.totalorder %s14, 0
      %p95 = por %p93, %p94
      %p96 = scmp.ne.s32.totalorder %s88, %s90
      %p97 = scmp.eq.s32.totalorder %s19, 3
      %p98 = por %p96, %p97
      %p99 = scmp.ne.s32.totalorder %s90, %s91
      %p100 = scmp.eq.s32.totalorder %s19, 0
      %p101 = por %p99, %p100
      %p102 = scmp.ne.s32.totalorder %s90, %s91
      %p103 = scmp.eq.s32.totalorder %s20, 3
      %p104 = por %p102, %p103
      %p106 = scmp.ne.s32.totalorder %s91, %s105
      %p107 = scmp.eq.s32.totalorder %s20, 0
      %p108 = por %p106, %p107
      %s109 = ssub.s32 %s21, %s33
      %s110 = ssub.s32 %s22, %s29
      %s111 = sor.u32 %s109, %s110
      %p112 = scmp.eq.s32.totalorder %s111, 0
      %s114 = sadd.s32 %s113, 1
      %s115 = scalar_select %p112, %s113, %s114
      %p118 = pneg %p112
      %p119 = scmp.eq.s32.totalorder %s14, 3
      %p120 = por %p118, %p119
      %p121 = scmp.ne.s32.totalorder %s113, %s116
      %p122 = scmp.eq.s32.totalorder %s14, 0
      %p123 = por %p121, %p122
      %p124 = scmp.ne.s32.totalorder %s113, %s116
      %p125 = scmp.eq.s32.totalorder %s19, 3
      %p126 = por %p124, %p125
      %p127 = scmp.ne.s32.totalorder %s116, %s117
      %p128 = scmp.eq.s32.totalorder %s19, 0
      %p129 = por %p127, %p128
      %p130 = scmp.ne.s32.totalorder %s116, %s117
      %p131 = scmp.eq.s32.totalorder %s20, 3
      %p132 = por %p130, %p131
      %p134 = scmp.ne.s32.totalorder %s117, %s133
      %p135 = scmp.eq.s32.totalorder %s20, 0
      %p136 = por %p134, %p135
      %s137 = sadd.s32 %s21, %s22
      %s138 = sadd.s32 %s33, %s29
      %s139 = ssub.s32 %s137, %s138
      %p140 = scmp.eq.s32.totalorder %s139, 0
      %s142 = sadd.s32 %s141, 1
      %s143 = scalar_select %p140, %s141, %s142
      %p146 = pneg %p140
      %p147 = scmp.eq.s32.totalorder %s14, 3
      %p148 = por %p146, %p147
      %p149 = scmp.ne.s32.totalorder %s141, %s144
      %p150 = scmp.eq.s32.totalorder %s14, 0
      %p151 = por %p149, %p150
      %p152 = scmp.ne.s32.totalorder %s141, %s144
      %p153 = scmp.eq.s32.totalorder %s19, 3
      %p154 = por %p152, %p153
      %p155 = scmp.ne.s32.totalorder %s144, %s145
      %p156 = scmp.eq.s32.totalorder %s19, 0
      %p157 = por %p155, %p156
      %p158 = scmp.ne.s32.totalorder %s144, %s145
      %p159 = scmp.eq.s32.totalorder %s20, 3
      %p160 = por %p158, %p159
      %p162 = scmp.ne.s32.totalorder %s145, %s161
      %p163 = scmp.eq.s32.totalorder %s20, 0
      %p164 = por %p162, %p163
      %p165 = scmp.le.s32.totalorder 1, %s14
      %p166 = scmp.lt.s32.totalorder %s14, 5
      %p167 = pnand %p165, %p166
      %p168 = pneg %p167
      // Predicated region
      $region9: #{aae_decoder_forward.10} parent=5 // pred_check
        _
      $region10: #{aae_decoder_forward.10} parent=5 // pred_check_branch
        %170 = sbr.rel (%p167) target = $region12
      $region11: #{aae_decoder_forward.10} parent=5 // pred_region
        %s171 = ssub.s32 %s14, 1
        // Predicated region
        $region13: #{aae_decoder_forward.10} parent=11 // pred_check
          %p172 = pneg %p101
        $region14: #{aae_decoder_forward.10} parent=11 // pred_check_branch
          %174 = sbr.rel (%p172) target = $region16
        $region15: #{aae_decoder_forward.10} parent=11 // pred_region
          _
        $region16: #{aae_decoder_forward.10} parent=11 // pred_fallthru
          _
      $region12: #{aae_decoder_forward.10} parent=5 // pred_fallthru
        _
      %p175 = scmp.lt.s32.totalorder %s14, 4
      // Predicated region
      $region17: #{aae_decoder_forward.10} parent=5 // pred_check
        %p176 = pneg %p175
      $region18: #{aae_decoder_forward.10} parent=5 // pred_check_branch
        %178 = sbr.rel (%p176) target = $region20
      $region19: #{aae_decoder_forward.10} parent=5 // pred_region
        // Predicated region
        $region21: #{aae_decoder_forward.10} parent=19 // pred_check
          %p179 = pneg %p46
        $region22: #{aae_decoder_forward.10} parent=19 // pred_check_branch
          %181 = sbr.rel (%p179) target = $region24
        $region23: #{aae_decoder_forward.10} parent=19 // pred_region
          %p182 = scmp.lt.s32.totalorder %s21, 3
          %s183 = scalar_select %p182, %s21, 3
          %s184 = smul.addr %s183, 2
          %s185 = scalar_lea.vmem %s0, %s184
        $region24: #{aae_decoder_forward.10} parent=19 // pred_fallthru
          _
        // Predicated region
        $region25: #{aae_decoder_forward.10} parent=19 // pred_check
          %p186 = pneg %p74
        $region26: #{aae_decoder_forward.10} parent=19 // pred_check_branch
          %188 = sbr.rel (%p186) target = $region28
        $region27: #{aae_decoder_forward.10} parent=19 // pred_region
          %s189 = smul.u32 4, %s22
          %p190 = scmp.lt.s32.totalorder %s21, 3
          %s191 = scalar_select %p190, %s21, 3
          %p192 = scmp.lt.s32.totalorder %s189, 3
          %s193 = scalar_select %p192, %s189, 3
          %s194 = smul.addr %s191, 8
          %s195 = sadd.s32 %s193, %s194
          %s196 = smul.addr %s195, 4
          %s197 = scalar_lea.vmem %s1, %s196
          %s198 = smul.u32 4, %s22
        $region28: #{aae_decoder_forward.10} parent=19 // pred_fallthru
          _
      $region20: #{aae_decoder_forward.10} parent=5 // pred_fallthru
        _
      %p199 = scmp.le.s32.totalorder 1, %s14
      %p200 = scmp.lt.s32.totalorder %s14, 5
      %p201 = pnand %p199, %p200
      %p202 = pneg %p201
      // Predicated region
      $region29: #{aae_decoder_forward.10} parent=5 // pred_check
        _
      $region30: #{aae_decoder_forward.10} parent=5 // pred_check_branch
        %204 = sbr.rel (%p201) target = $region32
      $region31: #{aae_decoder_forward.10} parent=5 // pred_region
        %s205 = ssub.s32 %s14, 1
        %p206 = scmp.lt.s32.totalorder %s23, 3
        %s207 = scalar_select %p206, %s23, 3
        %s208 = smul.addr %s207, 2
        %s209 = scalar_lea.vmem %s0, %s208
        %p210 = pneg %p52
        %p211 = pneg %p49
        %s212 = smul.u32 4, %s24
        %p213 = scmp.lt.s32.totalorder %s23, 3
        %s214 = scalar_select %p213, %s23, 3
        %p215 = scmp.lt.s32.totalorder %s212, 3
        %s216 = scalar_select %p215, %s212, 3
        %s217 = smul.addr %s214, 8
        %s218 = sadd.s32 %s216, %s217
        %s219 = smul.addr %s218, 4
        %s220 = scalar_lea.vmem %s1, %s219
        %p221 = pneg %p80
        %p222 = pneg %p77
        %p223 = pneg %p101
        %p224 = pneg %p98
        %p225 = pneg %p129
        %p226 = pneg %p126
        %s227 = smul.u32 4, %s24
        %p228 = scmp.lt.s32.totalorder %s23, 3
        %s229 = scalar_select %p228, %s23, 3
        %p230 = scmp.lt.s32.totalorder %s227, 3
        %s231 = scalar_select %p230, %s227, 3
        %s232 = smul.addr %s229, 4
        %s233 = sadd.s32 %s231, %s232
        %s234 = smul.addr %s233, 2
        %s235 = scalar_lea.vmem %s3, %s234
        %p236 = pneg %p157
        %p237 = pneg %p154
        %s238 = sand.u32 %s144, 1
        %s239 = scalar_lea.sflag [#allocation3], %s238
        %s240 = sand.u32 %s144, 1
        %s241 = smul.addr %s240, 4
        %s242 = scalar_lea.vmem [#allocation2], %s241
        %p243 = scmp.lt.s32.totalorder %s23, 3
        %s244 = scalar_select %p243, %s23, 3
        %s245 = smul.addr %s244, 2
        %s246 = scalar_lea.vmem %s0, %s245
        %s247 = smul.u32 4, %s24
        %p248 = scmp.lt.s32.totalorder %s23, 3
        %s249 = scalar_select %p248, %s23, 3
        %p250 = scmp.lt.s32.totalorder %s247, 3
        %s251 = scalar_select %p250, %s247, 3
        %s252 = smul.addr %s249, 8
        %s253 = sadd.s32 %s251, %s252
        %s254 = smul.addr %s253, 4
        %s255 = scalar_lea.vmem %s1, %s254
        %s256 = smul.u32 4, %s24
        %s257 = smul.u32 4, %s24
        %p258 = scmp.lt.s32.totalorder %s23, 3
        %s259 = scalar_select %p258, %s23, 3
        %p260 = scmp.lt.s32.totalorder %s257, 3
        %s261 = scalar_select %p260, %s257, 3
        %s262 = smul.addr %s259, 4
        %s263 = sadd.s32 %s261, %s262
        %s264 = smul.addr %s263, 2
        %s265 = scalar_lea.vmem %s3, %s264
        %s266 = smul.u32 4, %s24
        %s267 = sadd.s32 %s23, %s24
        %v269 = vld [vmem:[%s246] sm:$0x3]
        %v270 = vld [vmem:[%s255] sm:$0xff]
        %v271 = vld [vmem:[%s255 + $0x8] sm:$0xff]
        %v272 = vld [vmem:[%s255 + $0x10] sm:$0xff]
        %v273 = vld [vmem:[%s255 + $0x18] sm:$0xff]
        %v274 = vld [vmem:[%s2] sm:$0x7]
        %276 = vset.pattern.permute.xlu0 0
        %277 = vperm.xlu0 %276, %v274
        %v278 = vpop.permute.xlu0 %277
        %v284 = vunpack.c.l.b16 %v270
        %v285 = vunpack.c.h.b16 %v270
        %v286 = vunpack.c.l.b16 %v271
        %v287 = vunpack.c.h.b16 %v271
        %v288 = vunpack.c.l.b16 %v272
        %v289 = vunpack.c.h.b16 %v272
        %v290 = vunpack.c.l.b16 %v273
        %v291 = vunpack.c.h.b16 %v273
        %v292 = vpack.c.b16 %v288, %v284
        %v293 = vpack.c.b16 %v289, %v285
        %v294 = vpack.c.b16 %v290, %v286
        %v295 = vpack.c.b16 %v291, %v287
        %vm300 = vcmask 130048
        %v302 = vsel %vm300, %v269, 0
        %304 = vmatprep.subr.bf16.mxu0 0
        %305 = vmatpush1.bf16.msra.mxu0 0
        %306 = vmatprep.subr.bf16.mxu0 0
        %307 = vmatpush1.bf16.msra.mxu0 0
        %308 = vmatprep.subr.bf16.mxu0 0
        %309 = vmatpush1.bf16.msra.mxu0 0
        %310 = vmatprep.subr.bf16.mxu0 0
        %311 = vmatpush1.bf16.msra.mxu0 0
        %312 = vmatprep.subr.bf16.mxu0 0
        %313 = vmatpush1.bf16.msra.mxu0 0
        %314 = vmatprep.subr.bf16.mxu0 0
        %315 = vmatpush1.bf16.msra.mxu0 0
        %316 = vmatprep.subr.bf16.mxu0 0
        %317 = vmatpush1.bf16.msra.mxu0 0
        %318 = vmatprep.subr.bf16.mxu0 %v293
        %319 = vmatpush1.bf16.msra.mxu0 %v292
        %320 = vmatprep.subr.bf16.mxu0 0
        %321 = vmatpush2.bf16.msra.mxu0 0
        %322 = vmatprep.subr.bf16.mxu0 0
        %323 = vmatpush2.bf16.msra.mxu0 0
        %324 = vmatprep.subr.bf16.mxu0 0
        %325 = vmatpush2.bf16.msra.mxu0 0
        %326 = vmatprep.subr.bf16.mxu0 0
        %327 = vmatpush2.bf16.msra.mxu0 0
        %328 = vmatprep.subr.bf16.mxu0 0
        %329 = vmatpush2.bf16.msra.mxu0 0
        %330 = vmatprep.subr.bf16.mxu0 0
        %331 = vmatpush2.bf16.msra.mxu0 0
        %332 = vmatprep.subr.bf16.mxu0 0
        %333 = vmatpush2.bf16.msra.mxu0 0
        %334 = vmatprep.subr.bf16.mxu0 0
        %335 = vmatpush2.bf16.msra.mxu0 0
        %336 = vmatprep.mubr.bf16.mxu0 0
        %337 = vmatmul.mubr.bf16.gmra.mxu0 %v302
        %v338 = vpop.f32.mrf.mxu0
        %v339 = vadd.f32 %v278, %v338
        %v340 = vpop.f32.mrf.mxu0
        %v341 = vadd.f32 %v278, %v340
        %v342 = vpop.f32.mrf.mxu0
        %v343 = vpop.f32.mrf.mxu0
        %344 = vdwg.mxu0
        %345 = vmatprep.subr.bf16.mxu0 0
        %346 = vmatpush1.bf16.msra.mxu0 0
        %347 = vmatprep.subr.bf16.mxu0 0
        %348 = vmatpush1.bf16.msra.mxu0 0
        %349 = vmatprep.subr.bf16.mxu0 0
        %350 = vmatpush1.bf16.msra.mxu0 0
        %351 = vmatprep.subr.bf16.mxu0 0
        %352 = vmatpush1.bf16.msra.mxu0 0
        %353 = vmatprep.subr.bf16.mxu0 0
        %354 = vmatpush1.bf16.msra.mxu0 0
        %355 = vmatprep.subr.bf16.mxu0 0
        %356 = vmatpush1.bf16.msra.mxu0 0
        %357 = vmatprep.subr.bf16.mxu0 0
        %358 = vmatpush1.bf16.msra.mxu0 0
        %359 = vmatprep.subr.bf16.mxu0 %v295
        %360 = vmatpush1.bf16.msra.mxu0 %v294
        %361 = vmatprep.subr.bf16.mxu0 0
        %362 = vmatpush2.bf16.msra.mxu0 0
        %363 = vmatprep.subr.bf16.mxu0 0
        %364 = vmatpush2.bf16.msra.mxu0 0
        %365 = vmatprep.subr.bf16.mxu0 0
        %366 = vmatpush2.bf16.msra.mxu0 0
        %367 = vmatprep.subr.bf16.mxu0 0
        %368 = vmatpush2.bf16.msra.mxu0 0
        %369 = vmatprep.subr.bf16.mxu0 0
        %370 = vmatpush2.bf16.msra.mxu0 0
        %371 = vmatprep.subr.bf16.mxu0 0
        %372 = vmatpush2.bf16.msra.mxu0 0
        %373 = vmatprep.subr.bf16.mxu0 0
        %374 = vmatpush2.bf16.msra.mxu0 0
        %375 = vmatprep.subr.bf16.mxu0 0
        %376 = vmatpush2.bf16.msra.mxu0 0
        %377 = vmatprep.mubr.bf16.mxu0 0
        %378 = vmatmul.mubr.bf16.gmra.mxu0 %v302
        %v379 = vpop.f32.mrf.mxu0
        %v380 = vadd.f32 %v278, %v379
        %v381 = vpop.f32.mrf.mxu0
        %v382 = vadd.f32 %v278, %v381
        %v383 = vpop.f32.mrf.mxu0
        %v384 = vpop.f32.mrf.mxu0
        %385 = vdwg.mxu0
        %v386 = vmax.f32 %v339, 0.0
        %v387 = vmax.f32 %v341, 0.0
        %v388 = vmax.f32 %v380, 0.0
        %v389 = vmax.f32 %v382, 0.0
        %vm390 = vcmask 1042432
        %v391 = vsel %vm390, %v386, 0.0
        %v392 = vsel %vm390, %v387, 0.0
        %v393 = vadd.f32 %v391, %v392
        %v394 = vsel %vm390, %v388, 0.0
        %v395 = vadd.f32 %v393, %v394
        %v396 = vsel %vm390, %v389, 0.0
        %v397 = vadd.f32 %v395, %v396
        %398 = vadd.xlane.f32.xlu0 %v397
        %v399 = vpop.xlane.xlu0 %398
        %v400 = vmul.f32 %v386, %v386
        %v401 = vmul.f32 %v387, %v387
        %v402 = vmul.f32 %v388, %v388
        %v403 = vmul.f32 %v389, %v389
        %v404 = vsel %vm390, %v400, 0.0
        %v405 = vsel %vm390, %v401, 0.0
        %v406 = vadd.f32 %v404, %v405
        %v407 = vsel %vm390, %v402, 0.0
        %v408 = vadd.f32 %v406, %v407
        %v409 = vsel %vm390, %v403, 0.0
        %v410 = vadd.f32 %v408, %v409
        %411 = vadd.xlane.f32.xlu0 %v410
        %v412 = vpop.xlane.xlu0 %411
        %vm413 = vcmask 7168
        %v414 = vsel %vm413, %v399, %v412
        %vm415 = vcmask 10240
        %416 = vst.msk [vmem:[%s242] sm:$0x7] %vm415, %v414
        %v417 = vpack.c.bf16 %v386, %v386
        %v418 = vpack.c.bf16 %v387, %v387
        %v419 = vpack.c.bf16 %v388, %v388
        %v420 = vpack.c.bf16 %v389, %v389
        %v425 = vcombine.low %v417, %v418
        %v426 = vcombine.low %v419, %v420
        %v428 = vunpack.c.l.s4 1983009808
        %v429 = vunpack.c.0.s8 %v428
        %v430 = vlaneseq
        %v431 = vshrl.u32 %v430, 7
        %v432 = vsub.s32 %v429, %v431
        %v433 = vrot.slane %v425, %v432
        %v435 = vunpack.c.l.s4 1983009808
        %v436 = vunpack.c.0.s8 %v435
        %v437 = vlaneseq
        %v438 = vshrl.u32 %v437, 7
        %v439 = vsub.s32 %v436, %v438
        %v440 = vrot.slane %v426, %v439
        %v441 = vcombine.low %v433, %v440
        %vm443 = vcmask 1041408
        %vm444 = vsmask.f32 1280
        %vm445 = vmand %vm443, %vm444
        %vm446 = vcmask 1043458
        %vm447 = vsmask.f32 3328
        %vm448 = vmand %vm446, %vm447
        %vm449 = vmor %vm448, %vm445
        %vm450 = vcmask 1045508
        %vm451 = vsmask.f32 5376
        %vm452 = vmand %vm450, %vm451
        %vm453 = vmor %vm452, %vm449
        %vm454 = vcmask 1047558
        %vm455 = vsmask.f32 7424
        %vm456 = vmand %vm454, %vm455
        %vm457 = vmor %vm456, %vm453
        %v458 = vld [vmem:[%s265] sm:$0xff]
        %v459 = vsel %vm457, %v441, %v458
        %460 = vst [vmem:[%s265] sm:$0xff] %v459
        %s461 = smul.u32 4, %s24
        %p462 = scmp.lt.s32.totalorder %s23, 3
        %s463 = scalar_select %p462, %s23, 3
        %p464 = scmp.lt.s32.totalorder %s461, 3
        %s465 = scalar_select %p464, %s461, 3
        %s466 = smul.addr %s463, 4
        %s467 = sadd.s32 %s465, %s466
        %s468 = smul.addr %s467, 2
        %s469 = scalar_lea.vmem %s3, %s468
        %s470 = sand.u32 %s144, 1
        %s471 = scalar_lea.sflag [#allocation3], %s470
        %s472 = sand.u32 %s144, 1
        %s473 = smul.addr %s472, 4
        %s474 = scalar_lea.vmem [#allocation2], %s473
        // Predicated region
        $region33: #{aae_decoder_forward.10} parent=31 // pred_check
          %p475 = pneg %p126
        $region34: #{aae_decoder_forward.10} parent=31 // pred_check_branch
          %477 = sbr.rel (%p475) target = $region36
        $region35: #{aae_decoder_forward.10} parent=31 // pred_region
          %s478 = smul.u32 4, %s24
        $region36: #{aae_decoder_forward.10} parent=31 // pred_fallthru
          _
        // Predicated region
        $region37: #{aae_decoder_forward.10} parent=31 // pred_check
          %p479 = pneg %p154
        $region38: #{aae_decoder_forward.10} parent=31 // pred_check_branch
          %481 = sbr.rel (%p479) target = $region40
        $region39: #{aae_decoder_forward.10} parent=31 // pred_region
          %s482 = sadd.s32 %s23, %s24
          %s484 = ssub.s32 64, 64
          %485 = vsyncadd %s471, %s484
          %s486 = smul.addr %s482, 64
          %s487 = scalar_lea.hbm %s4, %s486
          %s489 = sshll.u32 %s474, 4
          %s490 = int_to_ptr.vmem [resolvable:$true] %s489
          %492 = dma.vmem_to_hbm [thread:$0]  %s490, 64, %s487, %s471
        $region40: #{aae_decoder_forward.10} parent=31 // pred_fallthru
          _
      $region32: #{aae_decoder_forward.10} parent=5 // pred_fallthru
        _
      %p493 = scmp.le.s32.totalorder 2, %s14
      // Predicated region
      $region41: #{aae_decoder_forward.10} parent=5 // pred_check
        %p494 = pneg %p493
      $region42: #{aae_decoder_forward.10} parent=5 // pred_check_branch
        %496 = sbr.rel (%p494) target = $region44
      $region43: #{aae_decoder_forward.10} parent=5 // pred_region
        %s497 = ssub.s32 %s14, 2
        // Predicated region
        $region45: #{aae_decoder_forward.10} parent=43 // pred_check
          %p498 = pneg %p132
        $region46: #{aae_decoder_forward.10} parent=43 // pred_check_branch
          %500 = sbr.rel (%p498) target = $region48
        $region47: #{aae_decoder_forward.10} parent=43 // pred_region
          %s501 = smul.u32 4, %s26
          %p502 = scmp.lt.s32.totalorder %s25, 3
          %s503 = scalar_select %p502, %s25, 3
          %p504 = scmp.lt.s32.totalorder %s501, 3
          %s505 = scalar_select %p504, %s501, 3
          %s506 = smul.addr %s503, 4
          %s507 = sadd.s32 %s505, %s506
          %s508 = smul.addr %s507, 2
          %s509 = scalar_lea.vmem %s3, %s508
        $region48: #{aae_decoder_forward.10} parent=43 // pred_fallthru
          _
        // Predicated region
        $region49: #{aae_decoder_forward.10} parent=43 // pred_check
          %p510 = pneg %p160
        $region50: #{aae_decoder_forward.10} parent=43 // pred_check_branch
          %512 = sbr.rel (%p510) target = $region52
        $region51: #{aae_decoder_forward.10} parent=43 // pred_region
          %s513 = sand.u32 %s145, 1
          %s514 = scalar_lea.sflag [#allocation3], %s513
          %s515 = sand.u32 %s145, 1
          %s516 = smul.addr %s515, 4
          %s517 = scalar_lea.vmem [#allocation2], %s516
          %518 = dma.done %s514, 64
        $region52: #{aae_decoder_forward.10} parent=43 // pred_fallthru
          _
      $region44: #{aae_decoder_forward.10} parent=5 // pred_fallthru
        _
    $region6: #{aae_decoder_forward.10} parent=1 // loop_footer
      %s18 = sadd.s32 1, %s14
    $region7: #{aae_decoder_forward.10} parent=1 // loop_footer_branch
      %13 = sbr.rel target = $region3
    $region8: #{aae_decoder_forward.10} parent=1 // loop_exit
      _
    %519 = vsyncpa [#allocation3], 1
    %s520 = scalar_lea.sflag [#allocation3], 1
    %521 = vsyncpa %s520, 1

// kernel: aae_decoder_forward.11
$region0: #{aae_decoder_forward.11}
  #allocation0 [shape = 'u32[]', space=smem, size = 0x4, offset = 0x4, fixed_abs, tag = 'smem constant byte address 0x4 - core index']
  #allocation1 [shape = 'u32[144,128]{1,0:T(1,128)}', space=vmem, size = 0x12000, scoped, tag = 'internal scratch']
  %s0 = inlined_call_operand.vmem [shape: bf16[1,3,3], index: 0, kind: input, shape index: {}]
  %s1 = inlined_call_operand.vmem [shape: bf16[1,3,2048], index: 1, kind: input, shape index: {}]
  %s2 = inlined_call_operand.vmem [shape: f32[3,1], index: 2, kind: input, shape index: {}]
  %s3 = inlined_call_operand.vmem [shape: f32[1,3,2048], index: 3, kind: output, shape index: {0}]
  %s4 = inlined_call_operand.hbm [shape: f32[4,3,2], index: 4, kind: output, shape index: {1}]
  %5 = xla_tuple %s3, %s4
  %s6 = sld [smem:[#allocation0]]
  $region53: #{aae_decoder_forward.11} parent=0
    _
  %s8 = ssub.s32 1, %s6
  %s9 = scalar_select 0, %s8, %s6
  $region1: #{aae_decoder_forward.11} parent=0
    #allocation2 [shape = 'u8[4096]{0}', space=vmem, size = 0x1000, scoped, tag = 'output window, operand 1']
    #allocation3 [shape = 's32[2]{0}', space=sflag, size = 0x8, scoped, tag = 'scoped memory for aae_decoder_forward.11']
    %10 = vsyncpa [#allocation3], 0
    %s11 = scalar_lea.sflag [#allocation3], 1
    %12 = vsyncpa %s11, 0
    loop: start=0, step=1, limit=6
    $region2: #{aae_decoder_forward.11} parent=1 // loop_pre_header
      _
    $region3: #{aae_decoder_forward.11} parent=1 // loop_header
      %s14 = sphi 0, %s18
      %p15 = scmp.ge.s32.totalorder %s14, 6
      %s21 = sphi 0, %s33
      %s22 = sphi 0, %s29
      %s23 = sphi 0, %s21
      %s24 = sphi 0, %s22
      %s25 = sphi 0, %s23
      %s26 = sphi 0, %s24
      %s36 = sphi 0, %s38
      %s39 = sphi 0, %s36
      %s40 = sphi 0, %s39
      %s56 = sphi 0, %s40
      %s64 = sphi 0, %s66
      %s67 = sphi 0, %s64
      %s68 = sphi 0, %s67
      %s84 = sphi 0, %s68
      %s88 = sphi 0, %s88
      %s90 = sphi 0, %s88
      %s91 = sphi 0, %s90
      %s105 = sphi 0, %s91
      %s113 = sphi 0, %s115
      %s116 = sphi 0, %s113
      %s117 = sphi 0, %s116
      %s133 = sphi 0, %s117
      %s143 = sphi 0, %s145
      %s146 = sphi 0, %s143
      %s147 = sphi 0, %s146
      %s163 = sphi 0, %s147
    $region4: #{aae_decoder_forward.11} parent=1 // loop_header_branch
      %17 = sbr.rel (%p15) target = $region8
    $region5: #{aae_decoder_forward.11} parent=1 // loop_body
      %s19 = ssub.s32 %s14, 1
      %s20 = ssub.s32 %s14, 2
      %s27 = sadd.s32 1, %s22
      %p28 = scmp.ge.s32.totalorder %s27, 4
      %s29 = scalar_select %p28, 0, %s27
      %s30 = sadd.s32 1, %s21
      %s31 = scalar_select %p28, %s30, %s21
      %p32 = scmp.ge.s32.totalorder %s31, 1
      %s33 = scalar_select %p32, 0, %s31
      %s34 = ssub.s32 %s21, %s33
      %p35 = scmp.eq.s32.totalorder %s34, 0
      %s37 = sadd.s32 %s36, 1
      %s38 = scalar_select %p35, %s36, %s37
      %p41 = pneg %p35
      %p42 = scmp.eq.s32.totalorder %s14, 3
      %p43 = por %p41, %p42
      %p44 = scmp.ne.s32.totalorder %s36, %s39
      %p45 = scmp.eq.s32.totalorder %s14, 0
      %p46 = por %p44, %p45
      %p47 = scmp.ne.s32.totalorder %s36, %s39
      %p48 = scmp.eq.s32.totalorder %s19, 3
      %p49 = por %p47, %p48
      %p50 = scmp.ne.s32.totalorder %s39, %s40
      %p51 = scmp.eq.s32.totalorder %s19, 0
      %p52 = por %p50, %p51
      %p53 = scmp.ne.s32.totalorder %s39, %s40
      %p54 = scmp.eq.s32.totalorder %s20, 3
      %p55 = por %p53, %p54
      %p57 = scmp.ne.s32.totalorder %s40, %s56
      %p58 = scmp.eq.s32.totalorder %s20, 0
      %p59 = por %p57, %p58
      %s60 = ssub.s32 %s21, %s33
      %s61 = ssub.s32 %s22, %s29
      %s62 = sor.u32 %s60, %s61
      %p63 = scmp.eq.s32.totalorder %s62, 0
      %s65 = sadd.s32 %s64, 1
      %s66 = scalar_select %p63, %s64, %s65
      %p69 = pneg %p63
      %p70 = scmp.eq.s32.totalorder %s14, 3
      %p71 = por %p69, %p70
      %p72 = scmp.ne.s32.totalorder %s64, %s67
      %p73 = scmp.eq.s32.totalorder %s14, 0
      %p74 = por %p72, %p73
      %p75 = scmp.ne.s32.totalorder %s64, %s67
      %p76 = scmp.eq.s32.totalorder %s19, 3
      %p77 = por %p75, %p76
      %p78 = scmp.ne.s32.totalorder %s67, %s68
      %p79 = scmp.eq.s32.totalorder %s19, 0
      %p80 = por %p78, %p79
      %p81 = scmp.ne.s32.totalorder %s67, %s68
      %p82 = scmp.eq.s32.totalorder %s20, 3
      %p83 = por %p81, %p82
      %p85 = scmp.ne.s32.totalorder %s68, %s84
      %p86 = scmp.eq.s32.totalorder %s20, 0
      %p87 = por %p85, %p86
      %s89 = sadd.s32 %s88, 1
      %p92 = scmp.eq.s32.totalorder %s14, 3
      %p93 = scmp.ne.s32.totalorder %s88, %s90
      %p94 = scmp.eq.s32.totalorder %s14, 0
      %p95 = por %p93, %p94
      %p96 = scmp.ne.s32.totalorder %s88, %s90
      %p97 = scmp.eq.s32.totalorder %s19, 3
      %p98 = por %p96, %p97
      %p99 = scmp.ne.s32.totalorder %s90, %s91
      %p100 = scmp.eq.s32.totalorder %s19, 0
      %p101 = por %p99, %p100
      %p102 = scmp.ne.s32.totalorder %s90, %s91
      %p103 = scmp.eq.s32.totalorder %s20, 3
      %p104 = por %p102, %p103
      %p106 = scmp.ne.s32.totalorder %s91, %s105
      %p107 = scmp.eq.s32.totalorder %s20, 0
      %p108 = por %p106, %p107
      %s109 = ssub.s32 %s21, %s33
      %s110 = ssub.s32 %s22, %s29
      %s111 = sor.u32 %s109, %s110
      %p112 = scmp.eq.s32.totalorder %s111, 0
      %s114 = sadd.s32 %s113, 1
      %s115 = scalar_select %p112, %s113, %s114
      %p118 = pneg %p112
      %p119 = scmp.eq.s32.totalorder %s14, 3
      %p120 = por %p118, %p119
      %p121 = scmp.ne.s32.totalorder %s113, %s116
      %p122 = scmp.eq.s32.totalorder %s14, 0
      %p123 = por %p121, %p122
      %p124 = scmp.ne.s32.totalorder %s113, %s116
      %p125 = scmp.eq.s32.totalorder %s19, 3
      %p126 = por %p124, %p125
      %p127 = scmp.ne.s32.totalorder %s116, %s117
      %p128 = scmp.eq.s32.totalorder %s19, 0
      %p129 = por %p127, %p128
      %p130 = scmp.ne.s32.totalorder %s116, %s117
      %p131 = scmp.eq.s32.totalorder %s20, 3
      %p132 = por %p130, %p131
      %p134 = scmp.ne.s32.totalorder %s117, %s133
      %p135 = scmp.eq.s32.totalorder %s20, 0
      %p136 = por %p134, %p135
      %s137 = smul.u32 %s21, 4
      %s138 = sadd.s32 %s137, %s22
      %s139 = smul.u32 %s33, 4
      %s140 = sadd.s32 %s139, %s29
      %s141 = ssub.s32 %s138, %s140
      %p142 = scmp.eq.s32.totalorder %s141, 0
      %s144 = sadd.s32 %s143, 1
      %s145 = scalar_select %p142, %s143, %s144
      %p148 = pneg %p142
      %p149 = scmp.eq.s32.totalorder %s14, 3
      %p150 = por %p148, %p149
      %p151 = scmp.ne.s32.totalorder %s143, %s146
      %p152 = scmp.eq.s32.totalorder %s14, 0
      %p153 = por %p151, %p152
      %p154 = scmp.ne.s32.totalorder %s143, %s146
      %p155 = scmp.eq.s32.totalorder %s19, 3
      %p156 = por %p154, %p155
      %p157 = scmp.ne.s32.totalorder %s146, %s147
      %p158 = scmp.eq.s32.totalorder %s19, 0
      %p159 = por %p157, %p158
      %p160 = scmp.ne.s32.totalorder %s146, %s147
      %p161 = scmp.eq.s32.totalorder %s20, 3
      %p162 = por %p160, %p161
      %p164 = scmp.ne.s32.totalorder %s147, %s163
      %p165 = scmp.eq.s32.totalorder %s20, 0
      %p166 = por %p164, %p165
      %p167 = scmp.le.s32.totalorder 1, %s14
      %p168 = scmp.lt.s32.totalorder %s14, 5
      %p169 = pnand %p167, %p168
      %p170 = pneg %p169
      // Predicated region
      $region9: #{aae_decoder_forward.11} parent=5 // pred_check
        _
      $region10: #{aae_decoder_forward.11} parent=5 // pred_check_branch
        %172 = sbr.rel (%p169) target = $region12
      $region11: #{aae_decoder_forward.11} parent=5 // pred_region
        %s173 = ssub.s32 %s14, 1
        // Predicated region
        $region13: #{aae_decoder_forward.11} parent=11 // pred_check
          %p174 = pneg %p52
        $region14: #{aae_decoder_forward.11} parent=11 // pred_check_branch
          %176 = sbr.rel (%p174) target = $region16
        $region15: #{aae_decoder_forward.11} parent=11 // pred_region
          %p177 = scmp.lt.s32.totalorder %s23, 0
          %s178 = scalar_select %p177, %s23, 0
          %s179 = smul.addr %s178, 2
          %s180 = scalar_lea.vmem %s0, %s179
        $region16: #{aae_decoder_forward.11} parent=11 // pred_fallthru
          _
        // Predicated region
        $region17: #{aae_decoder_forward.11} parent=11 // pred_check
          %p181 = pneg %p101
        $region18: #{aae_decoder_forward.11} parent=11 // pred_check_branch
          %183 = sbr.rel (%p181) target = $region20
        $region19: #{aae_decoder_forward.11} parent=11 // pred_region
          _
        $region20: #{aae_decoder_forward.11} parent=11 // pred_fallthru
          _
      $region12: #{aae_decoder_forward.11} parent=5 // pred_fallthru
        _
      %p184 = scmp.lt.s32.totalorder %s14, 4
      // Predicated region
      $region21: #{aae_decoder_forward.11} parent=5 // pred_check
        %p185 = pneg %p184
      $region22: #{aae_decoder_forward.11} parent=5 // pred_check_branch
        %187 = sbr.rel (%p185) target = $region24
      $region23: #{aae_decoder_forward.11} parent=5 // pred_region
        // Predicated region
        $region25: #{aae_decoder_forward.11} parent=23 // pred_check
          %p188 = pneg %p74
        $region26: #{aae_decoder_forward.11} parent=23 // pred_check_branch
          %190 = sbr.rel (%p188) target = $region28
        $region27: #{aae_decoder_forward.11} parent=23 // pred_region
          %s191 = smul.u32 4, %s22
          %p192 = scmp.lt.s32.totalorder %s21, 0
          %s193 = scalar_select %p192, %s21, 0
          %p194 = scmp.lt.s32.totalorder %s191, 15
          %s195 = scalar_select %p194, %s191, 15
          %s196 = smul.addr %s193, 16
          %s197 = sadd.s32 %s195, %s196
          %s198 = smul.addr %s197, 2
          %s199 = scalar_lea.vmem %s1, %s198
          %s200 = smul.u32 4, %s22
        $region28: #{aae_decoder_forward.11} parent=23 // pred_fallthru
          _
      $region24: #{aae_decoder_forward.11} parent=5 // pred_fallthru
        _
      %p201 = scmp.le.s32.totalorder 1, %s14
      %p202 = scmp.lt.s32.totalorder %s14, 5
      %p203 = pnand %p201, %p202
      %p204 = pneg %p203
      // Predicated region
      $region29: #{aae_decoder_forward.11} parent=5 // pred_check
        _
      $region30: #{aae_decoder_forward.11} parent=5 // pred_check_branch
        %206 = sbr.rel (%p203) target = $region32
      $region31: #{aae_decoder_forward.11} parent=5 // pred_region
        %s207 = ssub.s32 %s14, 1
        %p208 = scmp.lt.s32.totalorder %s23, 0
        %s209 = scalar_select %p208, %s23, 0
        %s210 = smul.addr %s209, 2
        %s211 = scalar_lea.vmem %s0, %s210
        %p212 = pneg %p52
        %p213 = pneg %p49
        %s214 = smul.u32 4, %s24
        %p215 = scmp.lt.s32.totalorder %s23, 0
        %s216 = scalar_select %p215, %s23, 0
        %p217 = scmp.lt.s32.totalorder %s214, 15
        %s218 = scalar_select %p217, %s214, 15
        %s219 = smul.addr %s216, 16
        %s220 = sadd.s32 %s218, %s219
        %s221 = smul.addr %s220, 2
        %s222 = scalar_lea.vmem %s1, %s221
        %p223 = pneg %p80
        %p224 = pneg %p77
        %p225 = pneg %p101
        %p226 = pneg %p98
        %p227 = pneg %p129
        %p228 = pneg %p126
        %s229 = smul.u32 4, %s24
        %p230 = scmp.lt.s32.totalorder %s23, 0
        %s231 = scalar_select %p230, %s23, 0
        %p232 = scmp.lt.s32.totalorder %s229, 15
        %s233 = scalar_select %p232, %s229, 15
        %s234 = smul.addr %s231, 16
        %s235 = sadd.s32 %s233, %s234
        %s236 = smul.addr %s235, 4
        %s237 = scalar_lea.vmem %s3, %s236
        %p238 = pneg %p159
        %p239 = pneg %p156
        %s240 = sand.u32 %s146, 1
        %s241 = scalar_lea.sflag [#allocation3], %s240
        %s242 = sand.u32 %s146, 1
        %s243 = smul.addr %s242, 4
        %s244 = scalar_lea.vmem [#allocation2], %s243
        %p245 = scmp.lt.s32.totalorder %s23, 0
        %s246 = scalar_select %p245, %s23, 0
        %s247 = smul.addr %s246, 2
        %s248 = scalar_lea.vmem %s0, %s247
        %s249 = smul.u32 4, %s24
        %p250 = scmp.lt.s32.totalorder %s23, 0
        %s251 = scalar_select %p250, %s23, 0
        %p252 = scmp.lt.s32.totalorder %s249, 15
        %s253 = scalar_select %p252, %s249, 15
        %s254 = smul.addr %s251, 16
        %s255 = sadd.s32 %s253, %s254
        %s256 = smul.addr %s255, 2
        %s257 = scalar_lea.vmem %s1, %s256
        %s258 = smul.u32 4, %s24
        %s259 = smul.u32 4, %s24
        %p260 = scmp.lt.s32.totalorder %s23, 0
        %s261 = scalar_select %p260, %s23, 0
        %p262 = scmp.lt.s32.totalorder %s259, 15
        %s263 = scalar_select %p262, %s259, 15
        %s264 = smul.addr %s261, 16
        %s265 = sadd.s32 %s263, %s264
        %s266 = smul.addr %s265, 4
        %s267 = scalar_lea.vmem %s3, %s266
        %s268 = smul.u32 4, %s24
        %s269 = smul.u32 %s23, 4
        %s270 = sadd.s32 %s269, %s24
        %v272 = vld [vmem:[%s248] sm:$0x3]
        %v273 = vld [vmem:[%s257] sm:$0xff]
        %v274 = vld [vmem:[%s2] sm:$0x7]
        %276 = vset.pattern.permute.xlu0 0
        %277 = vperm.xlu0 %276, %v274
        %v278 = vpop.permute.xlu0 %277
        %v281 = vcombine.high %v273, %v273
        %v283 = vunpack.c.l.s4 1983009808
        %v284 = vunpack.c.0.s8 %v283
        %v285 = vlaneseq
        %v286 = vshrl.u32 %v285, 7
        %v287 = vsub.s32 %v284, %v286
        %v288 = vrot.slane %v273, %v287
        %v290 = vunpack.c.l.s4 1983009808
        %v291 = vunpack.c.0.s8 %v290
        %v292 = vlaneseq
        %v293 = vshrl.u32 %v292, 7
        %v294 = vsub.s32 %v291, %v293
        %v295 = vrot.slane %v281, %v294
        %v296 = vcombine.high %v288, %v288
        %v297 = vcombine.high %v295, %v295
        %vm298 = vcmask 23552
        %v300 = vsel %vm298, %v272, 0
        %vm302 = vcmask 1040384
        %vm303 = vcmask 1041408
        %v304 = vsel %vm302, 4294967295, 65535
        %v305 = vsel %vm303, %v304, 0
        %v307 = vand.u32 %v288, %v305
        %v310 = vand.u32 %v296, %v305
        %v313 = vand.u32 %v295, %v305
        %v316 = vand.u32 %v297, %v305
        %318 = vmatprep.subr.bf16.mxu0 0
        %319 = vmatpush1.bf16.msra.mxu0 0
        %320 = vmatprep.subr.bf16.mxu0 0
        %321 = vmatpush1.bf16.msra.mxu0 0
        %322 = vmatprep.subr.bf16.mxu0 0
        %323 = vmatpush1.bf16.msra.mxu0 0
        %324 = vmatprep.subr.bf16.mxu0 0
        %325 = vmatpush1.bf16.msra.mxu0 0
        %326 = vmatprep.subr.bf16.mxu0 0
        %327 = vmatpush1.bf16.msra.mxu0 0
        %328 = vmatprep.subr.bf16.mxu0 0
        %329 = vmatpush1.bf16.msra.mxu0 0
        %330 = vmatprep.subr.bf16.mxu0 0
        %331 = vmatpush1.bf16.msra.mxu0 0
        %332 = vmatprep.subr.bf16.mxu0 %v310
        %333 = vmatpush1.bf16.msra.mxu0 %v307
        %334 = vmatprep.subr.bf16.mxu0 0
        %335 = vmatpush2.bf16.msra.mxu0 0
        %336 = vmatprep.subr.bf16.mxu0 0
        %337 = vmatpush2.bf16.msra.mxu0 0
        %338 = vmatprep.subr.bf16.mxu0 0
        %339 = vmatpush2.bf16.msra.mxu0 0
        %340 = vmatprep.subr.bf16.mxu0 0
        %341 = vmatpush2.bf16.msra.mxu0 0
        %342 = vmatprep.subr.bf16.mxu0 0
        %343 = vmatpush2.bf16.msra.mxu0 0
        %344 = vmatprep.subr.bf16.mxu0 0
        %345 = vmatpush2.bf16.msra.mxu0 0
        %346 = vmatprep.subr.bf16.mxu0 0
        %347 = vmatpush2.bf16.msra.mxu0 0
        %348 = vmatprep.subr.bf16.mxu0 0
        %349 = vmatpush2.bf16.msra.mxu0 0
        %350 = vmatprep.mubr.bf16.mxu0 0
        %351 = vmatmul.mubr.bf16.gmra.mxu0 %v300
        %v352 = vpop.f32.mrf.mxu0
        %v353 = vadd.f32 %v278, %v352
        %v354 = vpop.f32.mrf.mxu0
        %v355 = vadd.f32 %v278, %v354
        %v356 = vpop.f32.mrf.mxu0
        %v357 = vpop.f32.mrf.mxu0
        %358 = vdwg.mxu0
        %359 = vmatprep.subr.bf16.mxu0 0
        %360 = vmatpush1.bf16.msra.mxu0 0
        %361 = vmatprep.subr.bf16.mxu0 0
        %362 = vmatpush1.bf16.msra.mxu0 0
        %363 = vmatprep.subr.bf16.mxu0 0
        %364 = vmatpush1.bf16.msra.mxu0 0
        %365 = vmatprep.subr.bf16.mxu0 0
        %366 = vmatpush1.bf16.msra.mxu0 0
        %367 = vmatprep.subr.bf16.mxu0 0
        %368 = vmatpush1.bf16.msra.mxu0 0
        %369 = vmatprep.subr.bf16.mxu0 0
        %370 = vmatpush1.bf16.msra.mxu0 0
        %371 = vmatprep.subr.bf16.mxu0 0
        %372 = vmatpush1.bf16.msra.mxu0 0
        %373 = vmatprep.subr.bf16.mxu0 %v316
        %374 = vmatpush1.bf16.msra.mxu0 %v313
        %375 = vmatprep.subr.bf16.mxu0 0
        %376 = vmatpush2.bf16.msra.mxu0 0
        %377 = vmatprep.subr.bf16.mxu0 0
        %378 = vmatpush2.bf16.msra.mxu0 0
        %379 = vmatprep.subr.bf16.mxu0 0
        %380 = vmatpush2.bf16.msra.mxu0 0
        %381 = vmatprep.subr.bf16.mxu0 0
        %382 = vmatpush2.bf16.msra.mxu0 0
        %383 = vmatprep.subr.bf16.mxu0 0
        %384 = vmatpush2.bf16.msra.mxu0 0
        %385 = vmatprep.subr.bf16.mxu0 0
        %386 = vmatpush2.bf16.msra.mxu0 0
        %387 = vmatprep.subr.bf16.mxu0 0
        %388 = vmatpush2.bf16.msra.mxu0 0
        %389 = vmatprep.subr.bf16.mxu0 0
        %390 = vmatpush2.bf16.msra.mxu0 0
        %391 = vmatprep.mubr.bf16.mxu0 0
        %392 = vmatmul.mubr.bf16.gmra.mxu0 %v300
        %v393 = vpop.f32.mrf.mxu0
        %v394 = vadd.f32 %v278, %v393
        %v395 = vpop.f32.mrf.mxu0
        %v396 = vadd.f32 %v278, %v395
        %v397 = vpop.f32.mrf.mxu0
        %v398 = vpop.f32.mrf.mxu0
        %399 = vdwg.mxu0
        %vm400 = vcmask 1042432
        %v401 = vsel %vm400, %v353, 0.0
        %v402 = vsel %vm400, %v355, 0.0
        %v403 = vadd.f32 %v401, %v402
        %v404 = vsel %vm400, %v394, 0.0
        %v405 = vadd.f32 %v403, %v404
        %v406 = vsel %vm400, %v396, 0.0
        %v407 = vadd.f32 %v405, %v406
        %408 = vadd.xlane.f32.xlu0 %v407
        %v409 = vpop.xlane.xlu0 %408
        %v410 = vmul.f32 %v353, %v353
        %v411 = vmul.f32 %v355, %v355
        %v412 = vmul.f32 %v394, %v394
        %v413 = vmul.f32 %v396, %v396
        %v414 = vsel %vm400, %v410, 0.0
        %v415 = vsel %vm400, %v411, 0.0
        %v416 = vadd.f32 %v414, %v415
        %v417 = vsel %vm400, %v412, 0.0
        %v418 = vadd.f32 %v416, %v417
        %v419 = vsel %vm400, %v413, 0.0
        %v420 = vadd.f32 %v418, %v419
        %421 = vadd.xlane.f32.xlu0 %v420
        %v422 = vpop.xlane.xlu0 %421
        %vm423 = vcmask 7168
        %v424 = vsel %vm423, %v409, %v422
        %vm425 = vcmask 10240
        %426 = vst.msk [vmem:[%s244] sm:$0x7] %vm425, %v424
        %v431 = vcombine.low %v353, %v355
        %v432 = vcombine.low %v394, %v396
        %435 = vst [vmem:[%s267] sm:$0x77] %v431
        %436 = vst [vmem:[%s267 + $0x8] sm:$0x77] %v432
        %s437 = smul.u32 4, %s24
        %p438 = scmp.lt.s32.totalorder %s23, 0
        %s439 = scalar_select %p438, %s23, 0
        %p440 = scmp.lt.s32.totalorder %s437, 15
        %s441 = scalar_select %p440, %s437, 15
        %s442 = smul.addr %s439, 16
        %s443 = sadd.s32 %s441, %s442
        %s444 = smul.addr %s443, 4
        %s445 = scalar_lea.vmem %s3, %s444
        %s446 = sand.u32 %s146, 1
        %s447 = scalar_lea.sflag [#allocation3], %s446
        %s448 = sand.u32 %s146, 1
        %s449 = smul.addr %s448, 4
        %s450 = scalar_lea.vmem [#allocation2], %s449
        // Predicated region
        $region33: #{aae_decoder_forward.11} parent=31 // pred_check
          %p451 = pneg %p126
        $region34: #{aae_decoder_forward.11} parent=31 // pred_check_branch
          %453 = sbr.rel (%p451) target = $region36
        $region35: #{aae_decoder_forward.11} parent=31 // pred_region
          %s454 = smul.u32 4, %s24
        $region36: #{aae_decoder_forward.11} parent=31 // pred_fallthru
          _
        // Predicated region
        $region37: #{aae_decoder_forward.11} parent=31 // pred_check
          %p455 = pneg %p156
        $region38: #{aae_decoder_forward.11} parent=31 // pred_check_branch
          %457 = sbr.rel (%p455) target = $region40
        $region39: #{aae_decoder_forward.11} parent=31 // pred_region
          %s458 = smul.u32 %s23, 4
          %s459 = sadd.s32 %s458, %s24
          %s461 = ssub.s32 64, 64
          %462 = vsyncadd %s447, %s461
          %s463 = smul.addr %s459, 64
          %s464 = scalar_lea.hbm %s4, %s463
          %s466 = sshll.u32 %s450, 4
          %s467 = int_to_ptr.vmem [resolvable:$true] %s466
          %469 = dma.vmem_to_hbm [thread:$0]  %s467, 64, %s464, %s447
        $region40: #{aae_decoder_forward.11} parent=31 // pred_fallthru
          _
      $region32: #{aae_decoder_forward.11} parent=5 // pred_fallthru
        _
      %p470 = scmp.le.s32.totalorder 2, %s14
      // Predicated region
      $region41: #{aae_decoder_forward.11} parent=5 // pred_check
        %p471 = pneg %p470
      $region42: #{aae_decoder_forward.11} parent=5 // pred_check_branch
        %473 = sbr.rel (%p471) target = $region44
      $region43: #{aae_decoder_forward.11} parent=5 // pred_region
        %s474 = ssub.s32 %s14, 2
        // Predicated region
        $region45: #{aae_decoder_forward.11} parent=43 // pred_check
          %p475 = pneg %p132
        $region46: #{aae_decoder_forward.11} parent=43 // pred_check_branch
          %477 = sbr.rel (%p475) target = $region48
        $region47: #{aae_decoder_forward.11} parent=43 // pred_region
          %s478 = smul.u32 4, %s26
          %p479 = scmp.lt.s32.totalorder %s25, 0
          %s480 = scalar_select %p479, %s25, 0
          %p481 = scmp.lt.s32.totalorder %s478, 15
          %s482 = scalar_select %p481, %s478, 15
          %s483 = smul.addr %s480, 16
          %s484 = sadd.s32 %s482, %s483
          %s485 = smul.addr %s484, 4
          %s486 = scalar_lea.vmem %s3, %s485
        $region48: #{aae_decoder_forward.11} parent=43 // pred_fallthru
          _
        // Predicated region
        $region49: #{aae_decoder_forward.11} parent=43 // pred_check
          %p487 = pneg %p162
        $region50: #{aae_decoder_forward.11} parent=43 // pred_check_branch
          %489 = sbr.rel (%p487) target = $region52
        $region51: #{aae_decoder_forward.11} parent=43 // pred_region
          %s490 = sand.u32 %s147, 1
          %s491 = scalar_lea.sflag [#allocation3], %s490
          %s492 = sand.u32 %s147, 1
          %s493 = smul.addr %s492, 4
          %s494 = scalar_lea.vmem [#allocation2], %s493
          %495 = dma.done %s491, 64
        $region52: #{aae_decoder_forward.11} parent=43 // pred_fallthru
          _
      $region44: #{aae_decoder_forward.11} parent=5 // pred_fallthru
        _
    $region6: #{aae_decoder_forward.11} parent=1 // loop_footer
      %s18 = sadd.s32 1, %s14
    $region7: #{aae_decoder_forward.11} parent=1 // loop_footer_branch
      %13 = sbr.rel target = $region3
    $region8: #{aae_decoder_forward.11} parent=1 // loop_exit
      _
    %496 = vsyncpa [#allocation3], 1
    %s497 = scalar_lea.sflag [#allocation3], 1
    %498 = vsyncpa %s497, 1

// kernel: squeeze.123
$region0: #{squeeze.123}
  %s0 = inlined_call_operand.vmem [shape: f32[1,3,2048], index: 0, kind: input, shape index: {}]
  %s1 = inlined_call_operand.vmem [shape: f32[3,2,32,32], index: 1, kind: output, shape index: {}]
  $region1: #{squeeze.123} parent=0
    #allocation0 [shape = 'u8[65536]{0}', space=vmem, size = 0x10000, scoped, tag = 'scoped mem for input reshape']
    %s3 = sshll.u32 1, 4
    %s4 = ssub.s32 %s3, 1
    %s5 = smul.addr 4, 15
    %s6 = scalar_lea.vmem %s0, %s5
    %v7 = vld [vmem:[%s6] sm:%s4]
    %s8 = scalar_lea.vmem [#allocation0], 120
    %9 = vst [vmem:[%s8] sm:%s4] %v7
    %s10 = smul.addr 4, 14
    %s11 = scalar_lea.vmem %s0, %s10
    %v12 = vld [vmem:[%s11] sm:%s4]
    %s13 = scalar_lea.vmem [#allocation0], 112
    %14 = vst [vmem:[%s13] sm:%s4] %v12
    %s15 = smul.addr 4, 13
    %s16 = scalar_lea.vmem %s0, %s15
    %v17 = vld [vmem:[%s16] sm:%s4]
    %s18 = scalar_lea.vmem [#allocation0], 104
    %19 = vst [vmem:[%s18] sm:%s4] %v17
    %s20 = smul.addr 4, 12
    %s21 = scalar_lea.vmem %s0, %s20
    %v22 = vld [vmem:[%s21] sm:%s4]
    %s23 = scalar_lea.vmem [#allocation0], 96
    %24 = vst [vmem:[%s23] sm:%s4] %v22
    %s25 = smul.addr 4, 11
    %s26 = scalar_lea.vmem %s0, %s25
    %v27 = vld [vmem:[%s26] sm:%s4]
    %s28 = scalar_lea.vmem [#allocation0], 88
    %29 = vst [vmem:[%s28] sm:%s4] %v27
    %s30 = smul.addr 4, 10
    %s31 = scalar_lea.vmem %s0, %s30
    %v32 = vld [vmem:[%s31] sm:%s4]
    %s33 = scalar_lea.vmem [#allocation0], 80
    %34 = vst [vmem:[%s33] sm:%s4] %v32
    %s35 = smul.addr 4, 9
    %s36 = scalar_lea.vmem %s0, %s35
    %v37 = vld [vmem:[%s36] sm:%s4]
    %s38 = scalar_lea.vmem [#allocation0], 72
    %39 = vst [vmem:[%s38] sm:%s4] %v37
    %s40 = smul.addr 4, 8
    %s41 = scalar_lea.vmem %s0, %s40
    %v42 = vld [vmem:[%s41] sm:%s4]
    %s43 = scalar_lea.vmem [#allocation0], 64
    %44 = vst [vmem:[%s43] sm:%s4] %v42
    %s45 = smul.addr 4, 7
    %s46 = scalar_lea.vmem %s0, %s45
    %v47 = vld [vmem:[%s46] sm:%s4]
    %s48 = scalar_lea.vmem [#allocation0], 56
    %49 = vst [vmem:[%s48] sm:%s4] %v47
    %s50 = smul.addr 4, 6
    %s51 = scalar_lea.vmem %s0, %s50
    %v52 = vld [vmem:[%s51] sm:%s4]
    %s53 = scalar_lea.vmem [#allocation0], 48
    %54 = vst [vmem:[%s53] sm:%s4] %v52
    %s55 = smul.addr 4, 5
    %s56 = scalar_lea.vmem %s0, %s55
    %v57 = vld [vmem:[%s56] sm:%s4]
    %s58 = scalar_lea.vmem [#allocation0], 40
    %59 = vst [vmem:[%s58] sm:%s4] %v57
    %s60 = smul.addr 4, 4
    %s61 = scalar_lea.vmem %s0, %s60
    %v62 = vld [vmem:[%s61] sm:%s4]
    %s63 = scalar_lea.vmem [#allocation0], 32
    %64 = vst [vmem:[%s63] sm:%s4] %v62
    %s65 = smul.addr 4, 3
    %s66 = scalar_lea.vmem %s0, %s65
    %v67 = vld [vmem:[%s66] sm:%s4]
    %s68 = scalar_lea.vmem [#allocation0], 24
    %69 = vst [vmem:[%s68] sm:%s4] %v67
    %s70 = smul.addr 4, 2
    %s71 = scalar_lea.vmem %s0, %s70
    %v72 = vld [vmem:[%s71] sm:%s4]
    %s73 = scalar_lea.vmem [#allocation0], 16
    %74 = vst [vmem:[%s73] sm:%s4] %v72
    %s75 = scalar_lea.vmem %s0, 4
    %v76 = vld [vmem:[%s75] sm:%s4]
    %s77 = scalar_lea.vmem [#allocation0], 8
    %78 = vst [vmem:[%s77] sm:%s4] %v76
    %v79 = vld [vmem:[%s0] sm:%s4]
    %80 = vst [vmem:[#allocation0] sm:%s4] %v79
    %v81 = vld [vmem:[#allocation0] sm:$0x7]
    %vm82 = vcmask 261120
    %83 = vst.msk [vmem:[%s1] sm:$0x1] %vm82, %v81
    %s84 = scalar_lea.vmem %s1, 63
    %85 = vst.msk [vmem:[%s84] sm:$0x2] %vm82, %v81
    %s86 = scalar_lea.vmem %s1, 126
    %87 = vst.msk [vmem:[%s86] sm:$0x4] %vm82, %v81
    %s88 = scalar_lea.vmem [#allocation0], 8
    %v89 = vld [vmem:[%s88] sm:$0x7]
    %vm90 = vcmask 261120
    %s91 = scalar_lea.vmem %s1, 4
    %92 = vst.msk [vmem:[%s91] sm:$0x1] %vm90, %v89
    %s93 = scalar_lea.vmem %s1, 67
    %94 = vst.msk [vmem:[%s93] sm:$0x2] %vm90, %v89
    %s95 = scalar_lea.vmem %s1, 130
    %96 = vst.msk [vmem:[%s95] sm:$0x4] %vm90, %v89
    %s97 = scalar_lea.vmem [#allocation0], 16
    %v98 = vld [vmem:[%s97] sm:$0x7]
    %vm99 = vcmask 261120
    %s100 = scalar_lea.vmem %s1, 8
    %101 = vst.msk [vmem:[%s100] sm:$0x1] %vm99, %v98
    %s102 = scalar_lea.vmem %s1, 71
    %103 = vst.msk [vmem:[%s102] sm:$0x2] %vm99, %v98
    %s104 = scalar_lea.vmem %s1, 134
    %105 = vst.msk [vmem:[%s104] sm:$0x4] %vm99, %v98
    %s106 = scalar_lea.vmem [#allocation0], 24
    %v107 = vld [vmem:[%s106] sm:$0x7]
    %vm108 = vcmask 261120
    %s109 = scalar_lea.vmem %s1, 12
    %110 = vst.msk [vmem:[%s109] sm:$0x1] %vm108, %v107
    %s111 = scalar_lea.vmem %s1, 75
    %112 = vst.msk [vmem:[%s111] sm:$0x2] %vm108, %v107
    %s113 = scalar_lea.vmem %s1, 138
    %114 = vst.msk [vmem:[%s113] sm:$0x4] %vm108, %v107
    %s115 = scalar_lea.vmem [#allocation0], 32
    %v116 = vld [vmem:[%s115] sm:$0x7]
    %vm117 = vcmask 261120
    %s118 = scalar_lea.vmem %s1, 16
    %119 = vst.msk [vmem:[%s118] sm:$0x1] %vm117, %v116
    %s120 = scalar_lea.vmem %s1, 79
    %121 = vst.msk [vmem:[%s120] sm:$0x2] %vm117, %v116
    %s122 = scalar_lea.vmem %s1, 142
    %123 = vst.msk [vmem:[%s122] sm:$0x4] %vm117, %v116
    %s124 = scalar_lea.vmem [#allocation0], 40
    %v125 = vld [vmem:[%s124] sm:$0x7]
    %vm126 = vcmask 261120
    %s127 = scalar_lea.vmem %s1, 20
    %128 = vst.msk [vmem:[%s127] sm:$0x1] %vm126, %v125
    %s129 = scalar_lea.vmem %s1, 83
    %130 = vst.msk [vmem:[%s129] sm:$0x2] %vm126, %v125
    %s131 = scalar_lea.vmem %s1, 146
    %132 = vst.msk [vmem:[%s131] sm:$0x4] %vm126, %v125
    %s133 = scalar_lea.vmem [#allocation0], 48
    %v134 = vld [vmem:[%s133] sm:$0x7]
    %vm135 = vcmask 261120
    %s136 = scalar_lea.vmem %s1, 24
    %137 = vst.msk [vmem:[%s136] sm:$0x1] %vm135, %v134
    %s138 = scalar_lea.vmem %s1, 87
    %139 = vst.msk [vmem:[%s138] sm:$0x2] %vm135, %v134
    %s140 = scalar_lea.vmem %s1, 150
    %141 = vst.msk [vmem:[%s140] sm:$0x4] %vm135, %v134
    %s142 = scalar_lea.vmem [#allocation0], 56
    %v143 = vld [vmem:[%s142] sm:$0x7]
    %vm144 = vcmask 261120
    %s145 = scalar_lea.vmem %s1, 28
    %146 = vst.msk [vmem:[%s145] sm:$0x1] %vm144, %v143
    %s147 = scalar_lea.vmem %s1, 91
    %148 = vst.msk [vmem:[%s147] sm:$0x2] %vm144, %v143
    %s149 = scalar_lea.vmem %s1, 154
    %150 = vst.msk [vmem:[%s149] sm:$0x4] %vm144, %v143
    %s151 = scalar_lea.vmem [#allocation0], 64
    %v152 = vld [vmem:[%s151] sm:$0x7]
    %vm153 = vcmask 261120
    %s154 = scalar_lea.vmem %s1, 32
    %155 = vst.msk [vmem:[%s154] sm:$0x1] %vm153, %v152
    %s156 = scalar_lea.vmem %s1, 95
    %157 = vst.msk [vmem:[%s156] sm:$0x2] %vm153, %v152
    %s158 = scalar_lea.vmem %s1, 158
    %159 = vst.msk [vmem:[%s158] sm:$0x4] %vm153, %v152
    %s160 = scalar_lea.vmem [#allocation0], 72
    %v161 = vld [vmem:[%s160] sm:$0x7]
    %vm162 = vcmask 261120
    %s163 = scalar_lea.vmem %s1, 36
    %164 = vst.msk [vmem:[%s163] sm:$0x1] %vm162, %v161
    %s165 = scalar_lea.vmem %s1, 99
    %166 = vst.msk [vmem:[%s165] sm:$0x2] %vm162, %v161
    %s167 = scalar_lea.vmem %s1, 162
    %168 = vst.msk [vmem:[%s167] sm:$0x4] %vm162, %v161
    %s169 = scalar_lea.vmem [#allocation0], 80
    %v170 = vld [vmem:[%s169] sm:$0x7]
    %vm171 = vcmask 261120
    %s172 = scalar_lea.vmem %s1, 40
    %173 = vst.msk [vmem:[%s172] sm:$0x1] %vm171, %v170
    %s174 = scalar_lea.vmem %s1, 103
    %175 = vst.msk [vmem:[%s174] sm:$0x2] %vm171, %v170
    %s176 = scalar_lea.vmem %s1, 166
    %177 = vst.msk [vmem:[%s176] sm:$0x4] %vm171, %v170
    %s178 = scalar_lea.vmem [#allocation0], 88
    %v179 = vld [vmem:[%s178] sm:$0x7]
    %vm180 = vcmask 261120
    %s181 = scalar_lea.vmem %s1, 44
    %182 = vst.msk [vmem:[%s181] sm:$0x1] %vm180, %v179
    %s183 = scalar_lea.vmem %s1, 107
    %184 = vst.msk [vmem:[%s183] sm:$0x2] %vm180, %v179
    %s185 = scalar_lea.vmem %s1, 170
    %186 = vst.msk [vmem:[%s185] sm:$0x4] %vm180, %v179
    %s187 = scalar_lea.vmem [#allocation0], 96
    %v188 = vld [vmem:[%s187] sm:$0x7]
    %vm189 = vcmask 261120
    %s190 = scalar_lea.vmem %s1, 48
    %191 = vst.msk [vmem:[%s190] sm:$0x1] %vm189, %v188
    %s192 = scalar_lea.vmem %s1, 111
    %193 = vst.msk [vmem:[%s192] sm:$0x2] %vm189, %v188
    %s194 = scalar_lea.vmem %s1, 174
    %195 = vst.msk [vmem:[%s194] sm:$0x4] %vm189, %v188
    %s196 = scalar_lea.vmem [#allocation0], 104
    %v197 = vld [vmem:[%s196] sm:$0x7]
    %vm198 = vcmask 261120
    %s199 = scalar_lea.vmem %s1, 52
    %200 = vst.msk [vmem:[%s199] sm:$0x1] %vm198, %v197
    %s201 = scalar_lea.vmem %s1, 115
    %202 = vst.msk [vmem:[%s201] sm:$0x2] %vm198, %v197
    %s203 = scalar_lea.vmem %s1, 178
    %204 = vst.msk [vmem:[%s203] sm:$0x4] %vm198, %v197
    %s205 = scalar_lea.vmem [#allocation0], 112
    %v206 = vld [vmem:[%s205] sm:$0x7]
    %vm207 = vcmask 261120
    %s208 = scalar_lea.vmem %s1, 56
    %209 = vst.msk [vmem:[%s208] sm:$0x1] %vm207, %v206
    %s210 = scalar_lea.vmem %s1, 119
    %211 = vst.msk [vmem:[%s210] sm:$0x2] %vm207, %v206
    %s212 = scalar_lea.vmem %s1, 182
    %213 = vst.msk [vmem:[%s212] sm:$0x4] %vm207, %v206
    %s214 = scalar_lea.vmem [#allocation0], 120
    %v215 = vld [vmem:[%s214] sm:$0x7]
    %vm216 = vcmask 261120
    %s217 = scalar_lea.vmem %s1, 60
    %218 = vst.msk [vmem:[%s217] sm:$0x1] %vm216, %v215
    %s219 = scalar_lea.vmem %s1, 123
    %220 = vst.msk [vmem:[%s219] sm:$0x2] %vm216, %v215
    %s221 = scalar_lea.vmem %s1, 186
    %222 = vst.msk [vmem:[%s221] sm:$0x4] %vm216, %v215
    %v223 = vld [vmem:[#allocation0] ss:$8 sm:$0xf]
    %v224 = vld [vmem:[#allocation0] ss:$8 sm:$0xf0]
    %vm225 = vcmask 1047556
    %v226 = vsel %vm225, %v224, %v223
    %227 = vrot.lane.b32.xlu0 %v226, 96
    %v228 = vpop.permute.xlu0 %227
    %vm229 = vcmask 261120
    %s230 = scalar_lea.vmem %s1, 1
    %231 = vst.msk [vmem:[%s230] ss:$4 sm:$0xff] %vm229, %v228
    %s232 = scalar_lea.vmem [#allocation0], 1
    %v233 = vld [vmem:[%s232] ss:$8 sm:$0xf]
    %s234 = scalar_lea.vmem [#allocation0], 1
    %v235 = vld [vmem:[%s234] ss:$8 sm:$0xf0]
    %vm236 = vcmask 1047556
    %v237 = vsel %vm236, %v235, %v233
    %238 = vrot.lane.b32.xlu0 %v237, 96
    %v239 = vpop.permute.xlu0 %238
    %vm240 = vcmask 261120
    %s241 = scalar_lea.vmem %s1, 65
    %242 = vst.msk [vmem:[%s241] ss:$4 sm:$0xff] %vm240, %v239
    %s243 = scalar_lea.vmem [#allocation0], 2
    %v244 = vld [vmem:[%s243] ss:$8 sm:$0xf]
    %s245 = scalar_lea.vmem [#allocation0], 2
    %v246 = vld [vmem:[%s245] ss:$8 sm:$0xf0]
    %vm247 = vcmask 1047556
    %v248 = vsel %vm247, %v246, %v244
    %249 = vrot.lane.b32.xlu0 %v248, 96
    %v250 = vpop.permute.xlu0 %249
    %vm251 = vcmask 261120
    %s252 = scalar_lea.vmem %s1, 129
    %253 = vst.msk [vmem:[%s252] ss:$4 sm:$0xff] %vm251, %v250
    %s254 = scalar_lea.vmem [#allocation0], 64
    %v255 = vld [vmem:[%s254] ss:$8 sm:$0xf]
    %s256 = scalar_lea.vmem [#allocation0], 64
    %v257 = vld [vmem:[%s256] ss:$8 sm:$0xf0]
    %vm258 = vcmask 1047556
    %v259 = vsel %vm258, %v257, %v255
    %260 = vrot.lane.b32.xlu0 %v259, 96
    %v261 = vpop.permute.xlu0 %260
    %vm262 = vcmask 261120
    %s263 = scalar_lea.vmem %s1, 33
    %264 = vst.msk [vmem:[%s263] ss:$4 sm:$0xff] %vm262, %v261
    %s265 = scalar_lea.vmem [#allocation0], 65
    %v266 = vld [vmem:[%s265] ss:$8 sm:$0xf]
    %s267 = scalar_lea.vmem [#allocation0], 65
    %v268 = vld [vmem:[%s267] ss:$8 sm:$0xf0]
    %vm269 = vcmask 1047556
    %v270 = vsel %vm269, %v268, %v266
    %271 = vrot.lane.b32.xlu0 %v270, 96
    %v272 = vpop.permute.xlu0 %271
    %vm273 = vcmask 261120
    %s274 = scalar_lea.vmem %s1, 97
    %275 = vst.msk [vmem:[%s274] ss:$4 sm:$0xff] %vm273, %v272
    %s276 = scalar_lea.vmem [#allocation0], 66
    %v277 = vld [vmem:[%s276] ss:$8 sm:$0xf]
    %s278 = scalar_lea.vmem [#allocation0], 66
    %v279 = vld [vmem:[%s278] ss:$8 sm:$0xf0]
    %vm280 = vcmask 1047556
    %v281 = vsel %vm280, %v279, %v277
    %282 = vrot.lane.b32.xlu0 %v281, 96
    %v283 = vpop.permute.xlu0 %282
    %vm284 = vcmask 261120
    %s285 = scalar_lea.vmem %s1, 161
    %286 = vst.msk [vmem:[%s285] ss:$4 sm:$0xff] %vm284, %v283
    %v287 = vld [vmem:[#allocation0] ss:$8 sm:$0xf]
    %v288 = vld [vmem:[#allocation0] ss:$8 sm:$0xf0]
    %vm289 = vcmask 1047556
    %v290 = vsel %vm289, %v288, %v287
    %291 = vrot.lane.b32.xlu0 %v290, 64
    %v292 = vpop.permute.xlu0 %291
    %vm293 = vcmask 261120
    %s294 = scalar_lea.vmem %s1, 2
    %295 = vst.msk [vmem:[%s294] ss:$4 sm:$0xff] %vm293, %v292
    %s296 = scalar_lea.vmem [#allocation0], 1
    %v297 = vld [vmem:[%s296] ss:$8 sm:$0xf]
    %s298 = scalar_lea.vmem [#allocation0], 1
    %v299 = vld [vmem:[%s298] ss:$8 sm:$0xf0]
    %vm300 = vcmask 1047556
    %v301 = vsel %vm300, %v299, %v297
    %302 = vrot.lane.b32.xlu0 %v301, 64
    %v303 = vpop.permute.xlu0 %302
    %vm304 = vcmask 261120
    %s305 = scalar_lea.vmem %s1, 66
    %306 = vst.msk [vmem:[%s305] ss:$4 sm:$0xff] %vm304, %v303
    %s307 = scalar_lea.vmem [#allocation0], 2
    %v308 = vld [vmem:[%s307] ss:$8 sm:$0xf]
    %s309 = scalar_lea.vmem [#allocation0], 2
    %v310 = vld [vmem:[%s309] ss:$8 sm:$0xf0]
    %vm311 = vcmask 1047556
    %v312 = vsel %vm311, %v310, %v308
    %313 = vrot.lane.b32.xlu0 %v312, 64
    %v314 = vpop.permute.xlu0 %313
    %vm315 = vcmask 261120
    %s316 = scalar_lea.vmem %s1, 130
    %317 = vst.msk [vmem:[%s316] ss:$4 sm:$0xff] %vm315, %v314
    %s318 = scalar_lea.vmem [#allocation0], 64
    %v319 = vld [vmem:[%s318] ss:$8 sm:$0xf]
    %s320 = scalar_lea.vmem [#allocation0], 64
    %v321 = vld [vmem:[%s320] ss:$8 sm:$0xf0]
    %vm322 = vcmask 1047556
    %v323 = vsel %vm322, %v321, %v319
    %324 = vrot.lane.b32.xlu0 %v323, 64
    %v325 = vpop.permute.xlu0 %324
    %vm326 = vcmask 261120
    %s327 = scalar_lea.vmem %s1, 34
    %328 = vst.msk [vmem:[%s327] ss:$4 sm:$0xff] %vm326, %v325
    %s329 = scalar_lea.vmem [#allocation0], 65
    %v330 = vld [vmem:[%s329] ss:$8 sm:$0xf]
    %s331 = scalar_lea.vmem [#allocation0], 65
    %v332 = vld [vmem:[%s331] ss:$8 sm:$0xf0]
    %vm333 = vcmask 1047556
    %v334 = vsel %vm333, %v332, %v330
    %335 = vrot.lane.b32.xlu0 %v334, 64
    %v336 = vpop.permute.xlu0 %335
    %vm337 = vcmask 261120
    %s338 = scalar_lea.vmem %s1, 98
    %339 = vst.msk [vmem:[%s338] ss:$4 sm:$0xff] %vm337, %v336
    %s340 = scalar_lea.vmem [#allocation0], 66
    %v341 = vld [vmem:[%s340] ss:$8 sm:$0xf]
    %s342 = scalar_lea.vmem [#allocation0], 66
    %v343 = vld [vmem:[%s342] ss:$8 sm:$0xf0]
    %vm344 = vcmask 1047556
    %v345 = vsel %vm344, %v343, %v341
    %346 = vrot.lane.b32.xlu0 %v345, 64
    %v347 = vpop.permute.xlu0 %346
    %vm348 = vcmask 261120
    %s349 = scalar_lea.vmem %s1, 162
    %350 = vst.msk [vmem:[%s349] ss:$4 sm:$0xff] %vm348, %v347
    %v351 = vld [vmem:[#allocation0] ss:$8 sm:$0xf]
    %v352 = vld [vmem:[#allocation0] ss:$8 sm:$0xf0]
    %vm353 = vcmask 1047556
    %v354 = vsel %vm353, %v352, %v351
    %355 = vrot.lane.b32.xlu0 %v354, 32
    %v356 = vpop.permute.xlu0 %355
    %vm357 = vcmask 261120
    %s358 = scalar_lea.vmem %s1, 3
    %359 = vst.msk [vmem:[%s358] ss:$4 sm:$0xff] %vm357, %v356
    %s360 = scalar_lea.vmem [#allocation0], 1
    %v361 = vld [vmem:[%s360] ss:$8 sm:$0xf]
    %s362 = scalar_lea.vmem [#allocation0], 1
    %v363 = vld [vmem:[%s362] ss:$8 sm:$0xf0]
    %vm364 = vcmask 1047556
    %v365 = vsel %vm364, %v363, %v361
    %366 = vrot.lane.b32.xlu0 %v365, 32
    %v367 = vpop.permute.xlu0 %366
    %vm368 = vcmask 261120
    %s369 = scalar_lea.vmem %s1, 67
    %370 = vst.msk [vmem:[%s369] ss:$4 sm:$0xff] %vm368, %v367
    %s371 = scalar_lea.vmem [#allocation0], 2
    %v372 = vld [vmem:[%s371] ss:$8 sm:$0xf]
    %s373 = scalar_lea.vmem [#allocation0], 2
    %v374 = vld [vmem:[%s373] ss:$8 sm:$0xf0]
    %vm375 = vcmask 1047556
    %v376 = vsel %vm375, %v374, %v372
    %377 = vrot.lane.b32.xlu0 %v376, 32
    %v378 = vpop.permute.xlu0 %377
    %vm379 = vcmask 261120
    %s380 = scalar_lea.vmem %s1, 131
    %381 = vst.msk [vmem:[%s380] ss:$4 sm:$0xff] %vm379, %v378
    %s382 = scalar_lea.vmem [#allocation0], 64
    %v383 = vld [vmem:[%s382] ss:$8 sm:$0xf]
    %s384 = scalar_lea.vmem [#allocation0], 64
    %v385 = vld [vmem:[%s384] ss:$8 sm:$0xf0]
    %vm386 = vcmask 1047556
    %v387 = vsel %vm386, %v385, %v383
    %388 = vrot.lane.b32.xlu0 %v387, 32
    %v389 = vpop.permute.xlu0 %388
    %vm390 = vcmask 261120
    %s391 = scalar_lea.vmem %s1, 35
    %392 = vst.msk [vmem:[%s391] ss:$4 sm:$0xff] %vm390, %v389
    %s393 = scalar_lea.vmem [#allocation0], 65
    %v394 = vld [vmem:[%s393] ss:$8 sm:$0xf]
    %s395 = scalar_lea.vmem [#allocation0], 65
    %v396 = vld [vmem:[%s395] ss:$8 sm:$0xf0]
    %vm397 = vcmask 1047556
    %v398 = vsel %vm397, %v396, %v394
    %399 = vrot.lane.b32.xlu0 %v398, 32
    %v400 = vpop.permute.xlu0 %399
    %vm401 = vcmask 261120
    %s402 = scalar_lea.vmem %s1, 99
    %403 = vst.msk [vmem:[%s402] ss:$4 sm:$0xff] %vm401, %v400
    %s404 = scalar_lea.vmem [#allocation0], 66
    %v405 = vld [vmem:[%s404] ss:$8 sm:$0xf]
    %s406 = scalar_lea.vmem [#allocation0], 66
    %v407 = vld [vmem:[%s406] ss:$8 sm:$0xf0]
    %vm408 = vcmask 1047556
    %v409 = vsel %vm408, %v407, %v405
    %410 = vrot.lane.b32.xlu0 %v409, 32
    %v411 = vpop.permute.xlu0 %410
    %vm412 = vcmask 261120
    %s413 = scalar_lea.vmem %s1, 163
    %414 = vst.msk [vmem:[%s413] ss:$4 sm:$0xff] %vm412, %v411

</llo_original>
